<compile_context>
chip_gen: v7x
topology: tpu7x:2x2x1
jax: 0.10.0
libtpu: 0.0.40
codegen_flags: <defaults>
</compile_context>

<pallas_src>
from functools import partial

import jax
import jax.numpy as jnp
from jax.experimental import pallas as pl
from jax.experimental.pallas import tpu as pltpu


def _lstm_cell(inproj, h, c, w_hh_bf16, hidden):
    """One LSTM cell step.  `inproj` already holds x@W_ih^T + (b_ih + b_hh).

    PyTorch gate order [i, f, g, o].  Matmul operands bf16, accumulate f32,
    elementwise math f32.
    """
    gates = inproj + jnp.dot(h.astype(jnp.bfloat16), w_hh_bf16,
                             preferred_element_type=jnp.float32)
    i_g = jax.nn.sigmoid(gates[:, 0 * hidden:1 * hidden])
    f_g = jax.nn.sigmoid(gates[:, 1 * hidden:2 * hidden])
    g_g = jnp.tanh(gates[:, 2 * hidden:3 * hidden])
    o_g = jax.nn.sigmoid(gates[:, 3 * hidden:4 * hidden])
    c_new = f_g * c + i_g * g_g
    h_new = o_g * jnp.tanh(c_new)
    return h_new, c_new


def stock_kernel(conv_w_ref, conv_b_ref,           # SMEM: (3,3), (1,)
                 x_ref,                            # VMEM: (TB, 10, input_dim)
                 w_ih1_ref, w_hh1_ref, b1_ref,     # LSTM1 (pre-transposed, bf16/f32)
                 w_ih2_ref, w_hh2_ref, b2_ref,     # LSTM2
                 w_ih3_ref, w_hh3_ref, b3_ref,     # LSTM3
                 fc1_w_ref, fc1_b_ref, fc2_w_ref, fc2_b_ref,
                 out_ref,                          # (TB, 1)
                 *, hidden_dim, seq_len):
    x = x_ref[...]                                 # (B, H, W) f32
    B, H, W = x.shape
    Hc, Wc = H - 2, W - 2                          # valid 3x3 conv output
    T = seq_len
    hd = hidden_dim
    assert Hc == T                                 # static shape check (H == 10)

    # --- Conv2d(1, 1, (3,3)), no padding: 9 shifted multiply-accumulates (VPU) ---
    conv = jnp.zeros((B, Hc, Wc), jnp.float32)
    for di in range(3):
        for dj in range(3):
            conv = conv + conv_w_ref[di, dj] * x[:, di:di + Hc, dj:dj + Wc]
    conv = conv + conv_b_ref[0]

    # --- .view(-1, 8, input_dim-2): rows of conv are the T=8 timesteps ---
    # Hoisted layer-1 input projection: one (T*B, Wc) @ (Wc, 4*hd) matmul,
    # bias folded in once (rows are t-major: timestep t -> rows [t*B, (t+1)*B)).
    x_stacked = jnp.concatenate([conv[:, t, :] for t in range(T)], axis=0)
    xproj1 = (jnp.dot(x_stacked.astype(jnp.bfloat16), w_ih1_ref[...],
                      preferred_element_type=jnp.float32)
              + b1_ref[...])                       # (T*B, 4*hd) f32

    w_hh1 = w_hh1_ref[...]
    w_ih2 = w_ih2_ref[...]
    w_hh2 = w_hh2_ref[...]
    b2 = b2_ref[...]
    w_ih3 = w_ih3_ref[...]
    w_hh3 = w_hh3_ref[...]
    b3 = b3_ref[...]

    # --- wavefront over the three stacked LSTMs ---
    h1 = jnp.zeros((B, hd), jnp.float32)
    c1 = jnp.zeros((B, hd), jnp.float32)
    h2 = jnp.zeros((B, 2 * hd), jnp.float32)
    c2 = jnp.zeros((B, 2 * hd), jnp.float32)
    h3 = jnp.zeros((B, hd), jnp.float32)
    c3 = jnp.zeros((B, hd), jnp.float32)

    # Wave w: layer1 does timestep w, layer2 does w-1, layer3 does w-2.
    # All reads use the *old* h/c values from the previous wave, so every
    # matmul in a wave is independent of the others in the same wave.
    for w in range(T + 2):
        nh1, nc1 = h1, c1
        nh2, nc2 = h2, c2
        nh3, nc3 = h3, c3
        if w < T:                                  # layer 1, timestep w
            inproj1 = xproj1[w * B:(w + 1) * B, :]
            nh1, nc1 = _lstm_cell(inproj1, h1, c1, w_hh1, hd)
        if 1 <= w <= T:                            # layer 2, timestep w-1
            # input = layer-1 output at step w-1, i.e. the *old* h1.
            inproj2 = (jnp.dot(h1.astype(jnp.bfloat16), w_ih2,
                               preferred_element_type=jnp.float32) + b2)
            nh2, nc2 = _lstm_cell(inproj2, h2, c2, w_hh2, 2 * hd)
        if w >= 2:                                 # layer 3, timestep w-2
            # input = layer-2 output at step w-2, i.e. the *old* h2.
            inproj3 = (jnp.dot(h2.astype(jnp.bfloat16), w_ih3,
                               preferred_element_type=jnp.float32) + b3)
            nh3, nc3 = _lstm_cell(inproj3, h3, c3, w_hh3, hd)
        h1, c1 = nh1, nc1
        h2, c2 = nh2, nc2
        h3, c3 = nh3, nc3

    # --- lstm_out[:, -1, :] -> Linear(hidden,16) + ReLU -> Linear(16,1) ---
    mid = jnp.maximum(
        jnp.dot(h3.astype(jnp.bfloat16), fc1_w_ref[...],
                preferred_element_type=jnp.float32) + fc1_b_ref[...], 0.0)
    # fc2 is 16 -> 1: VPU multiply + lane reduction instead of a 1-wide MXU matmul.
    out = jnp.sum(mid * fc2_w_ref[...], axis=-1, keepdims=True) + fc2_b_ref[...]
    out_ref[...] = out.astype(out_ref.dtype)


def init_params(key, input_dim, hidden_dim):
    """Deterministic f32 init, shapes matching nn.Conv2d / nn.LSTM / nn.Linear."""
    def u(k, shape, scale):
        return jax.random.uniform(k, shape, jnp.float32, -scale, scale)

    keys = jax.random.split(key, 18)
    in_lstm = input_dim - 2
    p = {}
    p["conv_w"] = u(keys[0], (3, 3), 1.0 / 3.0)
    p["conv_b"] = u(keys[1], (1,), 1.0 / 3.0)

    def lstm_params(k1, k2, k3, k4, din, h):
        s = 1.0 / (h ** 0.5)
        w_ih = u(k1, (4 * h, din), s)              # PyTorch weight_ih_l0
        w_hh = u(k2, (4 * h, h), s)                # PyTorch weight_hh_l0
        b_ih = u(k3, (4 * h,), s)
        b_hh = u(k4, (4 * h,), s)
        # Pre-transpose for x @ W^T, fold the two biases together.
        return w_ih.T, w_hh.T, (b_ih + b_hh).reshape(1, 4 * h)

    p["l1"] = lstm_params(keys[2], keys[3], keys[4], keys[5], in_lstm, hidden_dim)
    p["l2"] = lstm_params(keys[6], keys[7], keys[8], keys[9], hidden_dim, 2 * hidden_dim)
    p["l3"] = lstm_params(keys[10], keys[11], keys[12], keys[13], 2 * hidden_dim, hidden_dim)

    s1 = 1.0 / (hidden_dim ** 0.5)
    p["fc1_w"] = u(keys[14], (16, hidden_dim), s1).T    # (hidden, 16)
    p["fc1_b"] = u(keys[15], (1, 16), s1)
    s2 = 1.0 / (16 ** 0.5)
    p["fc2_w"] = u(keys[16], (1, 16), s2)               # used as VPU row vector
    p["fc2_b"] = u(keys[17], (1, 1), s2)
    return p


def stock_forward(x, params, hidden_dim):
    """x: (B, 1, H, W) in NCHW, like the PyTorch module (H must be 10)."""
    B, _, H, W = x.shape
    assert H - 2 == 8, "conv output height must equal the seq_len=8 implied by .view(-1, 8, ...)"
    x3 = x[:, 0, :, :].astype(jnp.float32)              # (B, H, W)

    # Batch grid: trivially (1,) at B=2, but shards across both v7x TensorCores
    # once the batch grows.  TB kept a multiple of 8 for larger batches.
    TB = B if B <= 8 else 8
    assert B % TB == 0, "batch must be a multiple of the batch tile"
    grid = (B // TB,)

    bf16 = lambda a: a.astype(jnp.bfloat16)
    l1, l2, l3 = params["l1"], params["l2"], params["l3"]

    smem = pl.BlockSpec(memory_space=pltpu.MemorySpace.SMEM)
    vmem = pl.BlockSpec(memory_space=pltpu.MemorySpace.VMEM)   # whole array resident
    x_spec = pl.BlockSpec((TB, H, W), lambda i: (i, 0, 0))
    # TODO(synk): if the batch grid ever has many blocks, pad the (TB, 1) output
    # to a lane-dense slab and slice in the wrapper to avoid masked stores.
    out_spec = pl.BlockSpec((TB, 1), lambda i: (i, 0))

    kernel = partial(stock_kernel, hidden_dim=hidden_dim, seq_len=8)
    return pl.pallas_call(
        kernel,
        out_shape=jax.ShapeDtypeStruct((B, 1), jnp.float32),
        grid=grid,
        in_specs=[smem, smem, x_spec] + [vmem] * 13,
        out_specs=out_spec,
        compiler_params=pltpu.CompilerParams(dimension_semantics=("parallel",)),
    )(params["conv_w"], params["conv_b"], x3,
      bf16(l1[0]), bf16(l1[1]), l1[2],
      bf16(l2[0]), bf16(l2[1]), l2[2],
      bf16(l3[0]), bf16(l3[1]), l3[2],
      bf16(params["fc1_w"]), params["fc1_b"],
      params["fc2_w"], params["fc2_b"])


if __name__ == "__main__":
    key = jax.random.PRNGKey(0)
    kp, kx = jax.random.split(key)

    # Stock(input_dim=18, hidden_dim=32, layer=1); forward implies x of shape
    # (B, 1, 10, input_dim) so conv out (B, 1, 8, input_dim-2) reshapes to
    # (B, 8, input_dim-2).
    B, input_dim, hidden_dim = 2, 18, 32
    params = init_params(kp, input_dim, hidden_dim)
    x = jax.random.normal(kx, (B, 1, 10, input_dim), jnp.float32)

    out = stock_forward(x, params, hidden_dim)
    jax.block_until_ready(out)
    assert out.shape == (B, 1) and out.dtype == jnp.float32
    print("KERNEL_OK")
</pallas_src>

<mosaic_0001>
module attributes {stable_mosaic.version = 11 : i64} {
  func.func @stock_kernel(%arg0: i32, %arg1: memref<3x3xf32, #tpu.memory_space<smem>>, %arg2: memref<1xf32, #tpu.memory_space<smem>>, %arg3: memref<2x10x18xf32, #tpu.memory_space<vmem>>, %arg4: memref<16x128xbf16, #tpu.memory_space<vmem>>, %arg5: memref<32x128xbf16, #tpu.memory_space<vmem>>, %arg6: memref<1x128xf32, #tpu.memory_space<vmem>>, %arg7: memref<32x256xbf16, #tpu.memory_space<vmem>>, %arg8: memref<64x256xbf16, #tpu.memory_space<vmem>>, %arg9: memref<1x256xf32, #tpu.memory_space<vmem>>, %arg10: memref<64x128xbf16, #tpu.memory_space<vmem>>, %arg11: memref<32x128xbf16, #tpu.memory_space<vmem>>, %arg12: memref<1x128xf32, #tpu.memory_space<vmem>>, %arg13: memref<32x16xbf16, #tpu.memory_space<vmem>>, %arg14: memref<1x16xf32, #tpu.memory_space<vmem>>, %arg15: memref<1x16xf32, #tpu.memory_space<vmem>>, %arg16: memref<1x1xf32, #tpu.memory_space<vmem>>, %arg17: memref<2x1xf32, #tpu.memory_space<vmem>>) attributes {dimension_semantics = [#tpu.dimension_semantics<parallel>], iteration_bounds = array<i64: 1>, scalar_prefetch = 0 : i64, scratch_operands = 0 : i64, tpu.core_type = #tpu.core_type<tc>, window_params = [{transform_indices = @transform_0, window_bounds = array<i64: 3, 3>}, {transform_indices = @transform_1, window_bounds = array<i64: 1>}, {transform_indices = @transform_2, window_bounds = array<i64: 2, 10, 18>}, {pipeline_mode = #tpu.pipeline_mode<synchronous>, transform_indices = @transform_3, window_bounds = array<i64: 16, 128>}, {pipeline_mode = #tpu.pipeline_mode<synchronous>, transform_indices = @transform_4, window_bounds = array<i64: 32, 128>}, {pipeline_mode = #tpu.pipeline_mode<synchronous>, transform_indices = @transform_5, window_bounds = array<i64: 1, 128>}, {pipeline_mode = #tpu.pipeline_mode<synchronous>, transform_indices = @transform_6, window_bounds = array<i64: 32, 256>}, {pipeline_mode = #tpu.pipeline_mode<synchronous>, transform_indices = @transform_7, window_bounds = array<i64: 64, 256>}, {pipeline_mode = #tpu.pipeline_mode<synchronous>, transform_indices = @transform_8, window_bounds = array<i64: 1, 256>}, {pipeline_mode = #tpu.pipeline_mode<synchronous>, transform_indices = @transform_9, window_bounds = array<i64: 64, 128>}, {pipeline_mode = #tpu.pipeline_mode<synchronous>, transform_indices = @transform_10, window_bounds = array<i64: 32, 128>}, {pipeline_mode = #tpu.pipeline_mode<synchronous>, transform_indices = @transform_11, window_bounds = array<i64: 1, 128>}, {pipeline_mode = #tpu.pipeline_mode<synchronous>, transform_indices = @transform_12, window_bounds = array<i64: 32, 16>}, {pipeline_mode = #tpu.pipeline_mode<synchronous>, transform_indices = @transform_13, window_bounds = array<i64: 1, 16>}, {pipeline_mode = #tpu.pipeline_mode<synchronous>, transform_indices = @transform_14, window_bounds = array<i64: 1, 16>}, {pipeline_mode = #tpu.pipeline_mode<synchronous>, transform_indices = @transform_15, window_bounds = array<i64: 1, 1>}, {transform_indices = @transform_16, window_bounds = array<i64: 2, 1>}]} {
    %c0 = arith.constant 0 : index
    %c0_0 = arith.constant 0 : index
    %c0_1 = arith.constant 0 : index
    %0 = vector.load %arg3[%c0, %c0_0, %c0_1] : memref<2x10x18xf32, #tpu.memory_space<vmem>>, vector<2x10x18xf32>
    %cst = arith.constant 0.000000e+00 : f32
    %1 = vector.broadcast %cst : f32 to vector<2x8x16xf32>
    %c0_2 = arith.constant 0 : index
    %c0_3 = arith.constant 0 : index
    %2 = memref.load %arg1[%c0_2, %c0_3] : memref<3x3xf32, #tpu.memory_space<smem>>
    %3 = vector.extract_strided_slice %0 {offsets = [0, 0, 0], sizes = [2, 8, 16], strides = [1, 1, 1]} : vector<2x10x18xf32> to vector<2x8x16xf32>
    %4 = vector.broadcast %2 : f32 to vector<2x8x16xf32>
    %5 = arith.mulf %4, %3 : vector<2x8x16xf32>
    %6 = arith.addf %1, %5 : vector<2x8x16xf32>
    %c0_4 = arith.constant 0 : index
    %c1 = arith.constant 1 : index
    %7 = memref.load %arg1[%c0_4, %c1] : memref<3x3xf32, #tpu.memory_space<smem>>
    %8 = vector.extract_strided_slice %0 {offsets = [0, 0, 1], sizes = [2, 8, 16], strides = [1, 1, 1]} : vector<2x10x18xf32> to vector<2x8x16xf32>
    %9 = vector.broadcast %7 : f32 to vector<2x8x16xf32>
    %10 = arith.mulf %9, %8 : vector<2x8x16xf32>
    %11 = arith.addf %6, %10 : vector<2x8x16xf32>
    %c0_5 = arith.constant 0 : index
    %c2 = arith.constant 2 : index
    %12 = memref.load %arg1[%c0_5, %c2] : memref<3x3xf32, #tpu.memory_space<smem>>
    %13 = vector.extract_strided_slice %0 {offsets = [0, 0, 2], sizes = [2, 8, 16], strides = [1, 1, 1]} : vector<2x10x18xf32> to vector<2x8x16xf32>
    %14 = vector.broadcast %12 : f32 to vector<2x8x16xf32>
    %15 = arith.mulf %14, %13 : vector<2x8x16xf32>
    %16 = arith.addf %11, %15 : vector<2x8x16xf32>
    %c1_6 = arith.constant 1 : index
    %c0_7 = arith.constant 0 : index
    %17 = memref.load %arg1[%c1_6, %c0_7] : memref<3x3xf32, #tpu.memory_space<smem>>
    %18 = vector.extract_strided_slice %0 {offsets = [0, 1, 0], sizes = [2, 8, 16], strides = [1, 1, 1]} : vector<2x10x18xf32> to vector<2x8x16xf32>
    %19 = vector.broadcast %17 : f32 to vector<2x8x16xf32>
    %20 = arith.mulf %19, %18 : vector<2x8x16xf32>
    %21 = arith.addf %16, %20 : vector<2x8x16xf32>
    %c1_8 = arith.constant 1 : index
    %c1_9 = arith.constant 1 : index
    %22 = memref.load %arg1[%c1_8, %c1_9] : memref<3x3xf32, #tpu.memory_space<smem>>
    %23 = vector.extract_strided_slice %0 {offsets = [0, 1, 1], sizes = [2, 8, 16], strides = [1, 1, 1]} : vector<2x10x18xf32> to vector<2x8x16xf32>
    %24 = vector.broadcast %22 : f32 to vector<2x8x16xf32>
    %25 = arith.mulf %24, %23 : vector<2x8x16xf32>
    %26 = arith.addf %21, %25 : vector<2x8x16xf32>
    %c1_10 = arith.constant 1 : index
    %c2_11 = arith.constant 2 : index
    %27 = memref.load %arg1[%c1_10, %c2_11] : memref<3x3xf32, #tpu.memory_space<smem>>
    %28 = vector.extract_strided_slice %0 {offsets = [0, 1, 2], sizes = [2, 8, 16], strides = [1, 1, 1]} : vector<2x10x18xf32> to vector<2x8x16xf32>
    %29 = vector.broadcast %27 : f32 to vector<2x8x16xf32>
    %30 = arith.mulf %29, %28 : vector<2x8x16xf32>
    %31 = arith.addf %26, %30 : vector<2x8x16xf32>
    %c2_12 = arith.constant 2 : index
    %c0_13 = arith.constant 0 : index
    %32 = memref.load %arg1[%c2_12, %c0_13] : memref<3x3xf32, #tpu.memory_space<smem>>
    %33 = vector.extract_strided_slice %0 {offsets = [0, 2, 0], sizes = [2, 8, 16], strides = [1, 1, 1]} : vector<2x10x18xf32> to vector<2x8x16xf32>
    %34 = vector.broadcast %32 : f32 to vector<2x8x16xf32>
    %35 = arith.mulf %34, %33 : vector<2x8x16xf32>
    %36 = arith.addf %31, %35 : vector<2x8x16xf32>
    %c2_14 = arith.constant 2 : index
    %c1_15 = arith.constant 1 : index
    %37 = memref.load %arg1[%c2_14, %c1_15] : memref<3x3xf32, #tpu.memory_space<smem>>
    %38 = vector.extract_strided_slice %0 {offsets = [0, 2, 1], sizes = [2, 8, 16], strides = [1, 1, 1]} : vector<2x10x18xf32> to vector<2x8x16xf32>
    %39 = vector.broadcast %37 : f32 to vector<2x8x16xf32>
    %40 = arith.mulf %39, %38 : vector<2x8x16xf32>
    %41 = arith.addf %36, %40 : vector<2x8x16xf32>
    %c2_16 = arith.constant 2 : index
    %c2_17 = arith.constant 2 : index
    %42 = memref.load %arg1[%c2_16, %c2_17] : memref<3x3xf32, #tpu.memory_space<smem>>
    %43 = vector.extract_strided_slice %0 {offsets = [0, 2, 2], sizes = [2, 8, 16], strides = [1, 1, 1]} : vector<2x10x18xf32> to vector<2x8x16xf32>
    %44 = vector.broadcast %42 : f32 to vector<2x8x16xf32>
    %45 = arith.mulf %44, %43 : vector<2x8x16xf32>
    %46 = arith.addf %41, %45 : vector<2x8x16xf32>
    %c0_18 = arith.constant 0 : index
    %47 = memref.load %arg2[%c0_18] : memref<1xf32, #tpu.memory_space<smem>>
    %48 = vector.broadcast %47 : f32 to vector<2x8x16xf32>
    %49 = arith.addf %46, %48 : vector<2x8x16xf32>
    %50 = vector.extract_strided_slice %49 {offsets = [0, 0, 0], sizes = [2, 1, 16], strides = [1, 1, 1]} : vector<2x8x16xf32> to vector<2x1x16xf32>
    %51 = vector.shape_cast %50 : vector<2x1x16xf32> to vector<2x16xf32>
    %52 = vector.extract_strided_slice %49 {offsets = [0, 1, 0], sizes = [2, 1, 16], strides = [1, 1, 1]} : vector<2x8x16xf32> to vector<2x1x16xf32>
    %53 = vector.shape_cast %52 : vector<2x1x16xf32> to vector<2x16xf32>
    %54 = vector.extract_strided_slice %49 {offsets = [0, 2, 0], sizes = [2, 1, 16], strides = [1, 1, 1]} : vector<2x8x16xf32> to vector<2x1x16xf32>
    %55 = vector.shape_cast %54 : vector<2x1x16xf32> to vector<2x16xf32>
    %56 = vector.extract_strided_slice %49 {offsets = [0, 3, 0], sizes = [2, 1, 16], strides = [1, 1, 1]} : vector<2x8x16xf32> to vector<2x1x16xf32>
    %57 = vector.shape_cast %56 : vector<2x1x16xf32> to vector<2x16xf32>
    %58 = vector.extract_strided_slice %49 {offsets = [0, 4, 0], sizes = [2, 1, 16], strides = [1, 1, 1]} : vector<2x8x16xf32> to vector<2x1x16xf32>
    %59 = vector.shape_cast %58 : vector<2x1x16xf32> to vector<2x16xf32>
    %60 = vector.extract_strided_slice %49 {offsets = [0, 5, 0], sizes = [2, 1, 16], strides = [1, 1, 1]} : vector<2x8x16xf32> to vector<2x1x16xf32>
    %61 = vector.shape_cast %60 : vector<2x1x16xf32> to vector<2x16xf32>
    %62 = vector.extract_strided_slice %49 {offsets = [0, 6, 0], sizes = [2, 1, 16], strides = [1, 1, 1]} : vector<2x8x16xf32> to vector<2x1x16xf32>
    %63 = vector.shape_cast %62 : vector<2x1x16xf32> to vector<2x16xf32>
    %64 = vector.extract_strided_slice %49 {offsets = [0, 7, 0], sizes = [2, 1, 16], strides = [1, 1, 1]} : vector<2x8x16xf32> to vector<2x1x16xf32>
    %65 = vector.shape_cast %64 : vector<2x1x16xf32> to vector<2x16xf32>
    %66 = tpu.concatenate %51, %53, %55, %57, %59, %61, %63, %65 in 0 : vector<2x16xf32>, vector<2x16xf32>, vector<2x16xf32>, vector<2x16xf32>, vector<2x16xf32>, vector<2x16xf32>, vector<2x16xf32>, vector<2x16xf32> -> vector<16x16xf32>
    %67 = arith.truncf %66 : vector<16x16xf32> to vector<16x16xbf16>
    %c0_19 = arith.constant 0 : index
    %c0_20 = arith.constant 0 : index
    %68 = vector.load %arg4[%c0_19, %c0_20] : memref<16x128xbf16, #tpu.memory_space<vmem>>, vector<16x128xbf16>
    %cst_21 = arith.constant dense<0.000000e+00> : vector<16x128xf32>
    %69 = tpu.matmul %67, %68, %cst_21 {dimension_numbers = #tpu.dot_dimension_numbers<[1], [0], [0], [1], [0, 0, 1, 1], [], []>} : vector<16x16xbf16>, vector<16x128xbf16>, vector<16x128xf32> -> vector<16x128xf32>
    %c0_22 = arith.constant 0 : index
    %c0_23 = arith.constant 0 : index
    %70 = vector.load %arg6[%c0_22, %c0_23] : memref<1x128xf32, #tpu.memory_space<vmem>>, vector<1x128xf32>
    %71 = vector.broadcast %70 : vector<1x128xf32> to vector<16x128xf32>
    %72 = arith.addf %69, %71 : vector<16x128xf32>
    %c0_24 = arith.constant 0 : index
    %c0_25 = arith.constant 0 : index
    %73 = vector.load %arg5[%c0_24, %c0_25] : memref<32x128xbf16, #tpu.memory_space<vmem>>, vector<32x128xbf16>
    %c0_26 = arith.constant 0 : index
    %c0_27 = arith.constant 0 : index
    %74 = vector.load %arg7[%c0_26, %c0_27] : memref<32x256xbf16, #tpu.memory_space<vmem>>, vector<32x256xbf16>
    %c0_28 = arith.constant 0 : index
    %c0_29 = arith.constant 0 : index
    %75 = vector.load %arg8[%c0_28, %c0_29] : memref<64x256xbf16, #tpu.memory_space<vmem>>, vector<64x256xbf16>
    %c0_30 = arith.constant 0 : index
    %c0_31 = arith.constant 0 : index
    %76 = vector.load %arg9[%c0_30, %c0_31] : memref<1x256xf32, #tpu.memory_space<vmem>>, vector<1x256xf32>
    %c0_32 = arith.constant 0 : index
    %c0_33 = arith.constant 0 : index
    %77 = vector.load %arg10[%c0_32, %c0_33] : memref<64x128xbf16, #tpu.memory_space<vmem>>, vector<64x128xbf16>
    %c0_34 = arith.constant 0 : index
    %c0_35 = arith.constant 0 : index
    %78 = vector.load %arg11[%c0_34, %c0_35] : memref<32x128xbf16, #tpu.memory_space<vmem>>, vector<32x128xbf16>
    %c0_36 = arith.constant 0 : index
    %c0_37 = arith.constant 0 : index
    %79 = vector.load %arg12[%c0_36, %c0_37] : memref<1x128xf32, #tpu.memory_space<vmem>>, vector<1x128xf32>
    %cst_38 = arith.constant 0.000000e+00 : f32
    %80 = vector.broadcast %cst_38 : f32 to vector<2x32xf32>
    %cst_39 = arith.constant 0.000000e+00 : f32
    %81 = vector.broadcast %cst_39 : f32 to vector<2x32xf32>
    %cst_40 = arith.constant 0.000000e+00 : f32
    %82 = vector.broadcast %cst_40 : f32 to vector<2x64xf32>
    %cst_41 = arith.constant 0.000000e+00 : f32
    %83 = vector.broadcast %cst_41 : f32 to vector<2x64xf32>
    %cst_42 = arith.constant 0.000000e+00 : f32
    %84 = vector.broadcast %cst_42 : f32 to vector<2x32xf32>
    %cst_43 = arith.constant 0.000000e+00 : f32
    %85 = vector.broadcast %cst_43 : f32 to vector<2x32xf32>
    %86 = vector.extract_strided_slice %72 {offsets = [0, 0], sizes = [2, 128], strides = [1, 1]} : vector<16x128xf32> to vector<2x128xf32>
    %87 = arith.truncf %80 : vector<2x32xf32> to vector<2x32xbf16>
    %cst_44 = arith.constant dense<0.000000e+00> : vector<2x128xf32>
    %88 = tpu.matmul %87, %73, %cst_44 {dimension_numbers = #tpu.dot_dimension_numbers<[1], [0], [0], [1], [0, 0, 1, 1], [], []>} : vector<2x32xbf16>, vector<32x128xbf16>, vector<2x128xf32> -> vector<2x128xf32>
    %89 = arith.addf %86, %88 : vector<2x128xf32>
    %90 = vector.extract_strided_slice %89 {offsets = [0, 0], sizes = [2, 32], strides = [1, 1]} : vector<2x128xf32> to vector<2x32xf32>
    %91 = arith.negf %90 : vector<2x32xf32>
    %92 = math.exp %91 : vector<2x32xf32>
    %cst_45 = arith.constant 1.000000e+00 : f32
    %93 = vector.broadcast %cst_45 : f32 to vector<2x32xf32>
    %94 = arith.addf %93, %92 : vector<2x32xf32>
    %95 = arith.divf %93, %94 : vector<2x32xf32>
    %96 = vector.extract_strided_slice %89 {offsets = [0, 32], sizes = [2, 32], strides = [1, 1]} : vector<2x128xf32> to vector<2x32xf32>
    %97 = arith.negf %96 : vector<2x32xf32>
    %98 = math.exp %97 : vector<2x32xf32>
    %cst_46 = arith.constant 1.000000e+00 : f32
    %99 = vector.broadcast %cst_46 : f32 to vector<2x32xf32>
    %100 = arith.addf %99, %98 : vector<2x32xf32>
    %101 = arith.divf %99, %100 : vector<2x32xf32>
    %102 = vector.extract_strided_slice %89 {offsets = [0, 64], sizes = [2, 32], strides = [1, 1]} : vector<2x128xf32> to vector<2x32xf32>
    %103 = math.tanh %102 : vector<2x32xf32>
    %104 = vector.extract_strided_slice %89 {offsets = [0, 96], sizes = [2, 32], strides = [1, 1]} : vector<2x128xf32> to vector<2x32xf32>
    %105 = arith.negf %104 : vector<2x32xf32>
    %106 = math.exp %105 : vector<2x32xf32>
    %cst_47 = arith.constant 1.000000e+00 : f32
    %107 = vector.broadcast %cst_47 : f32 to vector<2x32xf32>
    %108 = arith.addf %107, %106 : vector<2x32xf32>
    %109 = arith.divf %107, %108 : vector<2x32xf32>
    %110 = arith.mulf %101, %81 : vector<2x32xf32>
    %111 = arith.mulf %95, %103 : vector<2x32xf32>
    %112 = arith.addf %110, %111 : vector<2x32xf32>
    %113 = math.tanh %112 : vector<2x32xf32>
    %114 = arith.mulf %109, %113 : vector<2x32xf32>
    %115 = vector.extract_strided_slice %72 {offsets = [2, 0], sizes = [2, 128], strides = [1, 1]} : vector<16x128xf32> to vector<2x128xf32>
    %116 = arith.truncf %114 : vector<2x32xf32> to vector<2x32xbf16>
    %cst_48 = arith.constant dense<0.000000e+00> : vector<2x128xf32>
    %117 = tpu.matmul %116, %73, %cst_48 {dimension_numbers = #tpu.dot_dimension_numbers<[1], [0], [0], [1], [0, 0, 1, 1], [], []>} : vector<2x32xbf16>, vector<32x128xbf16>, vector<2x128xf32> -> vector<2x128xf32>
    %118 = arith.addf %115, %117 : vector<2x128xf32>
    %119 = vector.extract_strided_slice %118 {offsets = [0, 0], sizes = [2, 32], strides = [1, 1]} : vector<2x128xf32> to vector<2x32xf32>
    %120 = arith.negf %119 : vector<2x32xf32>
    %121 = math.exp %120 : vector<2x32xf32>
    %cst_49 = arith.constant 1.000000e+00 : f32
    %122 = vector.broadcast %cst_49 : f32 to vector<2x32xf32>
    %123 = arith.addf %122, %121 : vector<2x32xf32>
    %124 = arith.divf %122, %123 : vector<2x32xf32>
    %125 = vector.extract_strided_slice %118 {offsets = [0, 32], sizes = [2, 32], strides = [1, 1]} : vector<2x128xf32> to vector<2x32xf32>
    %126 = arith.negf %125 : vector<2x32xf32>
    %127 = math.exp %126 : vector<2x32xf32>
    %cst_50 = arith.constant 1.000000e+00 : f32
    %128 = vector.broadcast %cst_50 : f32 to vector<2x32xf32>
    %129 = arith.addf %128, %127 : vector<2x32xf32>
    %130 = arith.divf %128, %129 : vector<2x32xf32>
    %131 = vector.extract_strided_slice %118 {offsets = [0, 64], sizes = [2, 32], strides = [1, 1]} : vector<2x128xf32> to vector<2x32xf32>
    %132 = math.tanh %131 : vector<2x32xf32>
    %133 = vector.extract_strided_slice %118 {offsets = [0, 96], sizes = [2, 32], strides = [1, 1]} : vector<2x128xf32> to vector<2x32xf32>
    %134 = arith.negf %133 : vector<2x32xf32>
    %135 = math.exp %134 : vector<2x32xf32>
    %cst_51 = arith.constant 1.000000e+00 : f32
    %136 = vector.broadcast %cst_51 : f32 to vector<2x32xf32>
    %137 = arith.addf %136, %135 : vector<2x32xf32>
    %138 = arith.divf %136, %137 : vector<2x32xf32>
    %139 = arith.mulf %130, %112 : vector<2x32xf32>
    %140 = arith.mulf %124, %132 : vector<2x32xf32>
    %141 = arith.addf %139, %140 : vector<2x32xf32>
    %142 = math.tanh %141 : vector<2x32xf32>
    %143 = arith.mulf %138, %142 : vector<2x32xf32>
    %144 = arith.truncf %114 : vector<2x32xf32> to vector<2x32xbf16>
    %cst_52 = arith.constant dense<0.000000e+00> : vector<2x256xf32>
    %145 = tpu.matmul %144, %74, %cst_52 {dimension_numbers = #tpu.dot_dimension_numbers<[1], [0], [0], [1], [0, 0, 1, 1], [], []>} : vector<2x32xbf16>, vector<32x256xbf16>, vector<2x256xf32> -> vector<2x256xf32>
    %146 = vector.broadcast %76 : vector<1x256xf32> to vector<2x256xf32>
    %147 = arith.addf %145, %146 : vector<2x256xf32>
    %148 = arith.truncf %82 : vector<2x64xf32> to vector<2x64xbf16>
    %cst_53 = arith.constant dense<0.000000e+00> : vector<2x256xf32>
    %149 = tpu.matmul %148, %75, %cst_53 {dimension_numbers = #tpu.dot_dimension_numbers<[1], [0], [0], [1], [0, 0, 1, 1], [], []>} : vector<2x64xbf16>, vector<64x256xbf16>, vector<2x256xf32> -> vector<2x256xf32>
    %150 = arith.addf %147, %149 : vector<2x256xf32>
    %151 = vector.extract_strided_slice %150 {offsets = [0, 0], sizes = [2, 64], strides = [1, 1]} : vector<2x256xf32> to vector<2x64xf32>
    %152 = arith.negf %151 : vector<2x64xf32>
    %153 = math.exp %152 : vector<2x64xf32>
    %cst_54 = arith.constant 1.000000e+00 : f32
    %154 = vector.broadcast %cst_54 : f32 to vector<2x64xf32>
    %155 = arith.addf %154, %153 : vector<2x64xf32>
    %156 = arith.divf %154, %155 : vector<2x64xf32>
    %157 = vector.extract_strided_slice %150 {offsets = [0, 64], sizes = [2, 64], strides = [1, 1]} : vector<2x256xf32> to vector<2x64xf32>
    %158 = arith.negf %157 : vector<2x64xf32>
    %159 = math.exp %158 : vector<2x64xf32>
    %cst_55 = arith.constant 1.000000e+00 : f32
    %160 = vector.broadcast %cst_55 : f32 to vector<2x64xf32>
    %161 = arith.addf %160, %159 : vector<2x64xf32>
    %162 = arith.divf %160, %161 : vector<2x64xf32>
    %163 = vector.extract_strided_slice %150 {offsets = [0, 128], sizes = [2, 64], strides = [1, 1]} : vector<2x256xf32> to vector<2x64xf32>
    %164 = math.tanh %163 : vector<2x64xf32>
    %165 = vector.extract_strided_slice %150 {offsets = [0, 192], sizes = [2, 64], strides = [1, 1]} : vector<2x256xf32> to vector<2x64xf32>
    %166 = arith.negf %165 : vector<2x64xf32>
    %167 = math.exp %166 : vector<2x64xf32>
    %cst_56 = arith.constant 1.000000e+00 : f32
    %168 = vector.broadcast %cst_56 : f32 to vector<2x64xf32>
    %169 = arith.addf %168, %167 : vector<2x64xf32>
    %170 = arith.divf %168, %169 : vector<2x64xf32>
    %171 = arith.mulf %162, %83 : vector<2x64xf32>
    %172 = arith.mulf %156, %164 : vector<2x64xf32>
    %173 = arith.addf %171, %172 : vector<2x64xf32>
    %174 = math.tanh %173 : vector<2x64xf32>
    %175 = arith.mulf %170, %174 : vector<2x64xf32>
    %176 = vector.extract_strided_slice %72 {offsets = [4, 0], sizes = [2, 128], strides = [1, 1]} : vector<16x128xf32> to vector<2x128xf32>
    %177 = arith.truncf %143 : vector<2x32xf32> to vector<2x32xbf16>
    %cst_57 = arith.constant dense<0.000000e+00> : vector<2x128xf32>
    %178 = tpu.matmul %177, %73, %cst_57 {dimension_numbers = #tpu.dot_dimension_numbers<[1], [0], [0], [1], [0, 0, 1, 1], [], []>} : vector<2x32xbf16>, vector<32x128xbf16>, vector<2x128xf32> -> vector<2x128xf32>
    %179 = arith.addf %176, %178 : vector<2x128xf32>
    %180 = vector.extract_strided_slice %179 {offsets = [0, 0], sizes = [2, 32], strides = [1, 1]} : vector<2x128xf32> to vector<2x32xf32>
    %181 = arith.negf %180 : vector<2x32xf32>
    %182 = math.exp %181 : vector<2x32xf32>
    %cst_58 = arith.constant 1.000000e+00 : f32
    %183 = vector.broadcast %cst_58 : f32 to vector<2x32xf32>
    %184 = arith.addf %183, %182 : vector<2x32xf32>
    %185 = arith.divf %183, %184 : vector<2x32xf32>
    %186 = vector.extract_strided_slice %179 {offsets = [0, 32], sizes = [2, 32], strides = [1, 1]} : vector<2x128xf32> to vector<2x32xf32>
    %187 = arith.negf %186 : vector<2x32xf32>
    %188 = math.exp %187 : vector<2x32xf32>
    %cst_59 = arith.constant 1.000000e+00 : f32
    %189 = vector.broadcast %cst_59 : f32 to vector<2x32xf32>
    %190 = arith.addf %189, %188 : vector<2x32xf32>
    %191 = arith.divf %189, %190 : vector<2x32xf32>
    %192 = vector.extract_strided_slice %179 {offsets = [0, 64], sizes = [2, 32], strides = [1, 1]} : vector<2x128xf32> to vector<2x32xf32>
    %193 = math.tanh %192 : vector<2x32xf32>
    %194 = vector.extract_strided_slice %179 {offsets = [0, 96], sizes = [2, 32], strides = [1, 1]} : vector<2x128xf32> to vector<2x32xf32>
    %195 = arith.negf %194 : vector<2x32xf32>
    %196 = math.exp %195 : vector<2x32xf32>
    %cst_60 = arith.constant 1.000000e+00 : f32
    %197 = vector.broadcast %cst_60 : f32 to vector<2x32xf32>
    %198 = arith.addf %197, %196 : vector<2x32xf32>
    %199 = arith.divf %197, %198 : vector<2x32xf32>
    %200 = arith.mulf %191, %141 : vector<2x32xf32>
    %201 = arith.mulf %185, %193 : vector<2x32xf32>
    %202 = arith.addf %200, %201 : vector<2x32xf32>
    %203 = math.tanh %202 : vector<2x32xf32>
    %204 = arith.mulf %199, %203 : vector<2x32xf32>
    %205 = arith.truncf %143 : vector<2x32xf32> to vector<2x32xbf16>
    %cst_61 = arith.constant dense<0.000000e+00> : vector<2x256xf32>
    %206 = tpu.matmul %205, %74, %cst_61 {dimension_numbers = #tpu.dot_dimension_numbers<[1], [0], [0], [1], [0, 0, 1, 1], [], []>} : vector<2x32xbf16>, vector<32x256xbf16>, vector<2x256xf32> -> vector<2x256xf32>
    %207 = vector.broadcast %76 : vector<1x256xf32> to vector<2x256xf32>
    %208 = arith.addf %206, %207 : vector<2x256xf32>
    %209 = arith.truncf %175 : vector<2x64xf32> to vector<2x64xbf16>
    %cst_62 = arith.constant dense<0.000000e+00> : vector<2x256xf32>
    %210 = tpu.matmul %209, %75, %cst_62 {dimension_numbers = #tpu.dot_dimension_numbers<[1], [0], [0], [1], [0, 0, 1, 1], [], []>} : vector<2x64xbf16>, vector<64x256xbf16>, vector<2x256xf32> -> vector<2x256xf32>
    %211 = arith.addf %208, %210 : vector<2x256xf32>
    %212 = vector.extract_strided_slice %211 {offsets = [0, 0], sizes = [2, 64], strides = [1, 1]} : vector<2x256xf32> to vector<2x64xf32>
    %213 = arith.negf %212 : vector<2x64xf32>
    %214 = math.exp %213 : vector<2x64xf32>
    %cst_63 = arith.constant 1.000000e+00 : f32
    %215 = vector.broadcast %cst_63 : f32 to vector<2x64xf32>
    %216 = arith.addf %215, %214 : vector<2x64xf32>
    %217 = arith.divf %215, %216 : vector<2x64xf32>
    %218 = vector.extract_strided_slice %211 {offsets = [0, 64], sizes = [2, 64], strides = [1, 1]} : vector<2x256xf32> to vector<2x64xf32>
    %219 = arith.negf %218 : vector<2x64xf32>
    %220 = math.exp %219 : vector<2x64xf32>
    %cst_64 = arith.constant 1.000000e+00 : f32
    %221 = vector.broadcast %cst_64 : f32 to vector<2x64xf32>
    %222 = arith.addf %221, %220 : vector<2x64xf32>
    %223 = arith.divf %221, %222 : vector<2x64xf32>
    %224 = vector.extract_strided_slice %211 {offsets = [0, 128], sizes = [2, 64], strides = [1, 1]} : vector<2x256xf32> to vector<2x64xf32>
    %225 = math.tanh %224 : vector<2x64xf32>
    %226 = vector.extract_strided_slice %211 {offsets = [0, 192], sizes = [2, 64], strides = [1, 1]} : vector<2x256xf32> to vector<2x64xf32>
    %227 = arith.negf %226 : vector<2x64xf32>
    %228 = math.exp %227 : vector<2x64xf32>
    %cst_65 = arith.constant 1.000000e+00 : f32
    %229 = vector.broadcast %cst_65 : f32 to vector<2x64xf32>
    %230 = arith.addf %229, %228 : vector<2x64xf32>
    %231 = arith.divf %229, %230 : vector<2x64xf32>
    %232 = arith.mulf %223, %173 : vector<2x64xf32>
    %233 = arith.mulf %217, %225 : vector<2x64xf32>
    %234 = arith.addf %232, %233 : vector<2x64xf32>
    %235 = math.tanh %234 : vector<2x64xf32>
    %236 = arith.mulf %231, %235 : vector<2x64xf32>
    %237 = arith.truncf %175 : vector<2x64xf32> to vector<2x64xbf16>
    %cst_66 = arith.constant dense<0.000000e+00> : vector<2x128xf32>
    %238 = tpu.matmul %237, %77, %cst_66 {dimension_numbers = #tpu.dot_dimension_numbers<[1], [0], [0], [1], [0, 0, 1, 1], [], []>} : vector<2x64xbf16>, vector<64x128xbf16>, vector<2x128xf32> -> vector<2x128xf32>
    %239 = vector.broadcast %79 : vector<1x128xf32> to vector<2x128xf32>
    %240 = arith.addf %238, %239 : vector<2x128xf32>
    %241 = arith.truncf %84 : vector<2x32xf32> to vector<2x32xbf16>
    %cst_67 = arith.constant dense<0.000000e+00> : vector<2x128xf32>
    %242 = tpu.matmul %241, %78, %cst_67 {dimension_numbers = #tpu.dot_dimension_numbers<[1], [0], [0], [1], [0, 0, 1, 1], [], []>} : vector<2x32xbf16>, vector<32x128xbf16>, vector<2x128xf32> -> vector<2x128xf32>
    %243 = arith.addf %240, %242 : vector<2x128xf32>
    %244 = vector.extract_strided_slice %243 {offsets = [0, 0], sizes = [2, 32], strides = [1, 1]} : vector<2x128xf32> to vector<2x32xf32>
    %245 = arith.negf %244 : vector<2x32xf32>
    %246 = math.exp %245 : vector<2x32xf32>
    %cst_68 = arith.constant 1.000000e+00 : f32
    %247 = vector.broadcast %cst_68 : f32 to vector<2x32xf32>
    %248 = arith.addf %247, %246 : vector<2x32xf32>
    %249 = arith.divf %247, %248 : vector<2x32xf32>
    %250 = vector.extract_strided_slice %243 {offsets = [0, 32], sizes = [2, 32], strides = [1, 1]} : vector<2x128xf32> to vector<2x32xf32>
    %251 = arith.negf %250 : vector<2x32xf32>
    %252 = math.exp %251 : vector<2x32xf32>
    %cst_69 = arith.constant 1.000000e+00 : f32
    %253 = vector.broadcast %cst_69 : f32 to vector<2x32xf32>
    %254 = arith.addf %253, %252 : vector<2x32xf32>
    %255 = arith.divf %253, %254 : vector<2x32xf32>
    %256 = vector.extract_strided_slice %243 {offsets = [0, 64], sizes = [2, 32], strides = [1, 1]} : vector<2x128xf32> to vector<2x32xf32>
    %257 = math.tanh %256 : vector<2x32xf32>
    %258 = vector.extract_strided_slice %243 {offsets = [0, 96], sizes = [2, 32], strides = [1, 1]} : vector<2x128xf32> to vector<2x32xf32>
    %259 = arith.negf %258 : vector<2x32xf32>
    %260 = math.exp %259 : vector<2x32xf32>
    %cst_70 = arith.constant 1.000000e+00 : f32
    %261 = vector.broadcast %cst_70 : f32 to vector<2x32xf32>
    %262 = arith.addf %261, %260 : vector<2x32xf32>
    %263 = arith.divf %261, %262 : vector<2x32xf32>
    %264 = arith.mulf %255, %85 : vector<2x32xf32>
    %265 = arith.mulf %249, %257 : vector<2x32xf32>
    %266 = arith.addf %264, %265 : vector<2x32xf32>
    %267 = math.tanh %266 : vector<2x32xf32>
    %268 = arith.mulf %263, %267 : vector<2x32xf32>
    %269 = vector.extract_strided_slice %72 {offsets = [6, 0], sizes = [2, 128], strides = [1, 1]} : vector<16x128xf32> to vector<2x128xf32>
    %270 = arith.truncf %204 : vector<2x32xf32> to vector<2x32xbf16>
    %cst_71 = arith.constant dense<0.000000e+00> : vector<2x128xf32>
    %271 = tpu.matmul %270, %73, %cst_71 {dimension_numbers = #tpu.dot_dimension_numbers<[1], [0], [0], [1], [0, 0, 1, 1], [], []>} : vector<2x32xbf16>, vector<32x128xbf16>, vector<2x128xf32> -> vector<2x128xf32>
    %272 = arith.addf %269, %271 : vector<2x128xf32>
    %273 = vector.extract_strided_slice %272 {offsets = [0, 0], sizes = [2, 32], strides = [1, 1]} : vector<2x128xf32> to vector<2x32xf32>
    %274 = arith.negf %273 : vector<2x32xf32>
    %275 = math.exp %274 : vector<2x32xf32>
    %cst_72 = arith.constant 1.000000e+00 : f32
    %276 = vector.broadcast %cst_72 : f32 to vector<2x32xf32>
    %277 = arith.addf %276, %275 : vector<2x32xf32>
    %278 = arith.divf %276, %277 : vector<2x32xf32>
    %279 = vector.extract_strided_slice %272 {offsets = [0, 32], sizes = [2, 32], strides = [1, 1]} : vector<2x128xf32> to vector<2x32xf32>
    %280 = arith.negf %279 : vector<2x32xf32>
    %281 = math.exp %280 : vector<2x32xf32>
    %cst_73 = arith.constant 1.000000e+00 : f32
    %282 = vector.broadcast %cst_73 : f32 to vector<2x32xf32>
    %283 = arith.addf %282, %281 : vector<2x32xf32>
    %284 = arith.divf %282, %283 : vector<2x32xf32>
    %285 = vector.extract_strided_slice %272 {offsets = [0, 64], sizes = [2, 32], strides = [1, 1]} : vector<2x128xf32> to vector<2x32xf32>
    %286 = math.tanh %285 : vector<2x32xf32>
    %287 = vector.extract_strided_slice %272 {offsets = [0, 96], sizes = [2, 32], strides = [1, 1]} : vector<2x128xf32> to vector<2x32xf32>
    %288 = arith.negf %287 : vector<2x32xf32>
    %289 = math.exp %288 : vector<2x32xf32>
    %cst_74 = arith.constant 1.000000e+00 : f32
    %290 = vector.broadcast %cst_74 : f32 to vector<2x32xf32>
    %291 = arith.addf %290, %289 : vector<2x32xf32>
    %292 = arith.divf %290, %291 : vector<2x32xf32>
    %293 = arith.mulf %284, %202 : vector<2x32xf32>
    %294 = arith.mulf %278, %286 : vector<2x32xf32>
    %295 = arith.addf %293, %294 : vector<2x32xf32>
    %296 = math.tanh %295 : vector<2x32xf32>
    %297 = arith.mulf %292, %296 : vector<2x32xf32>
    %298 = arith.truncf %204 : vector<2x32xf32> to vector<2x32xbf16>
    %cst_75 = arith.constant dense<0.000000e+00> : vector<2x256xf32>
    %299 = tpu.matmul %298, %74, %cst_75 {dimension_numbers = #tpu.dot_dimension_numbers<[1], [0], [0], [1], [0, 0, 1, 1], [], []>} : vector<2x32xbf16>, vector<32x256xbf16>, vector<2x256xf32> -> vector<2x256xf32>
    %300 = vector.broadcast %76 : vector<1x256xf32> to vector<2x256xf32>
    %301 = arith.addf %299, %300 : vector<2x256xf32>
    %302 = arith.truncf %236 : vector<2x64xf32> to vector<2x64xbf16>
    %cst_76 = arith.constant dense<0.000000e+00> : vector<2x256xf32>
    %303 = tpu.matmul %302, %75, %cst_76 {dimension_numbers = #tpu.dot_dimension_numbers<[1], [0], [0], [1], [0, 0, 1, 1], [], []>} : vector<2x64xbf16>, vector<64x256xbf16>, vector<2x256xf32> -> vector<2x256xf32>
    %304 = arith.addf %301, %303 : vector<2x256xf32>
    %305 = vector.extract_strided_slice %304 {offsets = [0, 0], sizes = [2, 64], strides = [1, 1]} : vector<2x256xf32> to vector<2x64xf32>
    %306 = arith.negf %305 : vector<2x64xf32>
    %307 = math.exp %306 : vector<2x64xf32>
    %cst_77 = arith.constant 1.000000e+00 : f32
    %308 = vector.broadcast %cst_77 : f32 to vector<2x64xf32>
    %309 = arith.addf %308, %307 : vector<2x64xf32>
    %310 = arith.divf %308, %309 : vector<2x64xf32>
    %311 = vector.extract_strided_slice %304 {offsets = [0, 64], sizes = [2, 64], strides = [1, 1]} : vector<2x256xf32> to vector<2x64xf32>
    %312 = arith.negf %311 : vector<2x64xf32>
    %313 = math.exp %312 : vector<2x64xf32>
    %cst_78 = arith.constant 1.000000e+00 : f32
    %314 = vector.broadcast %cst_78 : f32 to vector<2x64xf32>
    %315 = arith.addf %314, %313 : vector<2x64xf32>
    %316 = arith.divf %314, %315 : vector<2x64xf32>
    %317 = vector.extract_strided_slice %304 {offsets = [0, 128], sizes = [2, 64], strides = [1, 1]} : vector<2x256xf32> to vector<2x64xf32>
    %318 = math.tanh %317 : vector<2x64xf32>
    %319 = vector.extract_strided_slice %304 {offsets = [0, 192], sizes = [2, 64], strides = [1, 1]} : vector<2x256xf32> to vector<2x64xf32>
    %320 = arith.negf %319 : vector<2x64xf32>
    %321 = math.exp %320 : vector<2x64xf32>
    %cst_79 = arith.constant 1.000000e+00 : f32
    %322 = vector.broadcast %cst_79 : f32 to vector<2x64xf32>
    %323 = arith.addf %322, %321 : vector<2x64xf32>
    %324 = arith.divf %322, %323 : vector<2x64xf32>
    %325 = arith.mulf %316, %234 : vector<2x64xf32>
    %326 = arith.mulf %310, %318 : vector<2x64xf32>
    %327 = arith.addf %325, %326 : vector<2x64xf32>
    %328 = math.tanh %327 : vector<2x64xf32>
    %329 = arith.mulf %324, %328 : vector<2x64xf32>
    %330 = arith.truncf %236 : vector<2x64xf32> to vector<2x64xbf16>
    %cst_80 = arith.constant dense<0.000000e+00> : vector<2x128xf32>
    %331 = tpu.matmul %330, %77, %cst_80 {dimension_numbers = #tpu.dot_dimension_numbers<[1], [0], [0], [1], [0, 0, 1, 1], [], []>} : vector<2x64xbf16>, vector<64x128xbf16>, vector<2x128xf32> -> vector<2x128xf32>
    %332 = vector.broadcast %79 : vector<1x128xf32> to vector<2x128xf32>
    %333 = arith.addf %331, %332 : vector<2x128xf32>
    %334 = arith.truncf %268 : vector<2x32xf32> to vector<2x32xbf16>
    %cst_81 = arith.constant dense<0.000000e+00> : vector<2x128xf32>
    %335 = tpu.matmul %334, %78, %cst_81 {dimension_numbers = #tpu.dot_dimension_numbers<[1], [0], [0], [1], [0, 0, 1, 1], [], []>} : vector<2x32xbf16>, vector<32x128xbf16>, vector<2x128xf32> -> vector<2x128xf32>
    %336 = arith.addf %333, %335 : vector<2x128xf32>
    %337 = vector.extract_strided_slice %336 {offsets = [0, 0], sizes = [2, 32], strides = [1, 1]} : vector<2x128xf32> to vector<2x32xf32>
    %338 = arith.negf %337 : vector<2x32xf32>
    %339 = math.exp %338 : vector<2x32xf32>
    %cst_82 = arith.constant 1.000000e+00 : f32
    %340 = vector.broadcast %cst_82 : f32 to vector<2x32xf32>
    %341 = arith.addf %340, %339 : vector<2x32xf32>
    %342 = arith.divf %340, %341 : vector<2x32xf32>
    %343 = vector.extract_strided_slice %336 {offsets = [0, 32], sizes = [2, 32], strides = [1, 1]} : vector<2x128xf32> to vector<2x32xf32>
    %344 = arith.negf %343 : vector<2x32xf32>
    %345 = math.exp %344 : vector<2x32xf32>
    %cst_83 = arith.constant 1.000000e+00 : f32
    %346 = vector.broadcast %cst_83 : f32 to vector<2x32xf32>
    %347 = arith.addf %346, %345 : vector<2x32xf32>
    %348 = arith.divf %346, %347 : vector<2x32xf32>
    %349 = vector.extract_strided_slice %336 {offsets = [0, 64], sizes = [2, 32], strides = [1, 1]} : vector<2x128xf32> to vector<2x32xf32>
    %350 = math.tanh %349 : vector<2x32xf32>
    %351 = vector.extract_strided_slice %336 {offsets = [0, 96], sizes = [2, 32], strides = [1, 1]} : vector<2x128xf32> to vector<2x32xf32>
    %352 = arith.negf %351 : vector<2x32xf32>
    %353 = math.exp %352 : vector<2x32xf32>
    %cst_84 = arith.constant 1.000000e+00 : f32
    %354 = vector.broadcast %cst_84 : f32 to vector<2x32xf32>
    %355 = arith.addf %354, %353 : vector<2x32xf32>
    %356 = arith.divf %354, %355 : vector<2x32xf32>
    %357 = arith.mulf %348, %266 : vector<2x32xf32>
    %358 = arith.mulf %342, %350 : vector<2x32xf32>
    %359 = arith.addf %357, %358 : vector<2x32xf32>
    %360 = math.tanh %359 : vector<2x32xf32>
    %361 = arith.mulf %356, %360 : vector<2x32xf32>
    %362 = vector.extract_strided_slice %72 {offsets = [8, 0], sizes = [2, 128], strides = [1, 1]} : vector<16x128xf32> to vector<2x128xf32>
    %363 = arith.truncf %297 : vector<2x32xf32> to vector<2x32xbf16>
    %cst_85 = arith.constant dense<0.000000e+00> : vector<2x128xf32>
    %364 = tpu.matmul %363, %73, %cst_85 {dimension_numbers = #tpu.dot_dimension_numbers<[1], [0], [0], [1], [0, 0, 1, 1], [], []>} : vector<2x32xbf16>, vector<32x128xbf16>, vector<2x128xf32> -> vector<2x128xf32>
    %365 = arith.addf %362, %364 : vector<2x128xf32>
    %366 = vector.extract_strided_slice %365 {offsets = [0, 0], sizes = [2, 32], strides = [1, 1]} : vector<2x128xf32> to vector<2x32xf32>
    %367 = arith.negf %366 : vector<2x32xf32>
    %368 = math.exp %367 : vector<2x32xf32>
    %cst_86 = arith.constant 1.000000e+00 : f32
    %369 = vector.broadcast %cst_86 : f32 to vector<2x32xf32>
    %370 = arith.addf %369, %368 : vector<2x32xf32>
    %371 = arith.divf %369, %370 : vector<2x32xf32>
    %372 = vector.extract_strided_slice %365 {offsets = [0, 32], sizes = [2, 32], strides = [1, 1]} : vector<2x128xf32> to vector<2x32xf32>
    %373 = arith.negf %372 : vector<2x32xf32>
    %374 = math.exp %373 : vector<2x32xf32>
    %cst_87 = arith.constant 1.000000e+00 : f32
    %375 = vector.broadcast %cst_87 : f32 to vector<2x32xf32>
    %376 = arith.addf %375, %374 : vector<2x32xf32>
    %377 = arith.divf %375, %376 : vector<2x32xf32>
    %378 = vector.extract_strided_slice %365 {offsets = [0, 64], sizes = [2, 32], strides = [1, 1]} : vector<2x128xf32> to vector<2x32xf32>
    %379 = math.tanh %378 : vector<2x32xf32>
    %380 = vector.extract_strided_slice %365 {offsets = [0, 96], sizes = [2, 32], strides = [1, 1]} : vector<2x128xf32> to vector<2x32xf32>
    %381 = arith.negf %380 : vector<2x32xf32>
    %382 = math.exp %381 : vector<2x32xf32>
    %cst_88 = arith.constant 1.000000e+00 : f32
    %383 = vector.broadcast %cst_88 : f32 to vector<2x32xf32>
    %384 = arith.addf %383, %382 : vector<2x32xf32>
    %385 = arith.divf %383, %384 : vector<2x32xf32>
    %386 = arith.mulf %377, %295 : vector<2x32xf32>
    %387 = arith.mulf %371, %379 : vector<2x32xf32>
    %388 = arith.addf %386, %387 : vector<2x32xf32>
    %389 = math.tanh %388 : vector<2x32xf32>
    %390 = arith.mulf %385, %389 : vector<2x32xf32>
    %391 = arith.truncf %297 : vector<2x32xf32> to vector<2x32xbf16>
    %cst_89 = arith.constant dense<0.000000e+00> : vector<2x256xf32>
    %392 = tpu.matmul %391, %74, %cst_89 {dimension_numbers = #tpu.dot_dimension_numbers<[1], [0], [0], [1], [0, 0, 1, 1], [], []>} : vector<2x32xbf16>, vector<32x256xbf16>, vector<2x256xf32> -> vector<2x256xf32>
    %393 = vector.broadcast %76 : vector<1x256xf32> to vector<2x256xf32>
    %394 = arith.addf %392, %393 : vector<2x256xf32>
    %395 = arith.truncf %329 : vector<2x64xf32> to vector<2x64xbf16>
    %cst_90 = arith.constant dense<0.000000e+00> : vector<2x256xf32>
    %396 = tpu.matmul %395, %75, %cst_90 {dimension_numbers = #tpu.dot_dimension_numbers<[1], [0], [0], [1], [0, 0, 1, 1], [], []>} : vector<2x64xbf16>, vector<64x256xbf16>, vector<2x256xf32> -> vector<2x256xf32>
    %397 = arith.addf %394, %396 : vector<2x256xf32>
    %398 = vector.extract_strided_slice %397 {offsets = [0, 0], sizes = [2, 64], strides = [1, 1]} : vector<2x256xf32> to vector<2x64xf32>
    %399 = arith.negf %398 : vector<2x64xf32>
    %400 = math.exp %399 : vector<2x64xf32>
    %cst_91 = arith.constant 1.000000e+00 : f32
    %401 = vector.broadcast %cst_91 : f32 to vector<2x64xf32>
    %402 = arith.addf %401, %400 : vector<2x64xf32>
    %403 = arith.divf %401, %402 : vector<2x64xf32>
    %404 = vector.extract_strided_slice %397 {offsets = [0, 64], sizes = [2, 64], strides = [1, 1]} : vector<2x256xf32> to vector<2x64xf32>
    %405 = arith.negf %404 : vector<2x64xf32>
    %406 = math.exp %405 : vector<2x64xf32>
    %cst_92 = arith.constant 1.000000e+00 : f32
    %407 = vector.broadcast %cst_92 : f32 to vector<2x64xf32>
    %408 = arith.addf %407, %406 : vector<2x64xf32>
    %409 = arith.divf %407, %408 : vector<2x64xf32>
    %410 = vector.extract_strided_slice %397 {offsets = [0, 128], sizes = [2, 64], strides = [1, 1]} : vector<2x256xf32> to vector<2x64xf32>
    %411 = math.tanh %410 : vector<2x64xf32>
    %412 = vector.extract_strided_slice %397 {offsets = [0, 192], sizes = [2, 64], strides = [1, 1]} : vector<2x256xf32> to vector<2x64xf32>
    %413 = arith.negf %412 : vector<2x64xf32>
    %414 = math.exp %413 : vector<2x64xf32>
    %cst_93 = arith.constant 1.000000e+00 : f32
    %415 = vector.broadcast %cst_93 : f32 to vector<2x64xf32>
    %416 = arith.addf %415, %414 : vector<2x64xf32>
    %417 = arith.divf %415, %416 : vector<2x64xf32>
    %418 = arith.mulf %409, %327 : vector<2x64xf32>
    %419 = arith.mulf %403, %411 : vector<2x64xf32>
    %420 = arith.addf %418, %419 : vector<2x64xf32>
    %421 = math.tanh %420 : vector<2x64xf32>
    %422 = arith.mulf %417, %421 : vector<2x64xf32>
    %423 = arith.truncf %329 : vector<2x64xf32> to vector<2x64xbf16>
    %cst_94 = arith.constant dense<0.000000e+00> : vector<2x128xf32>
    %424 = tpu.matmul %423, %77, %cst_94 {dimension_numbers = #tpu.dot_dimension_numbers<[1], [0], [0], [1], [0, 0, 1, 1], [], []>} : vector<2x64xbf16>, vector<64x128xbf16>, vector<2x128xf32> -> vector<2x128xf32>
    %425 = vector.broadcast %79 : vector<1x128xf32> to vector<2x128xf32>
    %426 = arith.addf %424, %425 : vector<2x128xf32>
    %427 = arith.truncf %361 : vector<2x32xf32> to vector<2x32xbf16>
    %cst_95 = arith.constant dense<0.000000e+00> : vector<2x128xf32>
    %428 = tpu.matmul %427, %78, %cst_95 {dimension_numbers = #tpu.dot_dimension_numbers<[1], [0], [0], [1], [0, 0, 1, 1], [], []>} : vector<2x32xbf16>, vector<32x128xbf16>, vector<2x128xf32> -> vector<2x128xf32>
    %429 = arith.addf %426, %428 : vector<2x128xf32>
    %430 = vector.extract_strided_slice %429 {offsets = [0, 0], sizes = [2, 32], strides = [1, 1]} : vector<2x128xf32> to vector<2x32xf32>
    %431 = arith.negf %430 : vector<2x32xf32>
    %432 = math.exp %431 : vector<2x32xf32>
    %cst_96 = arith.constant 1.000000e+00 : f32
    %433 = vector.broadcast %cst_96 : f32 to vector<2x32xf32>
    %434 = arith.addf %433, %432 : vector<2x32xf32>
    %435 = arith.divf %433, %434 : vector<2x32xf32>
    %436 = vector.extract_strided_slice %429 {offsets = [0, 32], sizes = [2, 32], strides = [1, 1]} : vector<2x128xf32> to vector<2x32xf32>
    %437 = arith.negf %436 : vector<2x32xf32>
    %438 = math.exp %437 : vector<2x32xf32>
    %cst_97 = arith.constant 1.000000e+00 : f32
    %439 = vector.broadcast %cst_97 : f32 to vector<2x32xf32>
    %440 = arith.addf %439, %438 : vector<2x32xf32>
    %441 = arith.divf %439, %440 : vector<2x32xf32>
    %442 = vector.extract_strided_slice %429 {offsets = [0, 64], sizes = [2, 32], strides = [1, 1]} : vector<2x128xf32> to vector<2x32xf32>
    %443 = math.tanh %442 : vector<2x32xf32>
    %444 = vector.extract_strided_slice %429 {offsets = [0, 96], sizes = [2, 32], strides = [1, 1]} : vector<2x128xf32> to vector<2x32xf32>
    %445 = arith.negf %444 : vector<2x32xf32>
    %446 = math.exp %445 : vector<2x32xf32>
    %cst_98 = arith.constant 1.000000e+00 : f32
    %447 = vector.broadcast %cst_98 : f32 to vector<2x32xf32>
    %448 = arith.addf %447, %446 : vector<2x32xf32>
    %449 = arith.divf %447, %448 : vector<2x32xf32>
    %450 = arith.mulf %441, %359 : vector<2x32xf32>
    %451 = arith.mulf %435, %443 : vector<2x32xf32>
    %452 = arith.addf %450, %451 : vector<2x32xf32>
    %453 = math.tanh %452 : vector<2x32xf32>
    %454 = arith.mulf %449, %453 : vector<2x32xf32>
    %455 = vector.extract_strided_slice %72 {offsets = [10, 0], sizes = [2, 128], strides = [1, 1]} : vector<16x128xf32> to vector<2x128xf32>
    %456 = arith.truncf %390 : vector<2x32xf32> to vector<2x32xbf16>
    %cst_99 = arith.constant dense<0.000000e+00> : vector<2x128xf32>
    %457 = tpu.matmul %456, %73, %cst_99 {dimension_numbers = #tpu.dot_dimension_numbers<[1], [0], [0], [1], [0, 0, 1, 1], [], []>} : vector<2x32xbf16>, vector<32x128xbf16>, vector<2x128xf32> -> vector<2x128xf32>
    %458 = arith.addf %455, %457 : vector<2x128xf32>
    %459 = vector.extract_strided_slice %458 {offsets = [0, 0], sizes = [2, 32], strides = [1, 1]} : vector<2x128xf32> to vector<2x32xf32>
    %460 = arith.negf %459 : vector<2x32xf32>
    %461 = math.exp %460 : vector<2x32xf32>
    %cst_100 = arith.constant 1.000000e+00 : f32
    %462 = vector.broadcast %cst_100 : f32 to vector<2x32xf32>
    %463 = arith.addf %462, %461 : vector<2x32xf32>
    %464 = arith.divf %462, %463 : vector<2x32xf32>
    %465 = vector.extract_strided_slice %458 {offsets = [0, 32], sizes = [2, 32], strides = [1, 1]} : vector<2x128xf32> to vector<2x32xf32>
    %466 = arith.negf %465 : vector<2x32xf32>
    %467 = math.exp %466 : vector<2x32xf32>
    %cst_101 = arith.constant 1.000000e+00 : f32
    %468 = vector.broadcast %cst_101 : f32 to vector<2x32xf32>
    %469 = arith.addf %468, %467 : vector<2x32xf32>
    %470 = arith.divf %468, %469 : vector<2x32xf32>
    %471 = vector.extract_strided_slice %458 {offsets = [0, 64], sizes = [2, 32], strides = [1, 1]} : vector<2x128xf32> to vector<2x32xf32>
    %472 = math.tanh %471 : vector<2x32xf32>
    %473 = vector.extract_strided_slice %458 {offsets = [0, 96], sizes = [2, 32], strides = [1, 1]} : vector<2x128xf32> to vector<2x32xf32>
    %474 = arith.negf %473 : vector<2x32xf32>
    %475 = math.exp %474 : vector<2x32xf32>
    %cst_102 = arith.constant 1.000000e+00 : f32
    %476 = vector.broadcast %cst_102 : f32 to vector<2x32xf32>
    %477 = arith.addf %476, %475 : vector<2x32xf32>
    %478 = arith.divf %476, %477 : vector<2x32xf32>
    %479 = arith.mulf %470, %388 : vector<2x32xf32>
    %480 = arith.mulf %464, %472 : vector<2x32xf32>
    %481 = arith.addf %479, %480 : vector<2x32xf32>
    %482 = math.tanh %481 : vector<2x32xf32>
    %483 = arith.mulf %478, %482 : vector<2x32xf32>
    %484 = arith.truncf %390 : vector<2x32xf32> to vector<2x32xbf16>
    %cst_103 = arith.constant dense<0.000000e+00> : vector<2x256xf32>
    %485 = tpu.matmul %484, %74, %cst_103 {dimension_numbers = #tpu.dot_dimension_numbers<[1], [0], [0], [1], [0, 0, 1, 1], [], []>} : vector<2x32xbf16>, vector<32x256xbf16>, vector<2x256xf32> -> vector<2x256xf32>
    %486 = vector.broadcast %76 : vector<1x256xf32> to vector<2x256xf32>
    %487 = arith.addf %485, %486 : vector<2x256xf32>
    %488 = arith.truncf %422 : vector<2x64xf32> to vector<2x64xbf16>
    %cst_104 = arith.constant dense<0.000000e+00> : vector<2x256xf32>
    %489 = tpu.matmul %488, %75, %cst_104 {dimension_numbers = #tpu.dot_dimension_numbers<[1], [0], [0], [1], [0, 0, 1, 1], [], []>} : vector<2x64xbf16>, vector<64x256xbf16>, vector<2x256xf32> -> vector<2x256xf32>
    %490 = arith.addf %487, %489 : vector<2x256xf32>
    %491 = vector.extract_strided_slice %490 {offsets = [0, 0], sizes = [2, 64], strides = [1, 1]} : vector<2x256xf32> to vector<2x64xf32>
    %492 = arith.negf %491 : vector<2x64xf32>
    %493 = math.exp %492 : vector<2x64xf32>
    %cst_105 = arith.constant 1.000000e+00 : f32
    %494 = vector.broadcast %cst_105 : f32 to vector<2x64xf32>
    %495 = arith.addf %494, %493 : vector<2x64xf32>
    %496 = arith.divf %494, %495 : vector<2x64xf32>
    %497 = vector.extract_strided_slice %490 {offsets = [0, 64], sizes = [2, 64], strides = [1, 1]} : vector<2x256xf32> to vector<2x64xf32>
    %498 = arith.negf %497 : vector<2x64xf32>
    %499 = math.exp %498 : vector<2x64xf32>
    %cst_106 = arith.constant 1.000000e+00 : f32
    %500 = vector.broadcast %cst_106 : f32 to vector<2x64xf32>
    %501 = arith.addf %500, %499 : vector<2x64xf32>
    %502 = arith.divf %500, %501 : vector<2x64xf32>
    %503 = vector.extract_strided_slice %490 {offsets = [0, 128], sizes = [2, 64], strides = [1, 1]} : vector<2x256xf32> to vector<2x64xf32>
    %504 = math.tanh %503 : vector<2x64xf32>
    %505 = vector.extract_strided_slice %490 {offsets = [0, 192], sizes = [2, 64], strides = [1, 1]} : vector<2x256xf32> to vector<2x64xf32>
    %506 = arith.negf %505 : vector<2x64xf32>
    %507 = math.exp %506 : vector<2x64xf32>
    %cst_107 = arith.constant 1.000000e+00 : f32
    %508 = vector.broadcast %cst_107 : f32 to vector<2x64xf32>
    %509 = arith.addf %508, %507 : vector<2x64xf32>
    %510 = arith.divf %508, %509 : vector<2x64xf32>
    %511 = arith.mulf %502, %420 : vector<2x64xf32>
    %512 = arith.mulf %496, %504 : vector<2x64xf32>
    %513 = arith.addf %511, %512 : vector<2x64xf32>
    %514 = math.tanh %513 : vector<2x64xf32>
    %515 = arith.mulf %510, %514 : vector<2x64xf32>
    %516 = arith.truncf %422 : vector<2x64xf32> to vector<2x64xbf16>
    %cst_108 = arith.constant dense<0.000000e+00> : vector<2x128xf32>
    %517 = tpu.matmul %516, %77, %cst_108 {dimension_numbers = #tpu.dot_dimension_numbers<[1], [0], [0], [1], [0, 0, 1, 1], [], []>} : vector<2x64xbf16>, vector<64x128xbf16>, vector<2x128xf32> -> vector<2x128xf32>
    %518 = vector.broadcast %79 : vector<1x128xf32> to vector<2x128xf32>
    %519 = arith.addf %517, %518 : vector<2x128xf32>
    %520 = arith.truncf %454 : vector<2x32xf32> to vector<2x32xbf16>
    %cst_109 = arith.constant dense<0.000000e+00> : vector<2x128xf32>
    %521 = tpu.matmul %520, %78, %cst_109 {dimension_numbers = #tpu.dot_dimension_numbers<[1], [0], [0], [1], [0, 0, 1, 1], [], []>} : vector<2x32xbf16>, vector<32x128xbf16>, vector<2x128xf32> -> vector<2x128xf32>
    %522 = arith.addf %519, %521 : vector<2x128xf32>
    %523 = vector.extract_strided_slice %522 {offsets = [0, 0], sizes = [2, 32], strides = [1, 1]} : vector<2x128xf32> to vector<2x32xf32>
    %524 = arith.negf %523 : vector<2x32xf32>
    %525 = math.exp %524 : vector<2x32xf32>
    %cst_110 = arith.constant 1.000000e+00 : f32
    %526 = vector.broadcast %cst_110 : f32 to vector<2x32xf32>
    %527 = arith.addf %526, %525 : vector<2x32xf32>
    %528 = arith.divf %526, %527 : vector<2x32xf32>
    %529 = vector.extract_strided_slice %522 {offsets = [0, 32], sizes = [2, 32], strides = [1, 1]} : vector<2x128xf32> to vector<2x32xf32>
    %530 = arith.negf %529 : vector<2x32xf32>
    %531 = math.exp %530 : vector<2x32xf32>
    %cst_111 = arith.constant 1.000000e+00 : f32
    %532 = vector.broadcast %cst_111 : f32 to vector<2x32xf32>
    %533 = arith.addf %532, %531 : vector<2x32xf32>
    %534 = arith.divf %532, %533 : vector<2x32xf32>
    %535 = vector.extract_strided_slice %522 {offsets = [0, 64], sizes = [2, 32], strides = [1, 1]} : vector<2x128xf32> to vector<2x32xf32>
    %536 = math.tanh %535 : vector<2x32xf32>
    %537 = vector.extract_strided_slice %522 {offsets = [0, 96], sizes = [2, 32], strides = [1, 1]} : vector<2x128xf32> to vector<2x32xf32>
    %538 = arith.negf %537 : vector<2x32xf32>
    %539 = math.exp %538 : vector<2x32xf32>
    %cst_112 = arith.constant 1.000000e+00 : f32
    %540 = vector.broadcast %cst_112 : f32 to vector<2x32xf32>
    %541 = arith.addf %540, %539 : vector<2x32xf32>
    %542 = arith.divf %540, %541 : vector<2x32xf32>
    %543 = arith.mulf %534, %452 : vector<2x32xf32>
    %544 = arith.mulf %528, %536 : vector<2x32xf32>
    %545 = arith.addf %543, %544 : vector<2x32xf32>
    %546 = math.tanh %545 : vector<2x32xf32>
    %547 = arith.mulf %542, %546 : vector<2x32xf32>
    %548 = vector.extract_strided_slice %72 {offsets = [12, 0], sizes = [2, 128], strides = [1, 1]} : vector<16x128xf32> to vector<2x128xf32>
    %549 = arith.truncf %483 : vector<2x32xf32> to vector<2x32xbf16>
    %cst_113 = arith.constant dense<0.000000e+00> : vector<2x128xf32>
    %550 = tpu.matmul %549, %73, %cst_113 {dimension_numbers = #tpu.dot_dimension_numbers<[1], [0], [0], [1], [0, 0, 1, 1], [], []>} : vector<2x32xbf16>, vector<32x128xbf16>, vector<2x128xf32> -> vector<2x128xf32>
    %551 = arith.addf %548, %550 : vector<2x128xf32>
    %552 = vector.extract_strided_slice %551 {offsets = [0, 0], sizes = [2, 32], strides = [1, 1]} : vector<2x128xf32> to vector<2x32xf32>
    %553 = arith.negf %552 : vector<2x32xf32>
    %554 = math.exp %553 : vector<2x32xf32>
    %cst_114 = arith.constant 1.000000e+00 : f32
    %555 = vector.broadcast %cst_114 : f32 to vector<2x32xf32>
    %556 = arith.addf %555, %554 : vector<2x32xf32>
    %557 = arith.divf %555, %556 : vector<2x32xf32>
    %558 = vector.extract_strided_slice %551 {offsets = [0, 32], sizes = [2, 32], strides = [1, 1]} : vector<2x128xf32> to vector<2x32xf32>
    %559 = arith.negf %558 : vector<2x32xf32>
    %560 = math.exp %559 : vector<2x32xf32>
    %cst_115 = arith.constant 1.000000e+00 : f32
    %561 = vector.broadcast %cst_115 : f32 to vector<2x32xf32>
    %562 = arith.addf %561, %560 : vector<2x32xf32>
    %563 = arith.divf %561, %562 : vector<2x32xf32>
    %564 = vector.extract_strided_slice %551 {offsets = [0, 64], sizes = [2, 32], strides = [1, 1]} : vector<2x128xf32> to vector<2x32xf32>
    %565 = math.tanh %564 : vector<2x32xf32>
    %566 = vector.extract_strided_slice %551 {offsets = [0, 96], sizes = [2, 32], strides = [1, 1]} : vector<2x128xf32> to vector<2x32xf32>
    %567 = arith.negf %566 : vector<2x32xf32>
    %568 = math.exp %567 : vector<2x32xf32>
    %cst_116 = arith.constant 1.000000e+00 : f32
    %569 = vector.broadcast %cst_116 : f32 to vector<2x32xf32>
    %570 = arith.addf %569, %568 : vector<2x32xf32>
    %571 = arith.divf %569, %570 : vector<2x32xf32>
    %572 = arith.mulf %563, %481 : vector<2x32xf32>
    %573 = arith.mulf %557, %565 : vector<2x32xf32>
    %574 = arith.addf %572, %573 : vector<2x32xf32>
    %575 = math.tanh %574 : vector<2x32xf32>
    %576 = arith.mulf %571, %575 : vector<2x32xf32>
    %577 = arith.truncf %483 : vector<2x32xf32> to vector<2x32xbf16>
    %cst_117 = arith.constant dense<0.000000e+00> : vector<2x256xf32>
    %578 = tpu.matmul %577, %74, %cst_117 {dimension_numbers = #tpu.dot_dimension_numbers<[1], [0], [0], [1], [0, 0, 1, 1], [], []>} : vector<2x32xbf16>, vector<32x256xbf16>, vector<2x256xf32> -> vector<2x256xf32>
    %579 = vector.broadcast %76 : vector<1x256xf32> to vector<2x256xf32>
    %580 = arith.addf %578, %579 : vector<2x256xf32>
    %581 = arith.truncf %515 : vector<2x64xf32> to vector<2x64xbf16>
    %cst_118 = arith.constant dense<0.000000e+00> : vector<2x256xf32>
    %582 = tpu.matmul %581, %75, %cst_118 {dimension_numbers = #tpu.dot_dimension_numbers<[1], [0], [0], [1], [0, 0, 1, 1], [], []>} : vector<2x64xbf16>, vector<64x256xbf16>, vector<2x256xf32> -> vector<2x256xf32>
    %583 = arith.addf %580, %582 : vector<2x256xf32>
    %584 = vector.extract_strided_slice %583 {offsets = [0, 0], sizes = [2, 64], strides = [1, 1]} : vector<2x256xf32> to vector<2x64xf32>
    %585 = arith.negf %584 : vector<2x64xf32>
    %586 = math.exp %585 : vector<2x64xf32>
    %cst_119 = arith.constant 1.000000e+00 : f32
    %587 = vector.broadcast %cst_119 : f32 to vector<2x64xf32>
    %588 = arith.addf %587, %586 : vector<2x64xf32>
    %589 = arith.divf %587, %588 : vector<2x64xf32>
    %590 = vector.extract_strided_slice %583 {offsets = [0, 64], sizes = [2, 64], strides = [1, 1]} : vector<2x256xf32> to vector<2x64xf32>
    %591 = arith.negf %590 : vector<2x64xf32>
    %592 = math.exp %591 : vector<2x64xf32>
    %cst_120 = arith.constant 1.000000e+00 : f32
    %593 = vector.broadcast %cst_120 : f32 to vector<2x64xf32>
    %594 = arith.addf %593, %592 : vector<2x64xf32>
    %595 = arith.divf %593, %594 : vector<2x64xf32>
    %596 = vector.extract_strided_slice %583 {offsets = [0, 128], sizes = [2, 64], strides = [1, 1]} : vector<2x256xf32> to vector<2x64xf32>
    %597 = math.tanh %596 : vector<2x64xf32>
    %598 = vector.extract_strided_slice %583 {offsets = [0, 192], sizes = [2, 64], strides = [1, 1]} : vector<2x256xf32> to vector<2x64xf32>
    %599 = arith.negf %598 : vector<2x64xf32>
    %600 = math.exp %599 : vector<2x64xf32>
    %cst_121 = arith.constant 1.000000e+00 : f32
    %601 = vector.broadcast %cst_121 : f32 to vector<2x64xf32>
    %602 = arith.addf %601, %600 : vector<2x64xf32>
    %603 = arith.divf %601, %602 : vector<2x64xf32>
    %604 = arith.mulf %595, %513 : vector<2x64xf32>
    %605 = arith.mulf %589, %597 : vector<2x64xf32>
    %606 = arith.addf %604, %605 : vector<2x64xf32>
    %607 = math.tanh %606 : vector<2x64xf32>
    %608 = arith.mulf %603, %607 : vector<2x64xf32>
    %609 = arith.truncf %515 : vector<2x64xf32> to vector<2x64xbf16>
    %cst_122 = arith.constant dense<0.000000e+00> : vector<2x128xf32>
    %610 = tpu.matmul %609, %77, %cst_122 {dimension_numbers = #tpu.dot_dimension_numbers<[1], [0], [0], [1], [0, 0, 1, 1], [], []>} : vector<2x64xbf16>, vector<64x128xbf16>, vector<2x128xf32> -> vector<2x128xf32>
    %611 = vector.broadcast %79 : vector<1x128xf32> to vector<2x128xf32>
    %612 = arith.addf %610, %611 : vector<2x128xf32>
    %613 = arith.truncf %547 : vector<2x32xf32> to vector<2x32xbf16>
    %cst_123 = arith.constant dense<0.000000e+00> : vector<2x128xf32>
    %614 = tpu.matmul %613, %78, %cst_123 {dimension_numbers = #tpu.dot_dimension_numbers<[1], [0], [0], [1], [0, 0, 1, 1], [], []>} : vector<2x32xbf16>, vector<32x128xbf16>, vector<2x128xf32> -> vector<2x128xf32>
    %615 = arith.addf %612, %614 : vector<2x128xf32>
    %616 = vector.extract_strided_slice %615 {offsets = [0, 0], sizes = [2, 32], strides = [1, 1]} : vector<2x128xf32> to vector<2x32xf32>
    %617 = arith.negf %616 : vector<2x32xf32>
    %618 = math.exp %617 : vector<2x32xf32>
    %cst_124 = arith.constant 1.000000e+00 : f32
    %619 = vector.broadcast %cst_124 : f32 to vector<2x32xf32>
    %620 = arith.addf %619, %618 : vector<2x32xf32>
    %621 = arith.divf %619, %620 : vector<2x32xf32>
    %622 = vector.extract_strided_slice %615 {offsets = [0, 32], sizes = [2, 32], strides = [1, 1]} : vector<2x128xf32> to vector<2x32xf32>
    %623 = arith.negf %622 : vector<2x32xf32>
    %624 = math.exp %623 : vector<2x32xf32>
    %cst_125 = arith.constant 1.000000e+00 : f32
    %625 = vector.broadcast %cst_125 : f32 to vector<2x32xf32>
    %626 = arith.addf %625, %624 : vector<2x32xf32>
    %627 = arith.divf %625, %626 : vector<2x32xf32>
    %628 = vector.extract_strided_slice %615 {offsets = [0, 64], sizes = [2, 32], strides = [1, 1]} : vector<2x128xf32> to vector<2x32xf32>
    %629 = math.tanh %628 : vector<2x32xf32>
    %630 = vector.extract_strided_slice %615 {offsets = [0, 96], sizes = [2, 32], strides = [1, 1]} : vector<2x128xf32> to vector<2x32xf32>
    %631 = arith.negf %630 : vector<2x32xf32>
    %632 = math.exp %631 : vector<2x32xf32>
    %cst_126 = arith.constant 1.000000e+00 : f32
    %633 = vector.broadcast %cst_126 : f32 to vector<2x32xf32>
    %634 = arith.addf %633, %632 : vector<2x32xf32>
    %635 = arith.divf %633, %634 : vector<2x32xf32>
    %636 = arith.mulf %627, %545 : vector<2x32xf32>
    %637 = arith.mulf %621, %629 : vector<2x32xf32>
    %638 = arith.addf %636, %637 : vector<2x32xf32>
    %639 = math.tanh %638 : vector<2x32xf32>
    %640 = arith.mulf %635, %639 : vector<2x32xf32>
    %641 = vector.extract_strided_slice %72 {offsets = [14, 0], sizes = [2, 128], strides = [1, 1]} : vector<16x128xf32> to vector<2x128xf32>
    %642 = arith.truncf %576 : vector<2x32xf32> to vector<2x32xbf16>
    %cst_127 = arith.constant dense<0.000000e+00> : vector<2x128xf32>
    %643 = tpu.matmul %642, %73, %cst_127 {dimension_numbers = #tpu.dot_dimension_numbers<[1], [0], [0], [1], [0, 0, 1, 1], [], []>} : vector<2x32xbf16>, vector<32x128xbf16>, vector<2x128xf32> -> vector<2x128xf32>
    %644 = arith.addf %641, %643 : vector<2x128xf32>
    %645 = vector.extract_strided_slice %644 {offsets = [0, 0], sizes = [2, 32], strides = [1, 1]} : vector<2x128xf32> to vector<2x32xf32>
    %646 = arith.negf %645 : vector<2x32xf32>
    %647 = math.exp %646 : vector<2x32xf32>
    %cst_128 = arith.constant 1.000000e+00 : f32
    %648 = vector.broadcast %cst_128 : f32 to vector<2x32xf32>
    %649 = arith.addf %648, %647 : vector<2x32xf32>
    %650 = arith.divf %648, %649 : vector<2x32xf32>
    %651 = vector.extract_strided_slice %644 {offsets = [0, 32], sizes = [2, 32], strides = [1, 1]} : vector<2x128xf32> to vector<2x32xf32>
    %652 = arith.negf %651 : vector<2x32xf32>
    %653 = math.exp %652 : vector<2x32xf32>
    %cst_129 = arith.constant 1.000000e+00 : f32
    %654 = vector.broadcast %cst_129 : f32 to vector<2x32xf32>
    %655 = arith.addf %654, %653 : vector<2x32xf32>
    %656 = arith.divf %654, %655 : vector<2x32xf32>
    %657 = vector.extract_strided_slice %644 {offsets = [0, 64], sizes = [2, 32], strides = [1, 1]} : vector<2x128xf32> to vector<2x32xf32>
    %658 = math.tanh %657 : vector<2x32xf32>
    %659 = vector.extract_strided_slice %644 {offsets = [0, 96], sizes = [2, 32], strides = [1, 1]} : vector<2x128xf32> to vector<2x32xf32>
    %660 = arith.negf %659 : vector<2x32xf32>
    %661 = math.exp %660 : vector<2x32xf32>
    %cst_130 = arith.constant 1.000000e+00 : f32
    %662 = vector.broadcast %cst_130 : f32 to vector<2x32xf32>
    %663 = arith.addf %662, %661 : vector<2x32xf32>
    %664 = arith.divf %662, %663 : vector<2x32xf32>
    %665 = arith.mulf %656, %574 : vector<2x32xf32>
    %666 = arith.mulf %650, %658 : vector<2x32xf32>
    %667 = arith.addf %665, %666 : vector<2x32xf32>
    %668 = math.tanh %667 : vector<2x32xf32>
    %669 = arith.mulf %664, %668 : vector<2x32xf32>
    %670 = arith.truncf %576 : vector<2x32xf32> to vector<2x32xbf16>
    %cst_131 = arith.constant dense<0.000000e+00> : vector<2x256xf32>
    %671 = tpu.matmul %670, %74, %cst_131 {dimension_numbers = #tpu.dot_dimension_numbers<[1], [0], [0], [1], [0, 0, 1, 1], [], []>} : vector<2x32xbf16>, vector<32x256xbf16>, vector<2x256xf32> -> vector<2x256xf32>
    %672 = vector.broadcast %76 : vector<1x256xf32> to vector<2x256xf32>
    %673 = arith.addf %671, %672 : vector<2x256xf32>
    %674 = arith.truncf %608 : vector<2x64xf32> to vector<2x64xbf16>
    %cst_132 = arith.constant dense<0.000000e+00> : vector<2x256xf32>
    %675 = tpu.matmul %674, %75, %cst_132 {dimension_numbers = #tpu.dot_dimension_numbers<[1], [0], [0], [1], [0, 0, 1, 1], [], []>} : vector<2x64xbf16>, vector<64x256xbf16>, vector<2x256xf32> -> vector<2x256xf32>
    %676 = arith.addf %673, %675 : vector<2x256xf32>
    %677 = vector.extract_strided_slice %676 {offsets = [0, 0], sizes = [2, 64], strides = [1, 1]} : vector<2x256xf32> to vector<2x64xf32>
    %678 = arith.negf %677 : vector<2x64xf32>
    %679 = math.exp %678 : vector<2x64xf32>
    %cst_133 = arith.constant 1.000000e+00 : f32
    %680 = vector.broadcast %cst_133 : f32 to vector<2x64xf32>
    %681 = arith.addf %680, %679 : vector<2x64xf32>
    %682 = arith.divf %680, %681 : vector<2x64xf32>
    %683 = vector.extract_strided_slice %676 {offsets = [0, 64], sizes = [2, 64], strides = [1, 1]} : vector<2x256xf32> to vector<2x64xf32>
    %684 = arith.negf %683 : vector<2x64xf32>
    %685 = math.exp %684 : vector<2x64xf32>
    %cst_134 = arith.constant 1.000000e+00 : f32
    %686 = vector.broadcast %cst_134 : f32 to vector<2x64xf32>
    %687 = arith.addf %686, %685 : vector<2x64xf32>
    %688 = arith.divf %686, %687 : vector<2x64xf32>
    %689 = vector.extract_strided_slice %676 {offsets = [0, 128], sizes = [2, 64], strides = [1, 1]} : vector<2x256xf32> to vector<2x64xf32>
    %690 = math.tanh %689 : vector<2x64xf32>
    %691 = vector.extract_strided_slice %676 {offsets = [0, 192], sizes = [2, 64], strides = [1, 1]} : vector<2x256xf32> to vector<2x64xf32>
    %692 = arith.negf %691 : vector<2x64xf32>
    %693 = math.exp %692 : vector<2x64xf32>
    %cst_135 = arith.constant 1.000000e+00 : f32
    %694 = vector.broadcast %cst_135 : f32 to vector<2x64xf32>
    %695 = arith.addf %694, %693 : vector<2x64xf32>
    %696 = arith.divf %694, %695 : vector<2x64xf32>
    %697 = arith.mulf %688, %606 : vector<2x64xf32>
    %698 = arith.mulf %682, %690 : vector<2x64xf32>
    %699 = arith.addf %697, %698 : vector<2x64xf32>
    %700 = math.tanh %699 : vector<2x64xf32>
    %701 = arith.mulf %696, %700 : vector<2x64xf32>
    %702 = arith.truncf %608 : vector<2x64xf32> to vector<2x64xbf16>
    %cst_136 = arith.constant dense<0.000000e+00> : vector<2x128xf32>
    %703 = tpu.matmul %702, %77, %cst_136 {dimension_numbers = #tpu.dot_dimension_numbers<[1], [0], [0], [1], [0, 0, 1, 1], [], []>} : vector<2x64xbf16>, vector<64x128xbf16>, vector<2x128xf32> -> vector<2x128xf32>
    %704 = vector.broadcast %79 : vector<1x128xf32> to vector<2x128xf32>
    %705 = arith.addf %703, %704 : vector<2x128xf32>
    %706 = arith.truncf %640 : vector<2x32xf32> to vector<2x32xbf16>
    %cst_137 = arith.constant dense<0.000000e+00> : vector<2x128xf32>
    %707 = tpu.matmul %706, %78, %cst_137 {dimension_numbers = #tpu.dot_dimension_numbers<[1], [0], [0], [1], [0, 0, 1, 1], [], []>} : vector<2x32xbf16>, vector<32x128xbf16>, vector<2x128xf32> -> vector<2x128xf32>
    %708 = arith.addf %705, %707 : vector<2x128xf32>
    %709 = vector.extract_strided_slice %708 {offsets = [0, 0], sizes = [2, 32], strides = [1, 1]} : vector<2x128xf32> to vector<2x32xf32>
    %710 = arith.negf %709 : vector<2x32xf32>
    %711 = math.exp %710 : vector<2x32xf32>
    %cst_138 = arith.constant 1.000000e+00 : f32
    %712 = vector.broadcast %cst_138 : f32 to vector<2x32xf32>
    %713 = arith.addf %712, %711 : vector<2x32xf32>
    %714 = arith.divf %712, %713 : vector<2x32xf32>
    %715 = vector.extract_strided_slice %708 {offsets = [0, 32], sizes = [2, 32], strides = [1, 1]} : vector<2x128xf32> to vector<2x32xf32>
    %716 = arith.negf %715 : vector<2x32xf32>
    %717 = math.exp %716 : vector<2x32xf32>
    %cst_139 = arith.constant 1.000000e+00 : f32
    %718 = vector.broadcast %cst_139 : f32 to vector<2x32xf32>
    %719 = arith.addf %718, %717 : vector<2x32xf32>
    %720 = arith.divf %718, %719 : vector<2x32xf32>
    %721 = vector.extract_strided_slice %708 {offsets = [0, 64], sizes = [2, 32], strides = [1, 1]} : vector<2x128xf32> to vector<2x32xf32>
    %722 = math.tanh %721 : vector<2x32xf32>
    %723 = vector.extract_strided_slice %708 {offsets = [0, 96], sizes = [2, 32], strides = [1, 1]} : vector<2x128xf32> to vector<2x32xf32>
    %724 = arith.negf %723 : vector<2x32xf32>
    %725 = math.exp %724 : vector<2x32xf32>
    %cst_140 = arith.constant 1.000000e+00 : f32
    %726 = vector.broadcast %cst_140 : f32 to vector<2x32xf32>
    %727 = arith.addf %726, %725 : vector<2x32xf32>
    %728 = arith.divf %726, %727 : vector<2x32xf32>
    %729 = arith.mulf %720, %638 : vector<2x32xf32>
    %730 = arith.mulf %714, %722 : vector<2x32xf32>
    %731 = arith.addf %729, %730 : vector<2x32xf32>
    %732 = math.tanh %731 : vector<2x32xf32>
    %733 = arith.mulf %728, %732 : vector<2x32xf32>
    %734 = arith.truncf %669 : vector<2x32xf32> to vector<2x32xbf16>
    %cst_141 = arith.constant dense<0.000000e+00> : vector<2x256xf32>
    %735 = tpu.matmul %734, %74, %cst_141 {dimension_numbers = #tpu.dot_dimension_numbers<[1], [0], [0], [1], [0, 0, 1, 1], [], []>} : vector<2x32xbf16>, vector<32x256xbf16>, vector<2x256xf32> -> vector<2x256xf32>
    %736 = vector.broadcast %76 : vector<1x256xf32> to vector<2x256xf32>
    %737 = arith.addf %735, %736 : vector<2x256xf32>
    %738 = arith.truncf %701 : vector<2x64xf32> to vector<2x64xbf16>
    %cst_142 = arith.constant dense<0.000000e+00> : vector<2x256xf32>
    %739 = tpu.matmul %738, %75, %cst_142 {dimension_numbers = #tpu.dot_dimension_numbers<[1], [0], [0], [1], [0, 0, 1, 1], [], []>} : vector<2x64xbf16>, vector<64x256xbf16>, vector<2x256xf32> -> vector<2x256xf32>
    %740 = arith.addf %737, %739 : vector<2x256xf32>
    %741 = vector.extract_strided_slice %740 {offsets = [0, 0], sizes = [2, 64], strides = [1, 1]} : vector<2x256xf32> to vector<2x64xf32>
    %742 = arith.negf %741 : vector<2x64xf32>
    %743 = math.exp %742 : vector<2x64xf32>
    %cst_143 = arith.constant 1.000000e+00 : f32
    %744 = vector.broadcast %cst_143 : f32 to vector<2x64xf32>
    %745 = arith.addf %744, %743 : vector<2x64xf32>
    %746 = arith.divf %744, %745 : vector<2x64xf32>
    %747 = vector.extract_strided_slice %740 {offsets = [0, 64], sizes = [2, 64], strides = [1, 1]} : vector<2x256xf32> to vector<2x64xf32>
    %748 = arith.negf %747 : vector<2x64xf32>
    %749 = math.exp %748 : vector<2x64xf32>
    %cst_144 = arith.constant 1.000000e+00 : f32
    %750 = vector.broadcast %cst_144 : f32 to vector<2x64xf32>
    %751 = arith.addf %750, %749 : vector<2x64xf32>
    %752 = arith.divf %750, %751 : vector<2x64xf32>
    %753 = vector.extract_strided_slice %740 {offsets = [0, 128], sizes = [2, 64], strides = [1, 1]} : vector<2x256xf32> to vector<2x64xf32>
    %754 = math.tanh %753 : vector<2x64xf32>
    %755 = vector.extract_strided_slice %740 {offsets = [0, 192], sizes = [2, 64], strides = [1, 1]} : vector<2x256xf32> to vector<2x64xf32>
    %756 = arith.negf %755 : vector<2x64xf32>
    %757 = math.exp %756 : vector<2x64xf32>
    %cst_145 = arith.constant 1.000000e+00 : f32
    %758 = vector.broadcast %cst_145 : f32 to vector<2x64xf32>
    %759 = arith.addf %758, %757 : vector<2x64xf32>
    %760 = arith.divf %758, %759 : vector<2x64xf32>
    %761 = arith.mulf %752, %699 : vector<2x64xf32>
    %762 = arith.mulf %746, %754 : vector<2x64xf32>
    %763 = arith.addf %761, %762 : vector<2x64xf32>
    %764 = math.tanh %763 : vector<2x64xf32>
    %765 = arith.mulf %760, %764 : vector<2x64xf32>
    %766 = arith.truncf %701 : vector<2x64xf32> to vector<2x64xbf16>
    %cst_146 = arith.constant dense<0.000000e+00> : vector<2x128xf32>
    %767 = tpu.matmul %766, %77, %cst_146 {dimension_numbers = #tpu.dot_dimension_numbers<[1], [0], [0], [1], [0, 0, 1, 1], [], []>} : vector<2x64xbf16>, vector<64x128xbf16>, vector<2x128xf32> -> vector<2x128xf32>
    %768 = vector.broadcast %79 : vector<1x128xf32> to vector<2x128xf32>
    %769 = arith.addf %767, %768 : vector<2x128xf32>
    %770 = arith.truncf %733 : vector<2x32xf32> to vector<2x32xbf16>
    %cst_147 = arith.constant dense<0.000000e+00> : vector<2x128xf32>
    %771 = tpu.matmul %770, %78, %cst_147 {dimension_numbers = #tpu.dot_dimension_numbers<[1], [0], [0], [1], [0, 0, 1, 1], [], []>} : vector<2x32xbf16>, vector<32x128xbf16>, vector<2x128xf32> -> vector<2x128xf32>
    %772 = arith.addf %769, %771 : vector<2x128xf32>
    %773 = vector.extract_strided_slice %772 {offsets = [0, 0], sizes = [2, 32], strides = [1, 1]} : vector<2x128xf32> to vector<2x32xf32>
    %774 = arith.negf %773 : vector<2x32xf32>
    %775 = math.exp %774 : vector<2x32xf32>
    %cst_148 = arith.constant 1.000000e+00 : f32
    %776 = vector.broadcast %cst_148 : f32 to vector<2x32xf32>
    %777 = arith.addf %776, %775 : vector<2x32xf32>
    %778 = arith.divf %776, %777 : vector<2x32xf32>
    %779 = vector.extract_strided_slice %772 {offsets = [0, 32], sizes = [2, 32], strides = [1, 1]} : vector<2x128xf32> to vector<2x32xf32>
    %780 = arith.negf %779 : vector<2x32xf32>
    %781 = math.exp %780 : vector<2x32xf32>
    %cst_149 = arith.constant 1.000000e+00 : f32
    %782 = vector.broadcast %cst_149 : f32 to vector<2x32xf32>
    %783 = arith.addf %782, %781 : vector<2x32xf32>
    %784 = arith.divf %782, %783 : vector<2x32xf32>
    %785 = vector.extract_strided_slice %772 {offsets = [0, 64], sizes = [2, 32], strides = [1, 1]} : vector<2x128xf32> to vector<2x32xf32>
    %786 = math.tanh %785 : vector<2x32xf32>
    %787 = vector.extract_strided_slice %772 {offsets = [0, 96], sizes = [2, 32], strides = [1, 1]} : vector<2x128xf32> to vector<2x32xf32>
    %788 = arith.negf %787 : vector<2x32xf32>
    %789 = math.exp %788 : vector<2x32xf32>
    %cst_150 = arith.constant 1.000000e+00 : f32
    %790 = vector.broadcast %cst_150 : f32 to vector<2x32xf32>
    %791 = arith.addf %790, %789 : vector<2x32xf32>
    %792 = arith.divf %790, %791 : vector<2x32xf32>
    %793 = arith.mulf %784, %731 : vector<2x32xf32>
    %794 = arith.mulf %778, %786 : vector<2x32xf32>
    %795 = arith.addf %793, %794 : vector<2x32xf32>
    %796 = math.tanh %795 : vector<2x32xf32>
    %797 = arith.mulf %792, %796 : vector<2x32xf32>
    %798 = arith.truncf %765 : vector<2x64xf32> to vector<2x64xbf16>
    %cst_151 = arith.constant dense<0.000000e+00> : vector<2x128xf32>
    %799 = tpu.matmul %798, %77, %cst_151 {dimension_numbers = #tpu.dot_dimension_numbers<[1], [0], [0], [1], [0, 0, 1, 1], [], []>} : vector<2x64xbf16>, vector<64x128xbf16>, vector<2x128xf32> -> vector<2x128xf32>
    %800 = vector.broadcast %79 : vector<1x128xf32> to vector<2x128xf32>
    %801 = arith.addf %799, %800 : vector<2x128xf32>
    %802 = arith.truncf %797 : vector<2x32xf32> to vector<2x32xbf16>
    %cst_152 = arith.constant dense<0.000000e+00> : vector<2x128xf32>
    %803 = tpu.matmul %802, %78, %cst_152 {dimension_numbers = #tpu.dot_dimension_numbers<[1], [0], [0], [1], [0, 0, 1, 1], [], []>} : vector<2x32xbf16>, vector<32x128xbf16>, vector<2x128xf32> -> vector<2x128xf32>
    %804 = arith.addf %801, %803 : vector<2x128xf32>
    %805 = vector.extract_strided_slice %804 {offsets = [0, 0], sizes = [2, 32], strides = [1, 1]} : vector<2x128xf32> to vector<2x32xf32>
    %806 = arith.negf %805 : vector<2x32xf32>
    %807 = math.exp %806 : vector<2x32xf32>
    %cst_153 = arith.constant 1.000000e+00 : f32
    %808 = vector.broadcast %cst_153 : f32 to vector<2x32xf32>
    %809 = arith.addf %808, %807 : vector<2x32xf32>
    %810 = arith.divf %808, %809 : vector<2x32xf32>
    %811 = vector.extract_strided_slice %804 {offsets = [0, 32], sizes = [2, 32], strides = [1, 1]} : vector<2x128xf32> to vector<2x32xf32>
    %812 = arith.negf %811 : vector<2x32xf32>
    %813 = math.exp %812 : vector<2x32xf32>
    %cst_154 = arith.constant 1.000000e+00 : f32
    %814 = vector.broadcast %cst_154 : f32 to vector<2x32xf32>
    %815 = arith.addf %814, %813 : vector<2x32xf32>
    %816 = arith.divf %814, %815 : vector<2x32xf32>
    %817 = vector.extract_strided_slice %804 {offsets = [0, 64], sizes = [2, 32], strides = [1, 1]} : vector<2x128xf32> to vector<2x32xf32>
    %818 = math.tanh %817 : vector<2x32xf32>
    %819 = vector.extract_strided_slice %804 {offsets = [0, 96], sizes = [2, 32], strides = [1, 1]} : vector<2x128xf32> to vector<2x32xf32>
    %820 = arith.negf %819 : vector<2x32xf32>
    %821 = math.exp %820 : vector<2x32xf32>
    %cst_155 = arith.constant 1.000000e+00 : f32
    %822 = vector.broadcast %cst_155 : f32 to vector<2x32xf32>
    %823 = arith.addf %822, %821 : vector<2x32xf32>
    %824 = arith.divf %822, %823 : vector<2x32xf32>
    %825 = arith.mulf %816, %795 : vector<2x32xf32>
    %826 = arith.mulf %810, %818 : vector<2x32xf32>
    %827 = arith.addf %825, %826 : vector<2x32xf32>
    %828 = math.tanh %827 : vector<2x32xf32>
    %829 = arith.mulf %824, %828 : vector<2x32xf32>
    %830 = arith.truncf %829 : vector<2x32xf32> to vector<2x32xbf16>
    %c0_156 = arith.constant 0 : index
    %c0_157 = arith.constant 0 : index
    %831 = vector.load %arg13[%c0_156, %c0_157] : memref<32x16xbf16, #tpu.memory_space<vmem>>, vector<32x16xbf16>
    %cst_158 = arith.constant dense<0.000000e+00> : vector<2x16xf32>
    %832 = tpu.matmul %830, %831, %cst_158 {dimension_numbers = #tpu.dot_dimension_numbers<[1], [0], [0], [1], [0, 0, 1, 1], [], []>} : vector<2x32xbf16>, vector<32x16xbf16>, vector<2x16xf32> -> vector<2x16xf32>
    %c0_159 = arith.constant 0 : index
    %c0_160 = arith.constant 0 : index
    %833 = vector.load %arg14[%c0_159, %c0_160] : memref<1x16xf32, #tpu.memory_space<vmem>>, vector<1x16xf32>
    %834 = vector.broadcast %833 : vector<1x16xf32> to vector<2x16xf32>
    %835 = arith.addf %832, %834 : vector<2x16xf32>
    %cst_161 = arith.constant 0.000000e+00 : f32
    %836 = vector.broadcast %cst_161 : f32 to vector<2x16xf32>
    %837 = arith.maximumf %835, %836 : vector<2x16xf32>
    %c0_162 = arith.constant 0 : index
    %c0_163 = arith.constant 0 : index
    %838 = vector.load %arg15[%c0_162, %c0_163] : memref<1x16xf32, #tpu.memory_space<vmem>>, vector<1x16xf32>
    %839 = vector.broadcast %838 : vector<1x16xf32> to vector<2x16xf32>
    %840 = arith.mulf %837, %839 : vector<2x16xf32>
    %cst_164 = arith.constant dense<0.000000e+00> : vector<2xf32>
    %841 = vector.multi_reduction <add>, %840, %cst_164 [1] : vector<2x16xf32> to vector<2xf32>
    %842 = vector.shape_cast %841 : vector<2xf32> to vector<2x1xf32>
    %c0_165 = arith.constant 0 : index
    %c0_166 = arith.constant 0 : index
    %843 = vector.load %arg16[%c0_165, %c0_166] : memref<1x1xf32, #tpu.memory_space<vmem>>, vector<1x1xf32>
    %844 = vector.broadcast %843 : vector<1x1xf32> to vector<2x1xf32>
    %845 = arith.addf %842, %844 : vector<2x1xf32>
    %c0_167 = arith.constant 0 : index
    %c0_168 = arith.constant 0 : index
    %846 = vector.load %arg17[%c0_167, %c0_168] : memref<2x1xf32, #tpu.memory_space<vmem>>, vector<2x1xf32>
    tpu.vector_store %arg17[%c0_167, %c0_168], %845 {strides = array<i32>} : memref<2x1xf32, #tpu.memory_space<vmem>>, vector<2x1xf32>,
    return
  }
  func.func @transform_0(%arg0: i32) -> (i32, i32) {
    %c0_i32 = arith.constant 0 : i32
    %c0_i32_0 = arith.constant 0 : i32
    %c0_i32_1 = arith.constant 0 : i32
    return %c0_i32, %c0_i32_0 : i32, i32
  }
  func.func @transform_1(%arg0: i32) -> i32 {
    %c0_i32 = arith.constant 0 : i32
    %c0_i32_0 = arith.constant 0 : i32
    return %c0_i32 : i32
  }
  func.func @transform_2(%arg0: i32) -> (i32, i32, i32) {
    %c0_i32 = arith.constant 0 : i32
    %c0_i32_0 = arith.constant 0 : i32
    %c0_i32_1 = arith.constant 0 : i32
    return %arg0, %c0_i32, %c0_i32_0 : i32, i32, i32
  }
  func.func @transform_3(%arg0: i32) -> (i32, i32) {
    %c0_i32 = arith.constant 0 : i32
    %c0_i32_0 = arith.constant 0 : i32
    %c0_i32_1 = arith.constant 0 : i32
    return %c0_i32, %c0_i32_0 : i32, i32
  }
  func.func @transform_4(%arg0: i32) -> (i32, i32) {
    %c0_i32 = arith.constant 0 : i32
    %c0_i32_0 = arith.constant 0 : i32
    %c0_i32_1 = arith.constant 0 : i32
    return %c0_i32, %c0_i32_0 : i32, i32
  }
  func.func @transform_5(%arg0: i32) -> (i32, i32) {
    %c0_i32 = arith.constant 0 : i32
    %c0_i32_0 = arith.constant 0 : i32
    %c0_i32_1 = arith.constant 0 : i32
    return %c0_i32, %c0_i32_0 : i32, i32
  }
  func.func @transform_6(%arg0: i32) -> (i32, i32) {
    %c0_i32 = arith.constant 0 : i32
    %c0_i32_0 = arith.constant 0 : i32
    %c0_i32_1 = arith.constant 0 : i32
    return %c0_i32, %c0_i32_0 : i32, i32
  }
  func.func @transform_7(%arg0: i32) -> (i32, i32) {
    %c0_i32 = arith.constant 0 : i32
    %c0_i32_0 = arith.constant 0 : i32
    %c0_i32_1 = arith.constant 0 : i32
    return %c0_i32, %c0_i32_0 : i32, i32
  }
  func.func @transform_8(%arg0: i32) -> (i32, i32) {
    %c0_i32 = arith.constant 0 : i32
    %c0_i32_0 = arith.constant 0 : i32
    %c0_i32_1 = arith.constant 0 : i32
    return %c0_i32, %c0_i32_0 : i32, i32
  }
  func.func @transform_9(%arg0: i32) -> (i32, i32) {
    %c0_i32 = arith.constant 0 : i32
    %c0_i32_0 = arith.constant 0 : i32
    %c0_i32_1 = arith.constant 0 : i32
    return %c0_i32, %c0_i32_0 : i32, i32
  }
  func.func @transform_10(%arg0: i32) -> (i32, i32) {
    %c0_i32 = arith.constant 0 : i32
    %c0_i32_0 = arith.constant 0 : i32
    %c0_i32_1 = arith.constant 0 : i32
    return %c0_i32, %c0_i32_0 : i32, i32
  }
  func.func @transform_11(%arg0: i32) -> (i32, i32) {
    %c0_i32 = arith.constant 0 : i32
    %c0_i32_0 = arith.constant 0 : i32
    %c0_i32_1 = arith.constant 0 : i32
    return %c0_i32, %c0_i32_0 : i32, i32
  }
  func.func @transform_12(%arg0: i32) -> (i32, i32) {
    %c0_i32 = arith.constant 0 : i32
    %c0_i32_0 = arith.constant 0 : i32
    %c0_i32_1 = arith.constant 0 : i32
    return %c0_i32, %c0_i32_0 : i32, i32
  }
  func.func @transform_13(%arg0: i32) -> (i32, i32) {
    %c0_i32 = arith.constant 0 : i32
    %c0_i32_0 = arith.constant 0 : i32
    %c0_i32_1 = arith.constant 0 : i32
    return %c0_i32, %c0_i32_0 : i32, i32
  }
  func.func @transform_14(%arg0: i32) -> (i32, i32) {
    %c0_i32 = arith.constant 0 : i32
    %c0_i32_0 = arith.constant 0 : i32
    %c0_i32_1 = arith.constant 0 : i32
    return %c0_i32, %c0_i32_0 : i32, i32
  }
  func.func @transform_15(%arg0: i32) -> (i32, i32) {
    %c0_i32 = arith.constant 0 : i32
    %c0_i32_0 = arith.constant 0 : i32
    %c0_i32_1 = arith.constant 0 : i32
    return %c0_i32, %c0_i32_0 : i32, i32
  }
  func.func @transform_16(%arg0: i32) -> (i32, i32) {
    %c0_i32 = arith.constant 0 : i32
    %c0_i32_0 = arith.constant 0 : i32
    return %arg0, %c0_i32 : i32, i32
  }
}

</mosaic_0001>

<llo_original>
// kernel: tpu_custom_call.1
$region0: #{tpu_custom_call.1}
  #allocation0 [shape = 'u32[]', space=smem, size = 0x4, offset = 0x4, fixed_abs, tag = 'smem constant byte address 0x4 - core index']
  #allocation1 [shape = 'u32[144,128]{1,0:T(1,128)}', space=vmem, size = 0x12000, scoped, tag = 'internal scratch']
  #allocation2 [shape = 'f32[1]{0:T(128)S(6)}', space=smem, size = 0x200, scoped, tag = 'scoped memory for tpu_custom_call.1']
  #allocation3 [shape = 'f32[1,1]{1,0:T(1,128)S(1)}', space=vmem, size = 0x200, scoped, tag = 'scoped memory for tpu_custom_call.1']
  %s0 = inlined_call_operand.hbm [shape: f32[3,3], index: 0, kind: input, shape index: {}]
  %s1 = inlined_call_operand.<no memory space> [shape: f32[1], index: 1, kind: input, shape index: {}]
  %s2 = inlined_call_operand.vmem [shape: f32[2,10,18], index: 2, kind: input, shape index: {}]
  %s3 = inlined_call_operand.hbm [shape: bf16[16,128], index: 3, kind: input, shape index: {}]
  %s4 = inlined_call_operand.hbm [shape: bf16[32,128], index: 4, kind: input, shape index: {}]
  %s5 = inlined_call_operand.vmem [shape: f32[1,128], index: 5, kind: input, shape index: {}]
  %s6 = inlined_call_operand.vmem [shape: bf16[32,256], index: 6, kind: input, shape index: {}]
  %s7 = inlined_call_operand.vmem [shape: bf16[64,256], index: 7, kind: input, shape index: {}]
  %s8 = inlined_call_operand.hbm [shape: f32[1,256], index: 8, kind: input, shape index: {}]
  %s9 = inlined_call_operand.hbm [shape: bf16[64,128], index: 9, kind: input, shape index: {}]
  %s10 = inlined_call_operand.vmem [shape: bf16[32,128], index: 10, kind: input, shape index: {}]
  %s11 = inlined_call_operand.hbm [shape: f32[1,128], index: 11, kind: input, shape index: {}]
  %s12 = inlined_call_operand.vmem [shape: bf16[32,16], index: 12, kind: input, shape index: {}]
  %s13 = inlined_call_operand.vmem [shape: f32[1,16], index: 13, kind: input, shape index: {}]
  %s14 = inlined_call_operand.vmem [shape: f32[1,16], index: 14, kind: input, shape index: {}]
  %s15 = inlined_call_operand.<no memory space> [shape: f32[1,1], index: 15, kind: input, shape index: {}]
  %s16 = inlined_call_operand.vmem [shape: f32[2,1], index: 16, kind: output, shape index: {}]
  %s17 = sld [smem:[#allocation0]]
  $region98: #{tpu_custom_call.1} parent=0
    _
  %s19 = ssub.s32 1, %s17
  %s20 = scalar_select 0, %s19, %s17
  %21 = sst [smem:[#allocation2]] %s1
  %v22 = vstv %s15
  %23 = vst [vmem:[#allocation3] sm:$0x1] %v22
  $region1: #{tpu_custom_call.1} parent=0
    #allocation4 [shape = 'u8[2048]{0}', space=smem, size = 0x800, scoped, tag = 'input window, operand 0, single buffered']
    #allocation5 [shape = 's32[1]{0}', space=sflag, size = 0x4, scoped, tag = 'scoped memory for tpu_custom_call.1']
    #allocation6 [shape = 's32[1]{0}', space=sflag, size = 0x4, scoped, tag = 'scoped memory for tpu_custom_call.1']
    #allocation7 [shape = 'u8[4096]{0}', space=vmem, size = 0x1000, scoped, tag = 'input window, operand 3, single buffered']
    #allocation8 [shape = 'u8[8192]{0}', space=vmem, size = 0x2000, scoped, tag = 'input window, operand 4, single buffered']
    #allocation9 [shape = 's32[1]{0}', space=sflag, size = 0x4, scoped, tag = 'scoped memory for tpu_custom_call.1']
    #allocation10 [shape = 'u8[1024]{0}', space=vmem, size = 0x400, scoped, tag = 'input window, operand 8, single buffered']
    #allocation11 [shape = 'u8[16384]{0}', space=vmem, size = 0x4000, scoped, tag = 'input window, operand 9, single buffered']
    #allocation12 [shape = 's32[1]{0}', space=sflag, size = 0x4, scoped, tag = 'scoped memory for tpu_custom_call.1']
    #allocation13 [shape = 'u8[512]{0}', space=vmem, size = 0x400, scoped, tag = 'input window, operand 11, single buffered']
    %24 = vsyncpa [#allocation6], 0
    %25 = vsyncpa [#allocation5], 0
    %26 = vsyncpa [#allocation9], 0
    %27 = vsyncpa [#allocation12], 0
    // Predicated region
    $region2: #{tpu_custom_call.1} parent=1 // pred_check
      _
    $region3: #{tpu_custom_call.1} parent=1 // pred_check_branch
      %29 = sbr.rel (0) target = $region5
    $region4: #{tpu_custom_call.1} parent=1 // pred_region
      %s31 = ssub.s32 64, 64
      %32 = vsyncadd [#allocation6], %s31
      %35 = dma.hbm_to_smem %s0, 64, [#allocation4], [#allocation6]
    $region5: #{tpu_custom_call.1} parent=1 // pred_fallthru
      _
    // Predicated region
    $region6: #{tpu_custom_call.1} parent=1 // pred_check
      _
    $region7: #{tpu_custom_call.1} parent=1 // pred_check_branch
      %37 = sbr.rel (0) target = $region9
    $region8: #{tpu_custom_call.1} parent=1 // pred_region
      _
    $region9: #{tpu_custom_call.1} parent=1 // pred_fallthru
      _
    // Predicated region
    $region10: #{tpu_custom_call.1} parent=1 // pred_check
      _
    $region11: #{tpu_custom_call.1} parent=1 // pred_check_branch
      %39 = sbr.rel (0) target = $region13
    $region12: #{tpu_custom_call.1} parent=1 // pred_region
      _
    $region13: #{tpu_custom_call.1} parent=1 // pred_fallthru
      _
    // Predicated region
    $region14: #{tpu_custom_call.1} parent=1 // pred_check
      _
    $region15: #{tpu_custom_call.1} parent=1 // pred_check_branch
      %41 = sbr.rel (0) target = $region17
    $region16: #{tpu_custom_call.1} parent=1 // pred_region
      %s43 = ssub.s32 128, 128
      %44 = vsyncadd [#allocation5], %s43
      %s45 = sshll.u32 [#allocation7], 4
      %s46 = int_to_ptr.vmem [resolvable:$true] %s45
      %51 = dma.hbm_to_vmem [thread:$0]  %s3, 128, %s46, [#allocation5], 64, 64, 4
    $region17: #{tpu_custom_call.1} parent=1 // pred_fallthru
      _
    // Predicated region
    $region18: #{tpu_custom_call.1} parent=1 // pred_check
      _
    $region19: #{tpu_custom_call.1} parent=1 // pred_check_branch
      %53 = sbr.rel (0) target = $region21
    $region20: #{tpu_custom_call.1} parent=1 // pred_region
      %s55 = ssub.s32 256, 256
      %56 = vsyncadd [#allocation9], %s55
      %s57 = sshll.u32 [#allocation8], 4
      %s58 = int_to_ptr.vmem [resolvable:$true] %s57
      %63 = dma.hbm_to_vmem [thread:$0]  %s4, 256, %s58, [#allocation9], 64, 64, 4
    $region21: #{tpu_custom_call.1} parent=1 // pred_fallthru
      _
    // Predicated region
    $region22: #{tpu_custom_call.1} parent=1 // pred_check
      _
    $region23: #{tpu_custom_call.1} parent=1 // pred_check_branch
      %65 = sbr.rel (0) target = $region25
    $region24: #{tpu_custom_call.1} parent=1 // pred_region
      _
    $region25: #{tpu_custom_call.1} parent=1 // pred_fallthru
      _
    // Predicated region
    $region26: #{tpu_custom_call.1} parent=1 // pred_check
      _
    $region27: #{tpu_custom_call.1} parent=1 // pred_check_branch
      %67 = sbr.rel (0) target = $region29
    $region28: #{tpu_custom_call.1} parent=1 // pred_region
      _
    $region29: #{tpu_custom_call.1} parent=1 // pred_fallthru
      _
    // Predicated region
    $region30: #{tpu_custom_call.1} parent=1 // pred_check
      _
    $region31: #{tpu_custom_call.1} parent=1 // pred_check_branch
      %69 = sbr.rel (0) target = $region33
    $region32: #{tpu_custom_call.1} parent=1 // pred_region
      _
    $region33: #{tpu_custom_call.1} parent=1 // pred_fallthru
      _
    // Predicated region
    $region34: #{tpu_custom_call.1} parent=1 // pred_check
      _
    $region35: #{tpu_custom_call.1} parent=1 // pred_check_branch
      %71 = sbr.rel (0) target = $region37
    $region36: #{tpu_custom_call.1} parent=1 // pred_region
      %s73 = ssub.s32 32, 32
      %74 = vsyncadd [#allocation9], %s73
      %s76 = sshll.u32 [#allocation10], 4
      %s77 = int_to_ptr.vmem [resolvable:$true] %s76
      %79 = dma.hbm_to_vmem [thread:$0]  %s8, 32, %s77, [#allocation9]
    $region37: #{tpu_custom_call.1} parent=1 // pred_fallthru
      _
    // Predicated region
    $region38: #{tpu_custom_call.1} parent=1 // pred_check
      _
    $region39: #{tpu_custom_call.1} parent=1 // pred_check_branch
      %81 = sbr.rel (0) target = $region41
    $region40: #{tpu_custom_call.1} parent=1 // pred_region
      %s83 = ssub.s32 512, 512
      %84 = vsyncadd [#allocation12], %s83
      %s85 = sshll.u32 [#allocation11], 4
      %s86 = int_to_ptr.vmem [resolvable:$true] %s85
      %91 = dma.hbm_to_vmem [thread:$0]  %s9, 512, %s86, [#allocation12], 64, 64, 4
    $region41: #{tpu_custom_call.1} parent=1 // pred_fallthru
      _
    // Predicated region
    $region42: #{tpu_custom_call.1} parent=1 // pred_check
      _
    $region43: #{tpu_custom_call.1} parent=1 // pred_check_branch
      %93 = sbr.rel (0) target = $region45
    $region44: #{tpu_custom_call.1} parent=1 // pred_region
      _
    $region45: #{tpu_custom_call.1} parent=1 // pred_fallthru
      _
    // Predicated region
    $region46: #{tpu_custom_call.1} parent=1 // pred_check
      _
    $region47: #{tpu_custom_call.1} parent=1 // pred_check_branch
      %95 = sbr.rel (0) target = $region49
    $region48: #{tpu_custom_call.1} parent=1 // pred_region
      %s97 = ssub.s32 16, 16
      %98 = vsyncadd [#allocation12], %s97
      %s100 = sshll.u32 [#allocation13], 4
      %s101 = int_to_ptr.vmem [resolvable:$true] %s100
      %103 = dma.hbm_to_vmem [thread:$0]  %s11, 16, %s101, [#allocation12]
    $region49: #{tpu_custom_call.1} parent=1 // pred_fallthru
      _
    // Predicated region
    $region50: #{tpu_custom_call.1} parent=1 // pred_check
      _
    $region51: #{tpu_custom_call.1} parent=1 // pred_check_branch
      %105 = sbr.rel (0) target = $region53
    $region52: #{tpu_custom_call.1} parent=1 // pred_region
      _
    $region53: #{tpu_custom_call.1} parent=1 // pred_fallthru
      _
    // Predicated region
    $region54: #{tpu_custom_call.1} parent=1 // pred_check
      _
    $region55: #{tpu_custom_call.1} parent=1 // pred_check_branch
      %107 = sbr.rel (0) target = $region57
    $region56: #{tpu_custom_call.1} parent=1 // pred_region
      _
    $region57: #{tpu_custom_call.1} parent=1 // pred_fallthru
      _
    // Predicated region
    $region58: #{tpu_custom_call.1} parent=1 // pred_check
      _
    $region59: #{tpu_custom_call.1} parent=1 // pred_check_branch
      %109 = sbr.rel (0) target = $region61
    $region60: #{tpu_custom_call.1} parent=1 // pred_region
      _
    $region61: #{tpu_custom_call.1} parent=1 // pred_fallthru
      _
    // Predicated region
    $region62: #{tpu_custom_call.1} parent=1 // pred_check
      _
    $region63: #{tpu_custom_call.1} parent=1 // pred_check_branch
      %111 = sbr.rel (0) target = $region65
    $region64: #{tpu_custom_call.1} parent=1 // pred_region
      _
    $region65: #{tpu_custom_call.1} parent=1 // pred_fallthru
      _
    // Predicated region
    $region66: #{tpu_custom_call.1} parent=1 // pred_check
      _
    $region67: #{tpu_custom_call.1} parent=1 // pred_check_branch
      %113 = sbr.rel (0) target = $region69
    $region68: #{tpu_custom_call.1} parent=1 // pred_region
      %114 = dma.done [#allocation6], 64
    $region69: #{tpu_custom_call.1} parent=1 // pred_fallthru
      _
    // Predicated region
    $region70: #{tpu_custom_call.1} parent=1 // pred_check
      _
    $region71: #{tpu_custom_call.1} parent=1 // pred_check_branch
      %116 = sbr.rel (0) target = $region73
    $region72: #{tpu_custom_call.1} parent=1 // pred_region
      %117 = dma.done [#allocation5], 128
    $region73: #{tpu_custom_call.1} parent=1 // pred_fallthru
      _
    // Predicated region
    $region74: #{tpu_custom_call.1} parent=1 // pred_check
      _
    $region75: #{tpu_custom_call.1} parent=1 // pred_check_branch
      %119 = sbr.rel (0) target = $region77
    $region76: #{tpu_custom_call.1} parent=1 // pred_region
      %120 = dma.done [#allocation9], 256
    $region77: #{tpu_custom_call.1} parent=1 // pred_fallthru
      _
    // Predicated region
    $region78: #{tpu_custom_call.1} parent=1 // pred_check
      _
    $region79: #{tpu_custom_call.1} parent=1 // pred_check_branch
      %122 = sbr.rel (0) target = $region81
    $region80: #{tpu_custom_call.1} parent=1 // pred_region
      %123 = dma.done [#allocation9], 32
    $region81: #{tpu_custom_call.1} parent=1 // pred_fallthru
      _
    // Predicated region
    $region82: #{tpu_custom_call.1} parent=1 // pred_check
      _
    $region83: #{tpu_custom_call.1} parent=1 // pred_check_branch
      %125 = sbr.rel (0) target = $region85
    $region84: #{tpu_custom_call.1} parent=1 // pred_region
      %126 = dma.done [#allocation12], 512
    $region85: #{tpu_custom_call.1} parent=1 // pred_fallthru
      _
    // Predicated region
    $region86: #{tpu_custom_call.1} parent=1 // pred_check
      _
    $region87: #{tpu_custom_call.1} parent=1 // pred_check_branch
      %128 = sbr.rel (0) target = $region89
    $region88: #{tpu_custom_call.1} parent=1 // pred_region
      %129 = dma.done [#allocation12], 16
    $region89: #{tpu_custom_call.1} parent=1 // pred_fallthru
      _
    %130 = sfence
    %v132 = vld [vmem:[%s2] sm:$0xff]
    %v133 = vld [vmem:[%s2 + $0x8] sm:$0x3]
    %v134 = vld [vmem:[%s2 + $0x10] sm:$0xff]
    %v135 = vld [vmem:[%s2 + $0x18] sm:$0x3]
    %s136 = sld [smem:[#allocation4]]
    %v137 = vstv %s136
    %v138 = vmul.f32 %v137, %v132
    %v139 = vmul.f32 %v137, %v134
    %v140 = vadd.f32 %v138, 0.0
    %v141 = vadd.f32 %v139, 0.0
    %s142 = sld [smem:[#allocation4 + $0x1]]
    %v143 = vstv %s142
    %v144 = vmul.f32 %v143, %v132
    %v145 = vmul.f32 %v143, %v134
    %148 = vrot.lane.b32.xlu0 %v144, 127
    %v149 = vpop.permute.xlu0 %148
    %150 = vrot.lane.b32.xlu0 %v145, 127
    %v151 = vpop.permute.xlu0 %150
    %v154 = vadd.f32 %v140, %v149
    %v155 = vadd.f32 %v141, %v151
    %s156 = sld [smem:[#allocation4 + $0x2]]
    %v157 = vstv %s156
    %v158 = vmul.f32 %v157, %v132
    %v159 = vmul.f32 %v157, %v134
    %162 = vrot.lane.b32.xlu0 %v158, 126
    %v163 = vpop.permute.xlu0 %162
    %164 = vrot.lane.b32.xlu0 %v159, 126
    %v165 = vpop.permute.xlu0 %164
    %v168 = vadd.f32 %v154, %v163
    %v169 = vadd.f32 %v155, %v165
    %s170 = sld [smem:[#allocation4 + $0x80]]
    %v171 = vstv %s170
    %v172 = vmul.f32 %v171, %v132
    %v173 = vmul.f32 %v171, %v133
    %v174 = vmul.f32 %v171, %v134
    %v175 = vmul.f32 %v171, %v135
    %vm180 = vcmask 1046528
    %v181 = vrot.slane %v172, 1
    %v182 = vrot.slane %v173, 1
    %v183 = vsel %vm180, %v181, %v182
    %v184 = vrot.slane %v174, 1
    %v185 = vrot.slane %v175, 1
    %v186 = vsel %vm180, %v184, %v185
    %v189 = vadd.f32 %v168, %v183
    %v190 = vadd.f32 %v169, %v186
    %s191 = sld [smem:[#allocation4 + $0x81]]
    %v192 = vstv %s191
    %v193 = vmul.f32 %v192, %v132
    %v194 = vmul.f32 %v192, %v133
    %v195 = vmul.f32 %v192, %v134
    %v196 = vmul.f32 %v192, %v135
    %v201 = vrot.slane %v193, 1
    %v202 = vrot.slane %v194, 1
    %v203 = vsel %vm180, %v201, %v202
    %v204 = vrot.slane %v195, 1
    %v205 = vrot.slane %v196, 1
    %v206 = vsel %vm180, %v204, %v205
    %207 = vrot.lane.b32.xlu0 %v203, 127
    %v208 = vpop.permute.xlu0 %207
    %209 = vrot.lane.b32.xlu0 %v206, 127
    %v210 = vpop.permute.xlu0 %209
    %v213 = vadd.f32 %v189, %v208
    %v214 = vadd.f32 %v190, %v210
    %s215 = sld [smem:[#allocation4 + $0x82]]
    %v216 = vstv %s215
    %v217 = vmul.f32 %v216, %v132
    %v218 = vmul.f32 %v216, %v133
    %v219 = vmul.f32 %v216, %v134
    %v220 = vmul.f32 %v216, %v135
    %v225 = vrot.slane %v217, 1
    %v226 = vrot.slane %v218, 1
    %v227 = vsel %vm180, %v225, %v226
    %v228 = vrot.slane %v219, 1
    %v229 = vrot.slane %v220, 1
    %v230 = vsel %vm180, %v228, %v229
    %231 = vrot.lane.b32.xlu0 %v227, 126
    %v232 = vpop.permute.xlu0 %231
    %233 = vrot.lane.b32.xlu0 %v230, 126
    %v234 = vpop.permute.xlu0 %233
    %v237 = vadd.f32 %v213, %v232
    %v238 = vadd.f32 %v214, %v234
    %s239 = sld [smem:[#allocation4 + $0x100]]
    %v240 = vstv %s239
    %v241 = vmul.f32 %v240, %v132
    %v242 = vmul.f32 %v240, %v133
    %v243 = vmul.f32 %v240, %v134
    %v244 = vmul.f32 %v240, %v135
    %vm249 = vcmask 1045504
    %v250 = vrot.slane %v241, 2
    %v251 = vrot.slane %v242, 2
    %v252 = vsel %vm249, %v250, %v251
    %v253 = vrot.slane %v243, 2
    %v254 = vrot.slane %v244, 2
    %v255 = vsel %vm249, %v253, %v254
    %v258 = vadd.f32 %v237, %v252
    %v259 = vadd.f32 %v238, %v255
    %s260 = sld [smem:[#allocation4 + $0x101]]
    %v261 = vstv %s260
    %v262 = vmul.f32 %v261, %v132
    %v263 = vmul.f32 %v261, %v133
    %v264 = vmul.f32 %v261, %v134
    %v265 = vmul.f32 %v261, %v135
    %v270 = vrot.slane %v262, 2
    %v271 = vrot.slane %v263, 2
    %v272 = vsel %vm249, %v270, %v271
    %v273 = vrot.slane %v264, 2
    %v274 = vrot.slane %v265, 2
    %v275 = vsel %vm249, %v273, %v274
    %276 = vrot.lane.b32.xlu0 %v272, 127
    %v277 = vpop.permute.xlu0 %276
    %278 = vrot.lane.b32.xlu0 %v275, 127
    %v279 = vpop.permute.xlu0 %278
    %v282 = vadd.f32 %v258, %v277
    %v283 = vadd.f32 %v259, %v279
    %s284 = sld [smem:[#allocation4 + $0x102]]
    %v285 = vstv %s284
    %v286 = vmul.f32 %v285, %v132
    %v287 = vmul.f32 %v285, %v133
    %v288 = vmul.f32 %v285, %v134
    %v289 = vmul.f32 %v285, %v135
    %v294 = vrot.slane %v286, 2
    %v295 = vrot.slane %v287, 2
    %v296 = vsel %vm249, %v294, %v295
    %v297 = vrot.slane %v288, 2
    %v298 = vrot.slane %v289, 2
    %v299 = vsel %vm249, %v297, %v298
    %300 = vrot.lane.b32.xlu0 %v296, 126
    %v301 = vpop.permute.xlu0 %300
    %302 = vrot.lane.b32.xlu0 %v299, 126
    %v303 = vpop.permute.xlu0 %302
    %v306 = vadd.f32 %v282, %v301
    %v307 = vadd.f32 %v283, %v303
    %s308 = sld [smem:[#allocation2]]
    %v309 = vstv %s308
    %v310 = vadd.f32 %v306, %v309
    %v311 = vadd.f32 %v307, %v309
    %v314 = vrot.slane %v311, 7
    %vm315 = vcmask 1041409
    %v316 = vsel %vm315, %v314, %v310
    %v318 = vrot.slane %v310, 7
    %v319 = vrot.slane %v311, 6
    %vm320 = vcmask 1043459
    %v321 = vsel %vm320, %v319, %v318
    %v323 = vrot.slane %v310, 6
    %v324 = vrot.slane %v311, 5
    %vm325 = vcmask 1045509
    %v326 = vsel %vm325, %v324, %v323
    %v328 = vrot.slane %v310, 5
    %v329 = vrot.slane %v311, 4
    %vm330 = vcmask 1047559
    %v331 = vsel %vm330, %v329, %v328
    %v333 = vrot.slane %v310, 4
    %v334 = vrot.slane %v311, 3
    %v335 = vsel %vm315, %v334, %v333
    %v337 = vrot.slane %v310, 3
    %v338 = vrot.slane %v311, 2
    %v339 = vsel %vm320, %v338, %v337
    %v341 = vrot.slane %v310, 2
    %v342 = vrot.slane %v311, 1
    %v343 = vsel %vm325, %v342, %v341
    %v345 = vrot.slane %v310, 1
    %v346 = vsel %vm330, %v311, %v345
    %vm348 = vcmask 1041408
    %v349 = vsel %vm348, %v316, %v321
    %vm350 = vcmask 1043456
    %v351 = vsel %vm350, %v349, %v326
    %v352 = vsel %vm249, %v351, %v331
    %v353 = vsel %vm348, %v335, %v339
    %v354 = vsel %vm350, %v353, %v343
    %v355 = vsel %vm249, %v354, %v346
    %v356 = vpack.c.bf16 %v355, %v352
    %v357 = vld [vmem:[#allocation7] sm:$0xf]
    %v358 = vld [vmem:[#allocation7 + $0x4] sm:$0xf]
    %v359 = vld [vmem:[%s5] sm:$0x1]
    %v361 = vlaneseq
    %v362 = vshrl.u32 %v361, 7
    %v363 = vsub.s32 0, %v362
    %v364 = vrot.slane %v359, %v363
    %v368 = vunpack.c.l.b16 %v357
    %v369 = vunpack.c.l.b16 %v358
    %v370 = vpack.c.b16 %v369, %v368
    %vm372 = vcmask 130048
    %v374 = vsel %vm372, %v356, 0
    %376 = vmatprep.subr.bf16.mxu0 0
    %377 = vmatpush1.bf16.msra.mxu0 %v370
    %378 = vmatprep.subr.bf16.mxu0 0
    %379 = vmatpush1.bf16.msra.mxu0 0
    %380 = vmatprep.subr.bf16.mxu0 0
    %381 = vmatpush1.bf16.msra.mxu0 0
    %382 = vmatprep.subr.bf16.mxu0 0
    %383 = vmatpush1.bf16.msra.mxu0 0
    %384 = vmatprep.subr.bf16.mxu0 0
    %385 = vmatpush1.bf16.msra.mxu0 0
    %386 = vmatprep.subr.bf16.mxu0 0
    %387 = vmatpush1.bf16.msra.mxu0 0
    %388 = vmatprep.subr.bf16.mxu0 0
    %389 = vmatpush1.bf16.msra.mxu0 0
    %390 = vmatprep.subr.bf16.mxu0 0
    %391 = vmatpush1.bf16.msra.mxu0 0
    %392 = vmatprep.subr.bf16.mxu0 0
    %393 = vmatpush1.bf16.msra.mxu0 0
    %394 = vmatprep.subr.bf16.mxu0 0
    %395 = vmatpush1.bf16.msra.mxu0 0
    %396 = vmatprep.subr.bf16.mxu0 0
    %397 = vmatpush1.bf16.msra.mxu0 0
    %398 = vmatprep.subr.bf16.mxu0 0
    %399 = vmatpush1.bf16.msra.mxu0 0
    %400 = vmatprep.subr.bf16.mxu0 0
    %401 = vmatpush1.bf16.msra.mxu0 0
    %402 = vmatprep.subr.bf16.mxu0 0
    %403 = vmatpush1.bf16.msra.mxu0 0
    %404 = vmatprep.subr.bf16.mxu0 0
    %405 = vmatpush1.bf16.msra.mxu0 0
    %406 = vmatprep.subr.bf16.mxu0 0
    %407 = vmatpush1.bf16.msra.mxu0 0
    %408 = vmatprep.mubr.bf16.mxu0 0
    %409 = vmatmul.mubr.bf16.gmra.mrb[0].mxu0 %v374
    %v410 = vpop.f32.mrb[0].mxu0
    %v411 = vadd.f32 %v364, %v410
    %v412 = vpop.f32.mrb[0].mxu0
    %v413 = vpop.f32.mrb[0].mxu0
    %v414 = vadd.f32 %v364, %v413
    %v415 = vpop.f32.mrb[0].mxu0
    %416 = vdwg.mxu0
    %v417 = vld [vmem:[#allocation8] sm:$0xf]
    %v418 = vld [vmem:[#allocation8 + $0x4] sm:$0xf]
    %v419 = vld [vmem:[#allocation8 + $0x8] sm:$0xf]
    %v420 = vld [vmem:[#allocation8 + $0xc] sm:$0xf]
    %v421 = vld [vmem:[%s6] sm:$0xff]
    %v422 = vld [vmem:[%s6 + $0x8] sm:$0xff]
    %v423 = vld [vmem:[%s6 + $0x10] sm:$0xff]
    %v424 = vld [vmem:[%s6 + $0x18] sm:$0xff]
    %v425 = vld [vmem:[%s7] sm:$0xff]
    %v426 = vld [vmem:[%s7 + $0x8] sm:$0xff]
    %v427 = vld [vmem:[%s7 + $0x10] sm:$0xff]
    %v428 = vld [vmem:[%s7 + $0x18] sm:$0xff]
    %v429 = vld [vmem:[%s7 + $0x20] sm:$0xff]
    %v430 = vld [vmem:[%s7 + $0x28] sm:$0xff]
    %v431 = vld [vmem:[%s7 + $0x30] sm:$0xff]
    %v432 = vld [vmem:[%s7 + $0x38] sm:$0xff]
    %v433 = vld [vmem:[#allocation10] sm:$0x3]
    %v434 = vld [vmem:[#allocation11] sm:$0xf]
    %v435 = vld [vmem:[#allocation11 + $0x4] sm:$0xf]
    %v436 = vld [vmem:[#allocation11 + $0x8] sm:$0xf]
    %v437 = vld [vmem:[#allocation11 + $0xc] sm:$0xf]
    %v438 = vld [vmem:[#allocation11 + $0x10] sm:$0xf]
    %v439 = vld [vmem:[#allocation11 + $0x14] sm:$0xf]
    %v440 = vld [vmem:[#allocation11 + $0x18] sm:$0xf]
    %v441 = vld [vmem:[#allocation11 + $0x1c] sm:$0xf]
    %v442 = vld [vmem:[%s10] sm:$0xf]
    %v443 = vld [vmem:[%s10 + $0x4] sm:$0xf]
    %v444 = vld [vmem:[%s10 + $0x8] sm:$0xf]
    %v445 = vld [vmem:[%s10 + $0xc] sm:$0xf]
    %v446 = vld [vmem:[#allocation13] sm:$0x1]
    %v451 = vunpack.c.l.b16 %v417
    %v452 = vunpack.c.l.b16 %v418
    %v453 = vunpack.c.l.b16 %v419
    %v454 = vunpack.c.l.b16 %v420
    %v455 = vpack.c.b16 %v452, %v451
    %v456 = vpack.c.b16 %v454, %v453
    %vm459 = vcmask 261120
    %v461 = vsel %vm459, 0, 0
    %463 = vmatprep.subr.bf16.mxu0 0
    %464 = vmatpush1.bf16.msra.mxu0 %v455
    %465 = vmatprep.subr.bf16.mxu0 0
    %466 = vmatpush1.bf16.msra.mxu0 %v456
    %467 = vmatprep.subr.bf16.mxu0 0
    %468 = vmatpush1.bf16.msra.mxu0 0
    %469 = vmatprep.subr.bf16.mxu0 0
    %470 = vmatpush1.bf16.msra.mxu0 0
    %471 = vmatprep.subr.bf16.mxu0 0
    %472 = vmatpush1.bf16.msra.mxu0 0
    %473 = vmatprep.subr.bf16.mxu0 0
    %474 = vmatpush1.bf16.msra.mxu0 0
    %475 = vmatprep.subr.bf16.mxu0 0
    %476 = vmatpush1.bf16.msra.mxu0 0
    %477 = vmatprep.subr.bf16.mxu0 0
    %478 = vmatpush1.bf16.msra.mxu0 0
    %479 = vmatprep.subr.bf16.mxu0 0
    %480 = vmatpush1.bf16.msra.mxu0 0
    %481 = vmatprep.subr.bf16.mxu0 0
    %482 = vmatpush1.bf16.msra.mxu0 0
    %483 = vmatprep.subr.bf16.mxu0 0
    %484 = vmatpush1.bf16.msra.mxu0 0
    %485 = vmatprep.subr.bf16.mxu0 0
    %486 = vmatpush1.bf16.msra.mxu0 0
    %487 = vmatprep.subr.bf16.mxu0 0
    %488 = vmatpush1.bf16.msra.mxu0 0
    %489 = vmatprep.subr.bf16.mxu0 0
    %490 = vmatpush1.bf16.msra.mxu0 0
    %491 = vmatprep.subr.bf16.mxu0 0
    %492 = vmatpush1.bf16.msra.mxu0 0
    %493 = vmatprep.subr.bf16.mxu0 0
    %494 = vmatpush1.bf16.msra.mxu0 0
    %495 = vmatprep.mubr.bf16.mxu0 0
    %496 = vmatmul.mubr.bf16.gmra.mrb[0].mxu0 %v461
    %v497 = vpop.f32.mrb[0].mxu0
    %v498 = vadd.f32 0.0, %v497
    %v499 = vpop.f32.mrb[0].mxu0
    %v500 = vpop.f32.mrb[0].mxu0
    %v501 = vpop.f32.mrb[0].mxu0
    %502 = vdwg.mxu0
    %v503 = vadd.f32 %v411, %v498
    %v504 = vxor.u32 %v503, 2147483648
    %v505 = vmul.f32 %v504, 1.442695
    %v506 = vpow.pop %v505
    %v507 = vadd.f32 %v506, 1.0
    %v508 = vrcp.pop %v507
    %v509 = vmul.f32 1.0, %v508
    %v510 = vtanh.pop %v503
    %v511 = vmul.f32 %v509, 0.0
    %513 = vrot.lane.b32.xlu0 %v510, 64
    %v514 = vpop.permute.xlu0 %513
    %v516 = vmul.f32 %v509, %v514
    %518 = vrot.lane.b32.xlu0 %v516, 32
    %v519 = vpop.permute.xlu0 %518
    %v521 = vadd.f32 %v511, %v519
    %v522 = vtanh.pop %v521
    %524 = vrot.lane.b32.xlu0 %v522, 64
    %v525 = vpop.permute.xlu0 %524
    %v527 = vmul.f32 %v509, %v525
    %v528 = vpack.c.bf16 %v527, %v527
    %530 = vrot.lane.b32.xlu0 %v528, 32
    %v531 = vpop.permute.xlu0 %530
    %v533 = vsel %vm459, %v531, 0
    %535 = vmatprep.subr.bf16.mxu0 0
    %536 = vmatpush1.bf16.msra.mxu0 %v455
    %537 = vmatprep.subr.bf16.mxu0 0
    %538 = vmatpush1.bf16.msra.mxu0 %v456
    %539 = vmatprep.subr.bf16.mxu0 0
    %540 = vmatpush1.bf16.msra.mxu0 0
    %541 = vmatprep.subr.bf16.mxu0 0
    %542 = vmatpush1.bf16.msra.mxu0 0
    %543 = vmatprep.subr.bf16.mxu0 0
    %544 = vmatpush1.bf16.msra.mxu0 0
    %545 = vmatprep.subr.bf16.mxu0 0
    %546 = vmatpush1.bf16.msra.mxu0 0
    %547 = vmatprep.subr.bf16.mxu0 0
    %548 = vmatpush1.bf16.msra.mxu0 0
    %549 = vmatprep.subr.bf16.mxu0 0
    %550 = vmatpush1.bf16.msra.mxu0 0
    %551 = vmatprep.subr.bf16.mxu0 0
    %552 = vmatpush1.bf16.msra.mxu0 0
    %553 = vmatprep.subr.bf16.mxu0 0
    %554 = vmatpush1.bf16.msra.mxu0 0
    %555 = vmatprep.subr.bf16.mxu0 0
    %556 = vmatpush1.bf16.msra.mxu0 0
    %557 = vmatprep.subr.bf16.mxu0 0
    %558 = vmatpush1.bf16.msra.mxu0 0
    %559 = vmatprep.subr.bf16.mxu0 0
    %560 = vmatpush1.bf16.msra.mxu0 0
    %561 = vmatprep.subr.bf16.mxu0 0
    %562 = vmatpush1.bf16.msra.mxu0 0
    %563 = vmatprep.subr.bf16.mxu0 0
    %564 = vmatpush1.bf16.msra.mxu0 0
    %565 = vmatprep.subr.bf16.mxu0 0
    %566 = vmatpush1.bf16.msra.mxu0 0
    %567 = vmatprep.mubr.bf16.mxu0 0
    %568 = vmatmul.mubr.bf16.gmra.mrb[0].mxu0 %v533
    %v569 = vpop.f32.mrb[0].mxu0
    %v570 = vadd.f32 0.0, %v569
    %v571 = vpop.f32.mrb[0].mxu0
    %v572 = vpop.f32.mrb[0].mxu0
    %v573 = vpop.f32.mrb[0].mxu0
    %574 = vdwg.mxu0
    %v576 = vrot.slane %v570, 6
    %v578 = vadd.f32 %v411, %v576
    %v579 = vxor.u32 %v578, 2147483648
    %v580 = vmul.f32 %v579, 1.442695
    %v581 = vpow.pop %v580
    %v582 = vadd.f32 %v581, 1.0
    %v583 = vrcp.pop %v582
    %v584 = vmul.f32 1.0, %v583
    %v585 = vtanh.pop %v578
    %v587 = vrot.slane %v521, 6
    %v589 = vmul.f32 %v584, %v587
    %591 = vrot.lane.b32.xlu0 %v585, 64
    %v592 = vpop.permute.xlu0 %591
    %v594 = vmul.f32 %v584, %v592
    %596 = vrot.lane.b32.xlu0 %v594, 32
    %v597 = vpop.permute.xlu0 %596
    %v599 = vadd.f32 %v589, %v597
    %v600 = vtanh.pop %v599
    %602 = vrot.lane.b32.xlu0 %v600, 64
    %v603 = vpop.permute.xlu0 %602
    %v605 = vmul.f32 %v584, %v603
    %v607 = vlaneseq
    %v608 = vshrl.u32 %v607, 7
    %v609 = vsub.s32 0, %v608
    %v610 = vrot.slane %v433, %v609
    %v611 = vlaneseq
    %v612 = vshrl.u32 %v611, 7
    %v613 = vsub.s32 1, %v612
    %v614 = vrot.slane %v433, %v613
    %v621 = vunpack.c.l.b16 %v421
    %v622 = vunpack.c.h.b16 %v421
    %v623 = vunpack.c.l.b16 %v422
    %v624 = vunpack.c.h.b16 %v422
    %v625 = vunpack.c.l.b16 %v423
    %v626 = vunpack.c.h.b16 %v423
    %v627 = vunpack.c.l.b16 %v424
    %v628 = vunpack.c.h.b16 %v424
    %v629 = vpack.c.b16 %v623, %v621
    %v630 = vpack.c.b16 %v624, %v622
    %v631 = vpack.c.b16 %v627, %v625
    %v632 = vpack.c.b16 %v628, %v626
    %637 = vmatprep.subr.bf16.mxu0 %v630
    %638 = vmatpush1.bf16.msra.mxu0 %v629
    %639 = vmatprep.subr.bf16.mxu0 %v632
    %640 = vmatpush1.bf16.msra.mxu0 %v631
    %641 = vmatprep.subr.bf16.mxu0 0
    %642 = vmatpush1.bf16.msra.mxu0 0
    %643 = vmatprep.subr.bf16.mxu0 0
    %644 = vmatpush1.bf16.msra.mxu0 0
    %645 = vmatprep.subr.bf16.mxu0 0
    %646 = vmatpush1.bf16.msra.mxu0 0
    %647 = vmatprep.subr.bf16.mxu0 0
    %648 = vmatpush1.bf16.msra.mxu0 0
    %649 = vmatprep.subr.bf16.mxu0 0
    %650 = vmatpush1.bf16.msra.mxu0 0
    %651 = vmatprep.subr.bf16.mxu0 0
    %652 = vmatpush1.bf16.msra.mxu0 0
    %653 = vmatprep.subr.bf16.mxu0 0
    %654 = vmatpush1.bf16.msra.mxu0 0
    %655 = vmatprep.subr.bf16.mxu0 0
    %656 = vmatpush1.bf16.msra.mxu0 0
    %657 = vmatprep.subr.bf16.mxu0 0
    %658 = vmatpush1.bf16.msra.mxu0 0
    %659 = vmatprep.subr.bf16.mxu0 0
    %660 = vmatpush1.bf16.msra.mxu0 0
    %661 = vmatprep.subr.bf16.mxu0 0
    %662 = vmatpush1.bf16.msra.mxu0 0
    %663 = vmatprep.subr.bf16.mxu0 0
    %664 = vmatpush1.bf16.msra.mxu0 0
    %665 = vmatprep.subr.bf16.mxu0 0
    %666 = vmatpush1.bf16.msra.mxu0 0
    %667 = vmatprep.subr.bf16.mxu0 0
    %668 = vmatpush1.bf16.msra.mxu0 0
    %669 = vmatprep.mubr.bf16.mxu0 0
    %670 = vmatmul.mubr.bf16.gmra.mrb[0].mxu0 %v533
    %v671 = vpop.f32.mrb[0].mxu0
    %v672 = vadd.f32 %v610, %v671
    %v673 = vpop.f32.mrb[0].mxu0
    %v674 = vadd.f32 %v614, %v673
    %v675 = vpop.f32.mrb[0].mxu0
    %v676 = vpop.f32.mrb[0].mxu0
    %677 = vdwg.mxu0
    %v686 = vunpack.c.l.b16 %v425
    %v687 = vunpack.c.h.b16 %v425
    %v688 = vunpack.c.l.b16 %v426
    %v689 = vunpack.c.h.b16 %v426
    %v690 = vunpack.c.l.b16 %v427
    %v691 = vunpack.c.h.b16 %v427
    %v692 = vunpack.c.l.b16 %v428
    %v693 = vunpack.c.h.b16 %v428
    %v694 = vunpack.c.l.b16 %v429
    %v695 = vunpack.c.h.b16 %v429
    %v696 = vunpack.c.l.b16 %v430
    %v697 = vunpack.c.h.b16 %v430
    %v698 = vunpack.c.l.b16 %v431
    %v699 = vunpack.c.h.b16 %v431
    %v700 = vunpack.c.l.b16 %v432
    %v701 = vunpack.c.h.b16 %v432
    %v702 = vpack.c.b16 %v688, %v686
    %v703 = vpack.c.b16 %v689, %v687
    %v704 = vpack.c.b16 %v692, %v690
    %v705 = vpack.c.b16 %v693, %v691
    %v706 = vpack.c.b16 %v696, %v694
    %v707 = vpack.c.b16 %v697, %v695
    %v708 = vpack.c.b16 %v700, %v698
    %v709 = vpack.c.b16 %v701, %v699
    %vm718 = vcmask 523264
    %v719 = vsel %vm718, 0, 0
    %721 = vmatprep.subr.bf16.mxu0 %v703
    %722 = vmatpush1.bf16.msra.mxu0 %v702
    %723 = vmatprep.subr.bf16.mxu0 %v705
    %724 = vmatpush1.bf16.msra.mxu0 %v704
    %725 = vmatprep.subr.bf16.mxu0 %v707
    %726 = vmatpush1.bf16.msra.mxu0 %v706
    %727 = vmatprep.subr.bf16.mxu0 %v709
    %728 = vmatpush1.bf16.msra.mxu0 %v708
    %729 = vmatprep.subr.bf16.mxu0 0
    %730 = vmatpush1.bf16.msra.mxu0 0
    %731 = vmatprep.subr.bf16.mxu0 0
    %732 = vmatpush1.bf16.msra.mxu0 0
    %733 = vmatprep.subr.bf16.mxu0 0
    %734 = vmatpush1.bf16.msra.mxu0 0
    %735 = vmatprep.subr.bf16.mxu0 0
    %736 = vmatpush1.bf16.msra.mxu0 0
    %737 = vmatprep.subr.bf16.mxu0 0
    %738 = vmatpush1.bf16.msra.mxu0 0
    %739 = vmatprep.subr.bf16.mxu0 0
    %740 = vmatpush1.bf16.msra.mxu0 0
    %741 = vmatprep.subr.bf16.mxu0 0
    %742 = vmatpush1.bf16.msra.mxu0 0
    %743 = vmatprep.subr.bf16.mxu0 0
    %744 = vmatpush1.bf16.msra.mxu0 0
    %745 = vmatprep.subr.bf16.mxu0 0
    %746 = vmatpush1.bf16.msra.mxu0 0
    %747 = vmatprep.subr.bf16.mxu0 0
    %748 = vmatpush1.bf16.msra.mxu0 0
    %749 = vmatprep.subr.bf16.mxu0 0
    %750 = vmatpush1.bf16.msra.mxu0 0
    %751 = vmatprep.subr.bf16.mxu0 0
    %752 = vmatpush1.bf16.msra.mxu0 0
    %753 = vmatprep.mubr.bf16.mxu0 0
    %754 = vmatmul.mubr.bf16.gmra.mrb[0].mxu0 %v719
    %v755 = vpop.f32.mrb[0].mxu0
    %v756 = vadd.f32 0.0, %v755
    %v757 = vpop.f32.mrb[0].mxu0
    %v758 = vadd.f32 0.0, %v757
    %v759 = vpop.f32.mrb[0].mxu0
    %v760 = vpop.f32.mrb[0].mxu0
    %761 = vdwg.mxu0
    %v762 = vadd.f32 %v672, %v756
    %v763 = vadd.f32 %v674, %v758
    %v764 = vxor.u32 %v762, 2147483648
    %v765 = vmul.f32 %v764, 1.442695
    %v766 = vpow.pop %v765
    %v767 = vadd.f32 %v766, 1.0
    %v768 = vrcp.pop %v767
    %v769 = vmul.f32 1.0, %v768
    %v770 = vtanh.pop %v763
    %v771 = vxor.u32 %v763, 2147483648
    %v772 = vmul.f32 %v771, 1.442695
    %v773 = vpow.pop %v772
    %v774 = vadd.f32 %v773, 1.0
    %v775 = vrcp.pop %v774
    %v776 = vmul.f32 1.0, %v775
    %v777 = vmul.f32 %v769, 0.0
    %v778 = vmul.f32 %v769, %v770
    %780 = vrot.lane.b32.xlu0 %v778, 64
    %v781 = vpop.permute.xlu0 %780
    %v783 = vadd.f32 %v777, %v781
    %v784 = vtanh.pop %v783
    %v785 = vmul.f32 %v776, %v784
    %v786 = vpack.c.bf16 %v605, %v605
    %v788 = vrot.slane %v786, 1
    %789 = vrot.lane.b32.xlu0 %v788, 32
    %v790 = vpop.permute.xlu0 %789
    %v792 = vsel %vm459, %v790, 0
    %794 = vmatprep.subr.bf16.mxu0 0
    %795 = vmatpush1.bf16.msra.mxu0 %v455
    %796 = vmatprep.subr.bf16.mxu0 0
    %797 = vmatpush1.bf16.msra.mxu0 %v456
    %798 = vmatprep.subr.bf16.mxu0 0
    %799 = vmatpush1.bf16.msra.mxu0 0
    %800 = vmatprep.subr.bf16.mxu0 0
    %801 = vmatpush1.bf16.msra.mxu0 0
    %802 = vmatprep.subr.bf16.mxu0 0
    %803 = vmatpush1.bf16.msra.mxu0 0
    %804 = vmatprep.subr.bf16.mxu0 0
    %805 = vmatpush1.bf16.msra.mxu0 0
    %806 = vmatprep.subr.bf16.mxu0 0
    %807 = vmatpush1.bf16.msra.mxu0 0
    %808 = vmatprep.subr.bf16.mxu0 0
    %809 = vmatpush1.bf16.msra.mxu0 0
    %810 = vmatprep.subr.bf16.mxu0 0
    %811 = vmatpush1.bf16.msra.mxu0 0
    %812 = vmatprep.subr.bf16.mxu0 0
    %813 = vmatpush1.bf16.msra.mxu0 0
    %814 = vmatprep.subr.bf16.mxu0 0
    %815 = vmatpush1.bf16.msra.mxu0 0
    %816 = vmatprep.subr.bf16.mxu0 0
    %817 = vmatpush1.bf16.msra.mxu0 0
    %818 = vmatprep.subr.bf16.mxu0 0
    %819 = vmatpush1.bf16.msra.mxu0 0
    %820 = vmatprep.subr.bf16.mxu0 0
    %821 = vmatpush1.bf16.msra.mxu0 0
    %822 = vmatprep.subr.bf16.mxu0 0
    %823 = vmatpush1.bf16.msra.mxu0 0
    %824 = vmatprep.subr.bf16.mxu0 0
    %825 = vmatpush1.bf16.msra.mxu0 0
    %826 = vmatprep.mubr.bf16.mxu0 0
    %827 = vmatmul.mubr.bf16.gmra.mrb[0].mxu0 %v792
    %v828 = vpop.f32.mrb[0].mxu0
    %v829 = vadd.f32 0.0, %v828
    %v830 = vpop.f32.mrb[0].mxu0
    %v831 = vpop.f32.mrb[0].mxu0
    %v832 = vpop.f32.mrb[0].mxu0
    %833 = vdwg.mxu0
    %v835 = vrot.slane %v829, 4
    %v837 = vadd.f32 %v411, %v835
    %v838 = vxor.u32 %v837, 2147483648
    %v839 = vmul.f32 %v838, 1.442695
    %v840 = vpow.pop %v839
    %v841 = vadd.f32 %v840, 1.0
    %v842 = vrcp.pop %v841
    %v843 = vmul.f32 1.0, %v842
    %v844 = vtanh.pop %v837
    %v846 = vrot.slane %v599, 6
    %v848 = vmul.f32 %v843, %v846
    %850 = vrot.lane.b32.xlu0 %v844, 64
    %v851 = vpop.permute.xlu0 %850
    %v853 = vmul.f32 %v843, %v851
    %855 = vrot.lane.b32.xlu0 %v853, 32
    %v856 = vpop.permute.xlu0 %855
    %v858 = vadd.f32 %v848, %v856
    %v859 = vtanh.pop %v858
    %861 = vrot.lane.b32.xlu0 %v859, 64
    %v862 = vpop.permute.xlu0 %861
    %v864 = vmul.f32 %v843, %v862
    %865 = vmatprep.subr.bf16.mxu0 %v630
    %866 = vmatpush1.bf16.msra.mxu0 %v629
    %867 = vmatprep.subr.bf16.mxu0 %v632
    %868 = vmatpush1.bf16.msra.mxu0 %v631
    %869 = vmatprep.subr.bf16.mxu0 0
    %870 = vmatpush1.bf16.msra.mxu0 0
    %871 = vmatprep.subr.bf16.mxu0 0
    %872 = vmatpush1.bf16.msra.mxu0 0
    %873 = vmatprep.subr.bf16.mxu0 0
    %874 = vmatpush1.bf16.msra.mxu0 0
    %875 = vmatprep.subr.bf16.mxu0 0
    %876 = vmatpush1.bf16.msra.mxu0 0
    %877 = vmatprep.subr.bf16.mxu0 0
    %878 = vmatpush1.bf16.msra.mxu0 0
    %879 = vmatprep.subr.bf16.mxu0 0
    %880 = vmatpush1.bf16.msra.mxu0 0
    %881 = vmatprep.subr.bf16.mxu0 0
    %882 = vmatpush1.bf16.msra.mxu0 0
    %883 = vmatprep.subr.bf16.mxu0 0
    %884 = vmatpush1.bf16.msra.mxu0 0
    %885 = vmatprep.subr.bf16.mxu0 0
    %886 = vmatpush1.bf16.msra.mxu0 0
    %887 = vmatprep.subr.bf16.mxu0 0
    %888 = vmatpush1.bf16.msra.mxu0 0
    %889 = vmatprep.subr.bf16.mxu0 0
    %890 = vmatpush1.bf16.msra.mxu0 0
    %891 = vmatprep.subr.bf16.mxu0 0
    %892 = vmatpush1.bf16.msra.mxu0 0
    %893 = vmatprep.subr.bf16.mxu0 0
    %894 = vmatpush1.bf16.msra.mxu0 0
    %895 = vmatprep.subr.bf16.mxu0 0
    %896 = vmatpush1.bf16.msra.mxu0 0
    %897 = vmatprep.mubr.bf16.mxu0 0
    %898 = vmatmul.mubr.bf16.gmra.mrb[0].mxu0 %v792
    %v899 = vpop.f32.mrb[0].mxu0
    %v900 = vadd.f32 %v610, %v899
    %v901 = vpop.f32.mrb[0].mxu0
    %v902 = vadd.f32 %v614, %v901
    %v903 = vpop.f32.mrb[0].mxu0
    %v904 = vpop.f32.mrb[0].mxu0
    %905 = vdwg.mxu0
    %v906 = vpack.c.bf16 %v785, %v785
    %908 = vrot.lane.b32.xlu0 %v906, 64
    %v909 = vpop.permute.xlu0 %908
    %v911 = vsel %vm718, %v909, 0
    %913 = vmatprep.subr.bf16.mxu0 %v703
    %914 = vmatpush1.bf16.msra.mxu0 %v702
    %915 = vmatprep.subr.bf16.mxu0 %v705
    %916 = vmatpush1.bf16.msra.mxu0 %v704
    %917 = vmatprep.subr.bf16.mxu0 %v707
    %918 = vmatpush1.bf16.msra.mxu0 %v706
    %919 = vmatprep.subr.bf16.mxu0 %v709
    %920 = vmatpush1.bf16.msra.mxu0 %v708
    %921 = vmatprep.subr.bf16.mxu0 0
    %922 = vmatpush1.bf16.msra.mxu0 0
    %923 = vmatprep.subr.bf16.mxu0 0
    %924 = vmatpush1.bf16.msra.mxu0 0
    %925 = vmatprep.subr.bf16.mxu0 0
    %926 = vmatpush1.bf16.msra.mxu0 0
    %927 = vmatprep.subr.bf16.mxu0 0
    %928 = vmatpush1.bf16.msra.mxu0 0
    %929 = vmatprep.subr.bf16.mxu0 0
    %930 = vmatpush1.bf16.msra.mxu0 0
    %931 = vmatprep.subr.bf16.mxu0 0
    %932 = vmatpush1.bf16.msra.mxu0 0
    %933 = vmatprep.subr.bf16.mxu0 0
    %934 = vmatpush1.bf16.msra.mxu0 0
    %935 = vmatprep.subr.bf16.mxu0 0
    %936 = vmatpush1.bf16.msra.mxu0 0
    %937 = vmatprep.subr.bf16.mxu0 0
    %938 = vmatpush1.bf16.msra.mxu0 0
    %939 = vmatprep.subr.bf16.mxu0 0
    %940 = vmatpush1.bf16.msra.mxu0 0
    %941 = vmatprep.subr.bf16.mxu0 0
    %942 = vmatpush1.bf16.msra.mxu0 0
    %943 = vmatprep.subr.bf16.mxu0 0
    %944 = vmatpush1.bf16.msra.mxu0 0
    %945 = vmatprep.mubr.bf16.mxu0 0
    %946 = vmatmul.mubr.bf16.gmra.mrb[0].mxu0 %v911
    %v947 = vpop.f32.mrb[0].mxu0
    %v948 = vadd.f32 0.0, %v947
    %v949 = vpop.f32.mrb[0].mxu0
    %v950 = vadd.f32 0.0, %v949
    %v951 = vpop.f32.mrb[0].mxu0
    %v952 = vpop.f32.mrb[0].mxu0
    %953 = vdwg.mxu0
    %v954 = vadd.f32 %v900, %v948
    %v955 = vadd.f32 %v902, %v950
    %v956 = vxor.u32 %v954, 2147483648
    %v957 = vmul.f32 %v956, 1.442695
    %v958 = vpow.pop %v957
    %v959 = vadd.f32 %v958, 1.0
    %v960 = vrcp.pop %v959
    %v961 = vmul.f32 1.0, %v960
    %v962 = vtanh.pop %v955
    %v963 = vxor.u32 %v955, 2147483648
    %v964 = vmul.f32 %v963, 1.442695
    %v965 = vpow.pop %v964
    %v966 = vadd.f32 %v965, 1.0
    %v967 = vrcp.pop %v966
    %v968 = vmul.f32 1.0, %v967
    %v969 = vmul.f32 %v961, %v783
    %v970 = vmul.f32 %v961, %v962
    %972 = vrot.lane.b32.xlu0 %v970, 64
    %v973 = vpop.permute.xlu0 %972
    %v975 = vadd.f32 %v969, %v973
    %v976 = vtanh.pop %v975
    %v977 = vmul.f32 %v968, %v976
    %v979 = vlaneseq
    %v980 = vshrl.u32 %v979, 7
    %v981 = vsub.s32 0, %v980
    %v982 = vrot.slane %v446, %v981
    %v992 = vunpack.c.l.b16 %v434
    %v993 = vunpack.c.l.b16 %v435
    %v994 = vunpack.c.l.b16 %v436
    %v995 = vunpack.c.l.b16 %v437
    %v996 = vunpack.c.l.b16 %v438
    %v997 = vunpack.c.l.b16 %v439
    %v998 = vunpack.c.l.b16 %v440
    %v999 = vunpack.c.l.b16 %v441
    %v1000 = vpack.c.b16 %v993, %v992
    %v1001 = vpack.c.b16 %v995, %v994
    %v1002 = vpack.c.b16 %v997, %v996
    %v1003 = vpack.c.b16 %v999, %v998
    %1008 = vmatprep.subr.bf16.mxu0 0
    %1009 = vmatpush1.bf16.msra.mxu0 %v1000
    %1010 = vmatprep.subr.bf16.mxu0 0
    %1011 = vmatpush1.bf16.msra.mxu0 %v1001
    %1012 = vmatprep.subr.bf16.mxu0 0
    %1013 = vmatpush1.bf16.msra.mxu0 %v1002
    %1014 = vmatprep.subr.bf16.mxu0 0
    %1015 = vmatpush1.bf16.msra.mxu0 %v1003
    %1016 = vmatprep.subr.bf16.mxu0 0
    %1017 = vmatpush1.bf16.msra.mxu0 0
    %1018 = vmatprep.subr.bf16.mxu0 0
    %1019 = vmatpush1.bf16.msra.mxu0 0
    %1020 = vmatprep.subr.bf16.mxu0 0
    %1021 = vmatpush1.bf16.msra.mxu0 0
    %1022 = vmatprep.subr.bf16.mxu0 0
    %1023 = vmatpush1.bf16.msra.mxu0 0
    %1024 = vmatprep.subr.bf16.mxu0 0
    %1025 = vmatpush1.bf16.msra.mxu0 0
    %1026 = vmatprep.subr.bf16.mxu0 0
    %1027 = vmatpush1.bf16.msra.mxu0 0
    %1028 = vmatprep.subr.bf16.mxu0 0
    %1029 = vmatpush1.bf16.msra.mxu0 0
    %1030 = vmatprep.subr.bf16.mxu0 0
    %1031 = vmatpush1.bf16.msra.mxu0 0
    %1032 = vmatprep.subr.bf16.mxu0 0
    %1033 = vmatpush1.bf16.msra.mxu0 0
    %1034 = vmatprep.subr.bf16.mxu0 0
    %1035 = vmatpush1.bf16.msra.mxu0 0
    %1036 = vmatprep.subr.bf16.mxu0 0
    %1037 = vmatpush1.bf16.msra.mxu0 0
    %1038 = vmatprep.subr.bf16.mxu0 0
    %1039 = vmatpush1.bf16.msra.mxu0 0
    %1040 = vmatprep.mubr.bf16.mxu0 0
    %1041 = vmatmul.mubr.bf16.gmra.mrb[0].mxu0 %v911
    %v1042 = vpop.f32.mrb[0].mxu0
    %v1043 = vadd.f32 %v982, %v1042
    %v1044 = vpop.f32.mrb[0].mxu0
    %v1045 = vpop.f32.mrb[0].mxu0
    %v1046 = vpop.f32.mrb[0].mxu0
    %1047 = vdwg.mxu0
    %v1052 = vunpack.c.l.b16 %v442
    %v1053 = vunpack.c.l.b16 %v443
    %v1054 = vunpack.c.l.b16 %v444
    %v1055 = vunpack.c.l.b16 %v445
    %v1056 = vpack.c.b16 %v1053, %v1052
    %v1057 = vpack.c.b16 %v1055, %v1054
    %1060 = vmatprep.subr.bf16.mxu0 0
    %1061 = vmatpush1.bf16.msra.mxu0 %v1056
    %1062 = vmatprep.subr.bf16.mxu0 0
    %1063 = vmatpush1.bf16.msra.mxu0 %v1057
    %1064 = vmatprep.subr.bf16.mxu0 0
    %1065 = vmatpush1.bf16.msra.mxu0 0
    %1066 = vmatprep.subr.bf16.mxu0 0
    %1067 = vmatpush1.bf16.msra.mxu0 0
    %1068 = vmatprep.subr.bf16.mxu0 0
    %1069 = vmatpush1.bf16.msra.mxu0 0
    %1070 = vmatprep.subr.bf16.mxu0 0
    %1071 = vmatpush1.bf16.msra.mxu0 0
    %1072 = vmatprep.subr.bf16.mxu0 0
    %1073 = vmatpush1.bf16.msra.mxu0 0
    %1074 = vmatprep.subr.bf16.mxu0 0
    %1075 = vmatpush1.bf16.msra.mxu0 0
    %1076 = vmatprep.subr.bf16.mxu0 0
    %1077 = vmatpush1.bf16.msra.mxu0 0
    %1078 = vmatprep.subr.bf16.mxu0 0
    %1079 = vmatpush1.bf16.msra.mxu0 0
    %1080 = vmatprep.subr.bf16.mxu0 0
    %1081 = vmatpush1.bf16.msra.mxu0 0
    %1082 = vmatprep.subr.bf16.mxu0 0
    %1083 = vmatpush1.bf16.msra.mxu0 0
    %1084 = vmatprep.subr.bf16.mxu0 0
    %1085 = vmatpush1.bf16.msra.mxu0 0
    %1086 = vmatprep.subr.bf16.mxu0 0
    %1087 = vmatpush1.bf16.msra.mxu0 0
    %1088 = vmatprep.subr.bf16.mxu0 0
    %1089 = vmatpush1.bf16.msra.mxu0 0
    %1090 = vmatprep.subr.bf16.mxu0 0
    %1091 = vmatpush1.bf16.msra.mxu0 0
    %1092 = vmatprep.mubr.bf16.mxu0 0
    %1093 = vmatmul.mubr.bf16.gmra.mrb[0].mxu0 %v461
    %v1094 = vpop.f32.mrb[0].mxu0
    %v1095 = vadd.f32 0.0, %v1094
    %v1096 = vpop.f32.mrb[0].mxu0
    %v1097 = vpop.f32.mrb[0].mxu0
    %v1098 = vpop.f32.mrb[0].mxu0
    %1099 = vdwg.mxu0
    %v1100 = vadd.f32 %v1043, %v1095
    %v1101 = vxor.u32 %v1100, 2147483648
    %v1102 = vmul.f32 %v1101, 1.442695
    %v1103 = vpow.pop %v1102
    %v1104 = vadd.f32 %v1103, 1.0
    %v1105 = vrcp.pop %v1104
    %v1106 = vmul.f32 1.0, %v1105
    %v1107 = vtanh.pop %v1100
    %v1108 = vmul.f32 %v1106, 0.0
    %1110 = vrot.lane.b32.xlu0 %v1107, 64
    %v1111 = vpop.permute.xlu0 %1110
    %v1113 = vmul.f32 %v1106, %v1111
    %1115 = vrot.lane.b32.xlu0 %v1113, 32
    %v1116 = vpop.permute.xlu0 %1115
    %v1118 = vadd.f32 %v1108, %v1116
    %v1119 = vtanh.pop %v1118
    %1121 = vrot.lane.b32.xlu0 %v1119, 64
    %v1122 = vpop.permute.xlu0 %1121
    %v1124 = vmul.f32 %v1106, %v1122
    %v1125 = vpack.c.bf16 %v864, %v864
    %v1127 = vrot.slane %v1125, 2
    %1128 = vrot.lane.b32.xlu0 %v1127, 32
    %v1129 = vpop.permute.xlu0 %1128
    %v1131 = vsel %vm459, %v1129, 0
    %1133 = vmatprep.subr.bf16.mxu0 0
    %1134 = vmatpush1.bf16.msra.mxu0 %v455
    %1135 = vmatprep.subr.bf16.mxu0 0
    %1136 = vmatpush1.bf16.msra.mxu0 %v456
    %1137 = vmatprep.subr.bf16.mxu0 0
    %1138 = vmatpush1.bf16.msra.mxu0 0
    %1139 = vmatprep.subr.bf16.mxu0 0
    %1140 = vmatpush1.bf16.msra.mxu0 0
    %1141 = vmatprep.subr.bf16.mxu0 0
    %1142 = vmatpush1.bf16.msra.mxu0 0
    %1143 = vmatprep.subr.bf16.mxu0 0
    %1144 = vmatpush1.bf16.msra.mxu0 0
    %1145 = vmatprep.subr.bf16.mxu0 0
    %1146 = vmatpush1.bf16.msra.mxu0 0
    %1147 = vmatprep.subr.bf16.mxu0 0
    %1148 = vmatpush1.bf16.msra.mxu0 0
    %1149 = vmatprep.subr.bf16.mxu0 0
    %1150 = vmatpush1.bf16.msra.mxu0 0
    %1151 = vmatprep.subr.bf16.mxu0 0
    %1152 = vmatpush1.bf16.msra.mxu0 0
    %1153 = vmatprep.subr.bf16.mxu0 0
    %1154 = vmatpush1.bf16.msra.mxu0 0
    %1155 = vmatprep.subr.bf16.mxu0 0
    %1156 = vmatpush1.bf16.msra.mxu0 0
    %1157 = vmatprep.subr.bf16.mxu0 0
    %1158 = vmatpush1.bf16.msra.mxu0 0
    %1159 = vmatprep.subr.bf16.mxu0 0
    %1160 = vmatpush1.bf16.msra.mxu0 0
    %1161 = vmatprep.subr.bf16.mxu0 0
    %1162 = vmatpush1.bf16.msra.mxu0 0
    %1163 = vmatprep.subr.bf16.mxu0 0
    %1164 = vmatpush1.bf16.msra.mxu0 0
    %1165 = vmatprep.mubr.bf16.mxu0 0
    %1166 = vmatmul.mubr.bf16.gmra.mrb[0].mxu0 %v1131
    %v1167 = vpop.f32.mrb[0].mxu0
    %v1168 = vadd.f32 0.0, %v1167
    %v1169 = vpop.f32.mrb[0].mxu0
    %v1170 = vpop.f32.mrb[0].mxu0
    %v1171 = vpop.f32.mrb[0].mxu0
    %1172 = vdwg.mxu0
    %v1174 = vrot.slane %v1168, 2
    %v1176 = vadd.f32 %v411, %v1174
    %v1177 = vxor.u32 %v1176, 2147483648
    %v1178 = vmul.f32 %v1177, 1.442695
    %v1179 = vpow.pop %v1178
    %v1180 = vadd.f32 %v1179, 1.0
    %v1181 = vrcp.pop %v1180
    %v1182 = vmul.f32 1.0, %v1181
    %v1183 = vtanh.pop %v1176
    %v1185 = vrot.slane %v858, 6
    %v1187 = vmul.f32 %v1182, %v1185
    %1189 = vrot.lane.b32.xlu0 %v1183, 64
    %v1190 = vpop.permute.xlu0 %1189
    %v1192 = vmul.f32 %v1182, %v1190
    %1194 = vrot.lane.b32.xlu0 %v1192, 32
    %v1195 = vpop.permute.xlu0 %1194
    %v1197 = vadd.f32 %v1187, %v1195
    %v1198 = vtanh.pop %v1197
    %1200 = vrot.lane.b32.xlu0 %v1198, 64
    %v1201 = vpop.permute.xlu0 %1200
    %v1203 = vmul.f32 %v1182, %v1201
    %1204 = vmatprep.subr.bf16.mxu0 %v630
    %1205 = vmatpush1.bf16.msra.mxu0 %v629
    %1206 = vmatprep.subr.bf16.mxu0 %v632
    %1207 = vmatpush1.bf16.msra.mxu0 %v631
    %1208 = vmatprep.subr.bf16.mxu0 0
    %1209 = vmatpush1.bf16.msra.mxu0 0
    %1210 = vmatprep.subr.bf16.mxu0 0
    %1211 = vmatpush1.bf16.msra.mxu0 0
    %1212 = vmatprep.subr.bf16.mxu0 0
    %1213 = vmatpush1.bf16.msra.mxu0 0
    %1214 = vmatprep.subr.bf16.mxu0 0
    %1215 = vmatpush1.bf16.msra.mxu0 0
    %1216 = vmatprep.subr.bf16.mxu0 0
    %1217 = vmatpush1.bf16.msra.mxu0 0
    %1218 = vmatprep.subr.bf16.mxu0 0
    %1219 = vmatpush1.bf16.msra.mxu0 0
    %1220 = vmatprep.subr.bf16.mxu0 0
    %1221 = vmatpush1.bf16.msra.mxu0 0
    %1222 = vmatprep.subr.bf16.mxu0 0
    %1223 = vmatpush1.bf16.msra.mxu0 0
    %1224 = vmatprep.subr.bf16.mxu0 0
    %1225 = vmatpush1.bf16.msra.mxu0 0
    %1226 = vmatprep.subr.bf16.mxu0 0
    %1227 = vmatpush1.bf16.msra.mxu0 0
    %1228 = vmatprep.subr.bf16.mxu0 0
    %1229 = vmatpush1.bf16.msra.mxu0 0
    %1230 = vmatprep.subr.bf16.mxu0 0
    %1231 = vmatpush1.bf16.msra.mxu0 0
    %1232 = vmatprep.subr.bf16.mxu0 0
    %1233 = vmatpush1.bf16.msra.mxu0 0
    %1234 = vmatprep.subr.bf16.mxu0 0
    %1235 = vmatpush1.bf16.msra.mxu0 0
    %1236 = vmatprep.mubr.bf16.mxu0 0
    %1237 = vmatmul.mubr.bf16.gmra.mrb[0].mxu0 %v1131
    %v1238 = vpop.f32.mrb[0].mxu0
    %v1239 = vadd.f32 %v610, %v1238
    %v1240 = vpop.f32.mrb[0].mxu0
    %v1241 = vadd.f32 %v614, %v1240
    %v1242 = vpop.f32.mrb[0].mxu0
    %v1243 = vpop.f32.mrb[0].mxu0
    %1244 = vdwg.mxu0
    %v1245 = vpack.c.bf16 %v977, %v977
    %1247 = vrot.lane.b32.xlu0 %v1245, 64
    %v1248 = vpop.permute.xlu0 %1247
    %v1250 = vsel %vm718, %v1248, 0
    %1252 = vmatprep.subr.bf16.mxu0 %v703
    %1253 = vmatpush1.bf16.msra.mxu0 %v702
    %1254 = vmatprep.subr.bf16.mxu0 %v705
    %1255 = vmatpush1.bf16.msra.mxu0 %v704
    %1256 = vmatprep.subr.bf16.mxu0 %v707
    %1257 = vmatpush1.bf16.msra.mxu0 %v706
    %1258 = vmatprep.subr.bf16.mxu0 %v709
    %1259 = vmatpush1.bf16.msra.mxu0 %v708
    %1260 = vmatprep.subr.bf16.mxu0 0
    %1261 = vmatpush1.bf16.msra.mxu0 0
    %1262 = vmatprep.subr.bf16.mxu0 0
    %1263 = vmatpush1.bf16.msra.mxu0 0
    %1264 = vmatprep.subr.bf16.mxu0 0
    %1265 = vmatpush1.bf16.msra.mxu0 0
    %1266 = vmatprep.subr.bf16.mxu0 0
    %1267 = vmatpush1.bf16.msra.mxu0 0
    %1268 = vmatprep.subr.bf16.mxu0 0
    %1269 = vmatpush1.bf16.msra.mxu0 0
    %1270 = vmatprep.subr.bf16.mxu0 0
    %1271 = vmatpush1.bf16.msra.mxu0 0
    %1272 = vmatprep.subr.bf16.mxu0 0
    %1273 = vmatpush1.bf16.msra.mxu0 0
    %1274 = vmatprep.subr.bf16.mxu0 0
    %1275 = vmatpush1.bf16.msra.mxu0 0
    %1276 = vmatprep.subr.bf16.mxu0 0
    %1277 = vmatpush1.bf16.msra.mxu0 0
    %1278 = vmatprep.subr.bf16.mxu0 0
    %1279 = vmatpush1.bf16.msra.mxu0 0
    %1280 = vmatprep.subr.bf16.mxu0 0
    %1281 = vmatpush1.bf16.msra.mxu0 0
    %1282 = vmatprep.subr.bf16.mxu0 0
    %1283 = vmatpush1.bf16.msra.mxu0 0
    %1284 = vmatprep.mubr.bf16.mxu0 0
    %1285 = vmatmul.mubr.bf16.gmra.mrb[0].mxu0 %v1250
    %v1286 = vpop.f32.mrb[0].mxu0
    %v1287 = vadd.f32 0.0, %v1286
    %v1288 = vpop.f32.mrb[0].mxu0
    %v1289 = vadd.f32 0.0, %v1288
    %v1290 = vpop.f32.mrb[0].mxu0
    %v1291 = vpop.f32.mrb[0].mxu0
    %1292 = vdwg.mxu0
    %v1293 = vadd.f32 %v1239, %v1287
    %v1294 = vadd.f32 %v1241, %v1289
    %v1295 = vxor.u32 %v1293, 2147483648
    %v1296 = vmul.f32 %v1295, 1.442695
    %v1297 = vpow.pop %v1296
    %v1298 = vadd.f32 %v1297, 1.0
    %v1299 = vrcp.pop %v1298
    %v1300 = vmul.f32 1.0, %v1299
    %v1301 = vtanh.pop %v1294
    %v1302 = vxor.u32 %v1294, 2147483648
    %v1303 = vmul.f32 %v1302, 1.442695
    %v1304 = vpow.pop %v1303
    %v1305 = vadd.f32 %v1304, 1.0
    %v1306 = vrcp.pop %v1305
    %v1307 = vmul.f32 1.0, %v1306
    %v1308 = vmul.f32 %v1300, %v975
    %v1309 = vmul.f32 %v1300, %v1301
    %1311 = vrot.lane.b32.xlu0 %v1309, 64
    %v1312 = vpop.permute.xlu0 %1311
    %v1314 = vadd.f32 %v1308, %v1312
    %v1315 = vtanh.pop %v1314
    %v1316 = vmul.f32 %v1307, %v1315
    %1317 = vmatprep.subr.bf16.mxu0 0
    %1318 = vmatpush1.bf16.msra.mxu0 %v1000
    %1319 = vmatprep.subr.bf16.mxu0 0
    %1320 = vmatpush1.bf16.msra.mxu0 %v1001
    %1321 = vmatprep.subr.bf16.mxu0 0
    %1322 = vmatpush1.bf16.msra.mxu0 %v1002
    %1323 = vmatprep.subr.bf16.mxu0 0
    %1324 = vmatpush1.bf16.msra.mxu0 %v1003
    %1325 = vmatprep.subr.bf16.mxu0 0
    %1326 = vmatpush1.bf16.msra.mxu0 0
    %1327 = vmatprep.subr.bf16.mxu0 0
    %1328 = vmatpush1.bf16.msra.mxu0 0
    %1329 = vmatprep.subr.bf16.mxu0 0
    %1330 = vmatpush1.bf16.msra.mxu0 0
    %1331 = vmatprep.subr.bf16.mxu0 0
    %1332 = vmatpush1.bf16.msra.mxu0 0
    %1333 = vmatprep.subr.bf16.mxu0 0
    %1334 = vmatpush1.bf16.msra.mxu0 0
    %1335 = vmatprep.subr.bf16.mxu0 0
    %1336 = vmatpush1.bf16.msra.mxu0 0
    %1337 = vmatprep.subr.bf16.mxu0 0
    %1338 = vmatpush1.bf16.msra.mxu0 0
    %1339 = vmatprep.subr.bf16.mxu0 0
    %1340 = vmatpush1.bf16.msra.mxu0 0
    %1341 = vmatprep.subr.bf16.mxu0 0
    %1342 = vmatpush1.bf16.msra.mxu0 0
    %1343 = vmatprep.subr.bf16.mxu0 0
    %1344 = vmatpush1.bf16.msra.mxu0 0
    %1345 = vmatprep.subr.bf16.mxu0 0
    %1346 = vmatpush1.bf16.msra.mxu0 0
    %1347 = vmatprep.subr.bf16.mxu0 0
    %1348 = vmatpush1.bf16.msra.mxu0 0
    %1349 = vmatprep.mubr.bf16.mxu0 0
    %1350 = vmatmul.mubr.bf16.gmra.mrb[0].mxu0 %v1250
    %v1351 = vpop.f32.mrb[0].mxu0
    %v1352 = vadd.f32 %v982, %v1351
    %v1353 = vpop.f32.mrb[0].mxu0
    %v1354 = vpop.f32.mrb[0].mxu0
    %v1355 = vpop.f32.mrb[0].mxu0
    %1356 = vdwg.mxu0
    %v1357 = vpack.c.bf16 %v1124, %v1124
    %1359 = vrot.lane.b32.xlu0 %v1357, 32
    %v1360 = vpop.permute.xlu0 %1359
    %v1362 = vsel %vm459, %v1360, 0
    %1364 = vmatprep.subr.bf16.mxu0 0
    %1365 = vmatpush1.bf16.msra.mxu0 %v1056
    %1366 = vmatprep.subr.bf16.mxu0 0
    %1367 = vmatpush1.bf16.msra.mxu0 %v1057
    %1368 = vmatprep.subr.bf16.mxu0 0
    %1369 = vmatpush1.bf16.msra.mxu0 0
    %1370 = vmatprep.subr.bf16.mxu0 0
    %1371 = vmatpush1.bf16.msra.mxu0 0
    %1372 = vmatprep.subr.bf16.mxu0 0
    %1373 = vmatpush1.bf16.msra.mxu0 0
    %1374 = vmatprep.subr.bf16.mxu0 0
    %1375 = vmatpush1.bf16.msra.mxu0 0
    %1376 = vmatprep.subr.bf16.mxu0 0
    %1377 = vmatpush1.bf16.msra.mxu0 0
    %1378 = vmatprep.subr.bf16.mxu0 0
    %1379 = vmatpush1.bf16.msra.mxu0 0
    %1380 = vmatprep.subr.bf16.mxu0 0
    %1381 = vmatpush1.bf16.msra.mxu0 0
    %1382 = vmatprep.subr.bf16.mxu0 0
    %1383 = vmatpush1.bf16.msra.mxu0 0
    %1384 = vmatprep.subr.bf16.mxu0 0
    %1385 = vmatpush1.bf16.msra.mxu0 0
    %1386 = vmatprep.subr.bf16.mxu0 0
    %1387 = vmatpush1.bf16.msra.mxu0 0
    %1388 = vmatprep.subr.bf16.mxu0 0
    %1389 = vmatpush1.bf16.msra.mxu0 0
    %1390 = vmatprep.subr.bf16.mxu0 0
    %1391 = vmatpush1.bf16.msra.mxu0 0
    %1392 = vmatprep.subr.bf16.mxu0 0
    %1393 = vmatpush1.bf16.msra.mxu0 0
    %1394 = vmatprep.subr.bf16.mxu0 0
    %1395 = vmatpush1.bf16.msra.mxu0 0
    %1396 = vmatprep.mubr.bf16.mxu0 0
    %1397 = vmatmul.mubr.bf16.gmra.mrb[0].mxu0 %v1362
    %v1398 = vpop.f32.mrb[0].mxu0
    %v1399 = vadd.f32 0.0, %v1398
    %v1400 = vpop.f32.mrb[0].mxu0
    %v1401 = vpop.f32.mrb[0].mxu0
    %v1402 = vpop.f32.mrb[0].mxu0
    %1403 = vdwg.mxu0
    %v1404 = vadd.f32 %v1352, %v1399
    %v1405 = vxor.u32 %v1404, 2147483648
    %v1406 = vmul.f32 %v1405, 1.442695
    %v1407 = vpow.pop %v1406
    %v1408 = vadd.f32 %v1407, 1.0
    %v1409 = vrcp.pop %v1408
    %v1410 = vmul.f32 1.0, %v1409
    %v1411 = vtanh.pop %v1404
    %v1412 = vmul.f32 %v1410, %v1118
    %1414 = vrot.lane.b32.xlu0 %v1411, 64
    %v1415 = vpop.permute.xlu0 %1414
    %v1417 = vmul.f32 %v1410, %v1415
    %1419 = vrot.lane.b32.xlu0 %v1417, 32
    %v1420 = vpop.permute.xlu0 %1419
    %v1422 = vadd.f32 %v1412, %v1420
    %v1423 = vtanh.pop %v1422
    %1425 = vrot.lane.b32.xlu0 %v1423, 64
    %v1426 = vpop.permute.xlu0 %1425
    %v1428 = vmul.f32 %v1410, %v1426
    %v1429 = vpack.c.bf16 %v1203, %v1203
    %v1431 = vrot.slane %v1429, 3
    %1432 = vrot.lane.b32.xlu0 %v1431, 32
    %v1433 = vpop.permute.xlu0 %1432
    %v1435 = vsel %vm459, %v1433, 0
    %1437 = vmatprep.subr.bf16.mxu0 0
    %1438 = vmatpush1.bf16.msra.mxu0 %v455
    %1439 = vmatprep.subr.bf16.mxu0 0
    %1440 = vmatpush1.bf16.msra.mxu0 %v456
    %1441 = vmatprep.subr.bf16.mxu0 0
    %1442 = vmatpush1.bf16.msra.mxu0 0
    %1443 = vmatprep.subr.bf16.mxu0 0
    %1444 = vmatpush1.bf16.msra.mxu0 0
    %1445 = vmatprep.subr.bf16.mxu0 0
    %1446 = vmatpush1.bf16.msra.mxu0 0
    %1447 = vmatprep.subr.bf16.mxu0 0
    %1448 = vmatpush1.bf16.msra.mxu0 0
    %1449 = vmatprep.subr.bf16.mxu0 0
    %1450 = vmatpush1.bf16.msra.mxu0 0
    %1451 = vmatprep.subr.bf16.mxu0 0
    %1452 = vmatpush1.bf16.msra.mxu0 0
    %1453 = vmatprep.subr.bf16.mxu0 0
    %1454 = vmatpush1.bf16.msra.mxu0 0
    %1455 = vmatprep.subr.bf16.mxu0 0
    %1456 = vmatpush1.bf16.msra.mxu0 0
    %1457 = vmatprep.subr.bf16.mxu0 0
    %1458 = vmatpush1.bf16.msra.mxu0 0
    %1459 = vmatprep.subr.bf16.mxu0 0
    %1460 = vmatpush1.bf16.msra.mxu0 0
    %1461 = vmatprep.subr.bf16.mxu0 0
    %1462 = vmatpush1.bf16.msra.mxu0 0
    %1463 = vmatprep.subr.bf16.mxu0 0
    %1464 = vmatpush1.bf16.msra.mxu0 0
    %1465 = vmatprep.subr.bf16.mxu0 0
    %1466 = vmatpush1.bf16.msra.mxu0 0
    %1467 = vmatprep.subr.bf16.mxu0 0
    %1468 = vmatpush1.bf16.msra.mxu0 0
    %1469 = vmatprep.mubr.bf16.mxu0 0
    %1470 = vmatmul.mubr.bf16.gmra.mrb[0].mxu0 %v1435
    %v1471 = vpop.f32.mrb[0].mxu0
    %v1472 = vadd.f32 0.0, %v1471
    %v1473 = vpop.f32.mrb[0].mxu0
    %v1474 = vpop.f32.mrb[0].mxu0
    %v1475 = vpop.f32.mrb[0].mxu0
    %1476 = vdwg.mxu0
    %v1477 = vadd.f32 %v414, %v1472
    %v1478 = vxor.u32 %v1477, 2147483648
    %v1479 = vmul.f32 %v1478, 1.442695
    %v1480 = vpow.pop %v1479
    %v1481 = vadd.f32 %v1480, 1.0
    %v1482 = vrcp.pop %v1481
    %v1483 = vmul.f32 1.0, %v1482
    %v1484 = vtanh.pop %v1477
    %v1486 = vrot.slane %v1197, 6
    %v1488 = vmul.f32 %v1483, %v1486
    %1490 = vrot.lane.b32.xlu0 %v1484, 64
    %v1491 = vpop.permute.xlu0 %1490
    %v1493 = vmul.f32 %v1483, %v1491
    %1495 = vrot.lane.b32.xlu0 %v1493, 32
    %v1496 = vpop.permute.xlu0 %1495
    %v1498 = vadd.f32 %v1488, %v1496
    %v1499 = vtanh.pop %v1498
    %1501 = vrot.lane.b32.xlu0 %v1499, 64
    %v1502 = vpop.permute.xlu0 %1501
    %v1504 = vmul.f32 %v1483, %v1502
    %1505 = vmatprep.subr.bf16.mxu0 %v630
    %1506 = vmatpush1.bf16.msra.mxu0 %v629
    %1507 = vmatprep.subr.bf16.mxu0 %v632
    %1508 = vmatpush1.bf16.msra.mxu0 %v631
    %1509 = vmatprep.subr.bf16.mxu0 0
    %1510 = vmatpush1.bf16.msra.mxu0 0
    %1511 = vmatprep.subr.bf16.mxu0 0
    %1512 = vmatpush1.bf16.msra.mxu0 0
    %1513 = vmatprep.subr.bf16.mxu0 0
    %1514 = vmatpush1.bf16.msra.mxu0 0
    %1515 = vmatprep.subr.bf16.mxu0 0
    %1516 = vmatpush1.bf16.msra.mxu0 0
    %1517 = vmatprep.subr.bf16.mxu0 0
    %1518 = vmatpush1.bf16.msra.mxu0 0
    %1519 = vmatprep.subr.bf16.mxu0 0
    %1520 = vmatpush1.bf16.msra.mxu0 0
    %1521 = vmatprep.subr.bf16.mxu0 0
    %1522 = vmatpush1.bf16.msra.mxu0 0
    %1523 = vmatprep.subr.bf16.mxu0 0
    %1524 = vmatpush1.bf16.msra.mxu0 0
    %1525 = vmatprep.subr.bf16.mxu0 0
    %1526 = vmatpush1.bf16.msra.mxu0 0
    %1527 = vmatprep.subr.bf16.mxu0 0
    %1528 = vmatpush1.bf16.msra.mxu0 0
    %1529 = vmatprep.subr.bf16.mxu0 0
    %1530 = vmatpush1.bf16.msra.mxu0 0
    %1531 = vmatprep.subr.bf16.mxu0 0
    %1532 = vmatpush1.bf16.msra.mxu0 0
    %1533 = vmatprep.subr.bf16.mxu0 0
    %1534 = vmatpush1.bf16.msra.mxu0 0
    %1535 = vmatprep.subr.bf16.mxu0 0
    %1536 = vmatpush1.bf16.msra.mxu0 0
    %1537 = vmatprep.mubr.bf16.mxu0 0
    %1538 = vmatmul.mubr.bf16.gmra.mrb[0].mxu0 %v1435
    %v1539 = vpop.f32.mrb[0].mxu0
    %v1540 = vadd.f32 %v610, %v1539
    %v1541 = vpop.f32.mrb[0].mxu0
    %v1542 = vadd.f32 %v614, %v1541
    %v1543 = vpop.f32.mrb[0].mxu0
    %v1544 = vpop.f32.mrb[0].mxu0
    %1545 = vdwg.mxu0
    %v1546 = vpack.c.bf16 %v1316, %v1316
    %1548 = vrot.lane.b32.xlu0 %v1546, 64
    %v1549 = vpop.permute.xlu0 %1548
    %v1551 = vsel %vm718, %v1549, 0
    %1553 = vmatprep.subr.bf16.mxu0 %v703
    %1554 = vmatpush1.bf16.msra.mxu0 %v702
    %1555 = vmatprep.subr.bf16.mxu0 %v705
    %1556 = vmatpush1.bf16.msra.mxu0 %v704
    %1557 = vmatprep.subr.bf16.mxu0 %v707
    %1558 = vmatpush1.bf16.msra.mxu0 %v706
    %1559 = vmatprep.subr.bf16.mxu0 %v709
    %1560 = vmatpush1.bf16.msra.mxu0 %v708
    %1561 = vmatprep.subr.bf16.mxu0 0
    %1562 = vmatpush1.bf16.msra.mxu0 0
    %1563 = vmatprep.subr.bf16.mxu0 0
    %1564 = vmatpush1.bf16.msra.mxu0 0
    %1565 = vmatprep.subr.bf16.mxu0 0
    %1566 = vmatpush1.bf16.msra.mxu0 0
    %1567 = vmatprep.subr.bf16.mxu0 0
    %1568 = vmatpush1.bf16.msra.mxu0 0
    %1569 = vmatprep.subr.bf16.mxu0 0
    %1570 = vmatpush1.bf16.msra.mxu0 0
    %1571 = vmatprep.subr.bf16.mxu0 0
    %1572 = vmatpush1.bf16.msra.mxu0 0
    %1573 = vmatprep.subr.bf16.mxu0 0
    %1574 = vmatpush1.bf16.msra.mxu0 0
    %1575 = vmatprep.subr.bf16.mxu0 0
    %1576 = vmatpush1.bf16.msra.mxu0 0
    %1577 = vmatprep.subr.bf16.mxu0 0
    %1578 = vmatpush1.bf16.msra.mxu0 0
    %1579 = vmatprep.subr.bf16.mxu0 0
    %1580 = vmatpush1.bf16.msra.mxu0 0
    %1581 = vmatprep.subr.bf16.mxu0 0
    %1582 = vmatpush1.bf16.msra.mxu0 0
    %1583 = vmatprep.subr.bf16.mxu0 0
    %1584 = vmatpush1.bf16.msra.mxu0 0
    %1585 = vmatprep.mubr.bf16.mxu0 0
    %1586 = vmatmul.mubr.bf16.gmra.mrb[0].mxu0 %v1551
    %v1587 = vpop.f32.mrb[0].mxu0
    %v1588 = vadd.f32 0.0, %v1587
    %v1589 = vpop.f32.mrb[0].mxu0
    %v1590 = vadd.f32 0.0, %v1589
    %v1591 = vpop.f32.mrb[0].mxu0
    %v1592 = vpop.f32.mrb[0].mxu0
    %1593 = vdwg.mxu0
    %v1594 = vadd.f32 %v1540, %v1588
    %v1595 = vadd.f32 %v1542, %v1590
    %v1596 = vxor.u32 %v1594, 2147483648
    %v1597 = vmul.f32 %v1596, 1.442695
    %v1598 = vpow.pop %v1597
    %v1599 = vadd.f32 %v1598, 1.0
    %v1600 = vrcp.pop %v1599
    %v1601 = vmul.f32 1.0, %v1600
    %v1602 = vtanh.pop %v1595
    %v1603 = vxor.u32 %v1595, 2147483648
    %v1604 = vmul.f32 %v1603, 1.442695
    %v1605 = vpow.pop %v1604
    %v1606 = vadd.f32 %v1605, 1.0
    %v1607 = vrcp.pop %v1606
    %v1608 = vmul.f32 1.0, %v1607
    %v1609 = vmul.f32 %v1601, %v1314
    %v1610 = vmul.f32 %v1601, %v1602
    %1612 = vrot.lane.b32.xlu0 %v1610, 64
    %v1613 = vpop.permute.xlu0 %1612
    %v1615 = vadd.f32 %v1609, %v1613
    %v1616 = vtanh.pop %v1615
    %v1617 = vmul.f32 %v1608, %v1616
    %1618 = vmatprep.subr.bf16.mxu0 0
    %1619 = vmatpush1.bf16.msra.mxu0 %v1000
    %1620 = vmatprep.subr.bf16.mxu0 0
    %1621 = vmatpush1.bf16.msra.mxu0 %v1001
    %1622 = vmatprep.subr.bf16.mxu0 0
    %1623 = vmatpush1.bf16.msra.mxu0 %v1002
    %1624 = vmatprep.subr.bf16.mxu0 0
    %1625 = vmatpush1.bf16.msra.mxu0 %v1003
    %1626 = vmatprep.subr.bf16.mxu0 0
    %1627 = vmatpush1.bf16.msra.mxu0 0
    %1628 = vmatprep.subr.bf16.mxu0 0
    %1629 = vmatpush1.bf16.msra.mxu0 0
    %1630 = vmatprep.subr.bf16.mxu0 0
    %1631 = vmatpush1.bf16.msra.mxu0 0
    %1632 = vmatprep.subr.bf16.mxu0 0
    %1633 = vmatpush1.bf16.msra.mxu0 0
    %1634 = vmatprep.subr.bf16.mxu0 0
    %1635 = vmatpush1.bf16.msra.mxu0 0
    %1636 = vmatprep.subr.bf16.mxu0 0
    %1637 = vmatpush1.bf16.msra.mxu0 0
    %1638 = vmatprep.subr.bf16.mxu0 0
    %1639 = vmatpush1.bf16.msra.mxu0 0
    %1640 = vmatprep.subr.bf16.mxu0 0
    %1641 = vmatpush1.bf16.msra.mxu0 0
    %1642 = vmatprep.subr.bf16.mxu0 0
    %1643 = vmatpush1.bf16.msra.mxu0 0
    %1644 = vmatprep.subr.bf16.mxu0 0
    %1645 = vmatpush1.bf16.msra.mxu0 0
    %1646 = vmatprep.subr.bf16.mxu0 0
    %1647 = vmatpush1.bf16.msra.mxu0 0
    %1648 = vmatprep.subr.bf16.mxu0 0
    %1649 = vmatpush1.bf16.msra.mxu0 0
    %1650 = vmatprep.mubr.bf16.mxu0 0
    %1651 = vmatmul.mubr.bf16.gmra.mrb[0].mxu0 %v1551
    %v1652 = vpop.f32.mrb[0].mxu0
    %v1653 = vadd.f32 %v982, %v1652
    %v1654 = vpop.f32.mrb[0].mxu0
    %v1655 = vpop.f32.mrb[0].mxu0
    %v1656 = vpop.f32.mrb[0].mxu0
    %1657 = vdwg.mxu0
    %v1658 = vpack.c.bf16 %v1428, %v1428
    %1660 = vrot.lane.b32.xlu0 %v1658, 32
    %v1661 = vpop.permute.xlu0 %1660
    %v1663 = vsel %vm459, %v1661, 0
    %1665 = vmatprep.subr.bf16.mxu0 0
    %1666 = vmatpush1.bf16.msra.mxu0 %v1056
    %1667 = vmatprep.subr.bf16.mxu0 0
    %1668 = vmatpush1.bf16.msra.mxu0 %v1057
    %1669 = vmatprep.subr.bf16.mxu0 0
    %1670 = vmatpush1.bf16.msra.mxu0 0
    %1671 = vmatprep.subr.bf16.mxu0 0
    %1672 = vmatpush1.bf16.msra.mxu0 0
    %1673 = vmatprep.subr.bf16.mxu0 0
    %1674 = vmatpush1.bf16.msra.mxu0 0
    %1675 = vmatprep.subr.bf16.mxu0 0
    %1676 = vmatpush1.bf16.msra.mxu0 0
    %1677 = vmatprep.subr.bf16.mxu0 0
    %1678 = vmatpush1.bf16.msra.mxu0 0
    %1679 = vmatprep.subr.bf16.mxu0 0
    %1680 = vmatpush1.bf16.msra.mxu0 0
    %1681 = vmatprep.subr.bf16.mxu0 0
    %1682 = vmatpush1.bf16.msra.mxu0 0
    %1683 = vmatprep.subr.bf16.mxu0 0
    %1684 = vmatpush1.bf16.msra.mxu0 0
    %1685 = vmatprep.subr.bf16.mxu0 0
    %1686 = vmatpush1.bf16.msra.mxu0 0
    %1687 = vmatprep.subr.bf16.mxu0 0
    %1688 = vmatpush1.bf16.msra.mxu0 0
    %1689 = vmatprep.subr.bf16.mxu0 0
    %1690 = vmatpush1.bf16.msra.mxu0 0
    %1691 = vmatprep.subr.bf16.mxu0 0
    %1692 = vmatpush1.bf16.msra.mxu0 0
    %1693 = vmatprep.subr.bf16.mxu0 0
    %1694 = vmatpush1.bf16.msra.mxu0 0
    %1695 = vmatprep.subr.bf16.mxu0 0
    %1696 = vmatpush1.bf16.msra.mxu0 0
    %1697 = vmatprep.mubr.bf16.mxu0 0
    %1698 = vmatmul.mubr.bf16.gmra.mrb[0].mxu0 %v1663
    %v1699 = vpop.f32.mrb[0].mxu0
    %v1700 = vadd.f32 0.0, %v1699
    %v1701 = vpop.f32.mrb[0].mxu0
    %v1702 = vpop.f32.mrb[0].mxu0
    %v1703 = vpop.f32.mrb[0].mxu0
    %1704 = vdwg.mxu0
    %v1705 = vadd.f32 %v1653, %v1700
    %v1706 = vxor.u32 %v1705, 2147483648
    %v1707 = vmul.f32 %v1706, 1.442695
    %v1708 = vpow.pop %v1707
    %v1709 = vadd.f32 %v1708, 1.0
    %v1710 = vrcp.pop %v1709
    %v1711 = vmul.f32 1.0, %v1710
    %v1712 = vtanh.pop %v1705
    %v1713 = vmul.f32 %v1711, %v1422
    %1715 = vrot.lane.b32.xlu0 %v1712, 64
    %v1716 = vpop.permute.xlu0 %1715
    %v1718 = vmul.f32 %v1711, %v1716
    %1720 = vrot.lane.b32.xlu0 %v1718, 32
    %v1721 = vpop.permute.xlu0 %1720
    %v1723 = vadd.f32 %v1713, %v1721
    %v1724 = vtanh.pop %v1723
    %1726 = vrot.lane.b32.xlu0 %v1724, 64
    %v1727 = vpop.permute.xlu0 %1726
    %v1729 = vmul.f32 %v1711, %v1727
    %v1730 = vpack.c.bf16 %v1504, %v1504
    %1732 = vrot.lane.b32.xlu0 %v1730, 32
    %v1733 = vpop.permute.xlu0 %1732
    %v1735 = vsel %vm459, %v1733, 0
    %1737 = vmatprep.subr.bf16.mxu0 0
    %1738 = vmatpush1.bf16.msra.mxu0 %v455
    %1739 = vmatprep.subr.bf16.mxu0 0
    %1740 = vmatpush1.bf16.msra.mxu0 %v456
    %1741 = vmatprep.subr.bf16.mxu0 0
    %1742 = vmatpush1.bf16.msra.mxu0 0
    %1743 = vmatprep.subr.bf16.mxu0 0
    %1744 = vmatpush1.bf16.msra.mxu0 0
    %1745 = vmatprep.subr.bf16.mxu0 0
    %1746 = vmatpush1.bf16.msra.mxu0 0
    %1747 = vmatprep.subr.bf16.mxu0 0
    %1748 = vmatpush1.bf16.msra.mxu0 0
    %1749 = vmatprep.subr.bf16.mxu0 0
    %1750 = vmatpush1.bf16.msra.mxu0 0
    %1751 = vmatprep.subr.bf16.mxu0 0
    %1752 = vmatpush1.bf16.msra.mxu0 0
    %1753 = vmatprep.subr.bf16.mxu0 0
    %1754 = vmatpush1.bf16.msra.mxu0 0
    %1755 = vmatprep.subr.bf16.mxu0 0
    %1756 = vmatpush1.bf16.msra.mxu0 0
    %1757 = vmatprep.subr.bf16.mxu0 0
    %1758 = vmatpush1.bf16.msra.mxu0 0
    %1759 = vmatprep.subr.bf16.mxu0 0
    %1760 = vmatpush1.bf16.msra.mxu0 0
    %1761 = vmatprep.subr.bf16.mxu0 0
    %1762 = vmatpush1.bf16.msra.mxu0 0
    %1763 = vmatprep.subr.bf16.mxu0 0
    %1764 = vmatpush1.bf16.msra.mxu0 0
    %1765 = vmatprep.subr.bf16.mxu0 0
    %1766 = vmatpush1.bf16.msra.mxu0 0
    %1767 = vmatprep.subr.bf16.mxu0 0
    %1768 = vmatpush1.bf16.msra.mxu0 0
    %1769 = vmatprep.mubr.bf16.mxu0 0
    %1770 = vmatmul.mubr.bf16.gmra.mrb[0].mxu0 %v1735
    %v1771 = vpop.f32.mrb[0].mxu0
    %v1772 = vadd.f32 0.0, %v1771
    %v1773 = vpop.f32.mrb[0].mxu0
    %v1774 = vpop.f32.mrb[0].mxu0
    %v1775 = vpop.f32.mrb[0].mxu0
    %1776 = vdwg.mxu0
    %v1778 = vrot.slane %v1772, 6
    %v1780 = vadd.f32 %v414, %v1778
    %v1781 = vxor.u32 %v1780, 2147483648
    %v1782 = vmul.f32 %v1781, 1.442695
    %v1783 = vpow.pop %v1782
    %v1784 = vadd.f32 %v1783, 1.0
    %v1785 = vrcp.pop %v1784
    %v1786 = vmul.f32 1.0, %v1785
    %v1787 = vtanh.pop %v1780
    %v1789 = vrot.slane %v1498, 6
    %v1791 = vmul.f32 %v1786, %v1789
    %1793 = vrot.lane.b32.xlu0 %v1787, 64
    %v1794 = vpop.permute.xlu0 %1793
    %v1796 = vmul.f32 %v1786, %v1794
    %1798 = vrot.lane.b32.xlu0 %v1796, 32
    %v1799 = vpop.permute.xlu0 %1798
    %v1801 = vadd.f32 %v1791, %v1799
    %v1802 = vtanh.pop %v1801
    %1804 = vrot.lane.b32.xlu0 %v1802, 64
    %v1805 = vpop.permute.xlu0 %1804
    %v1807 = vmul.f32 %v1786, %v1805
    %1808 = vmatprep.subr.bf16.mxu0 %v630
    %1809 = vmatpush1.bf16.msra.mxu0 %v629
    %1810 = vmatprep.subr.bf16.mxu0 %v632
    %1811 = vmatpush1.bf16.msra.mxu0 %v631
    %1812 = vmatprep.subr.bf16.mxu0 0
    %1813 = vmatpush1.bf16.msra.mxu0 0
    %1814 = vmatprep.subr.bf16.mxu0 0
    %1815 = vmatpush1.bf16.msra.mxu0 0
    %1816 = vmatprep.subr.bf16.mxu0 0
    %1817 = vmatpush1.bf16.msra.mxu0 0
    %1818 = vmatprep.subr.bf16.mxu0 0
    %1819 = vmatpush1.bf16.msra.mxu0 0
    %1820 = vmatprep.subr.bf16.mxu0 0
    %1821 = vmatpush1.bf16.msra.mxu0 0
    %1822 = vmatprep.subr.bf16.mxu0 0
    %1823 = vmatpush1.bf16.msra.mxu0 0
    %1824 = vmatprep.subr.bf16.mxu0 0
    %1825 = vmatpush1.bf16.msra.mxu0 0
    %1826 = vmatprep.subr.bf16.mxu0 0
    %1827 = vmatpush1.bf16.msra.mxu0 0
    %1828 = vmatprep.subr.bf16.mxu0 0
    %1829 = vmatpush1.bf16.msra.mxu0 0
    %1830 = vmatprep.subr.bf16.mxu0 0
    %1831 = vmatpush1.bf16.msra.mxu0 0
    %1832 = vmatprep.subr.bf16.mxu0 0
    %1833 = vmatpush1.bf16.msra.mxu0 0
    %1834 = vmatprep.subr.bf16.mxu0 0
    %1835 = vmatpush1.bf16.msra.mxu0 0
    %1836 = vmatprep.subr.bf16.mxu0 0
    %1837 = vmatpush1.bf16.msra.mxu0 0
    %1838 = vmatprep.subr.bf16.mxu0 0
    %1839 = vmatpush1.bf16.msra.mxu0 0
    %1840 = vmatprep.mubr.bf16.mxu0 0
    %1841 = vmatmul.mubr.bf16.gmra.mrb[0].mxu0 %v1735
    %v1842 = vpop.f32.mrb[0].mxu0
    %v1843 = vadd.f32 %v610, %v1842
    %v1844 = vpop.f32.mrb[0].mxu0
    %v1845 = vadd.f32 %v614, %v1844
    %v1846 = vpop.f32.mrb[0].mxu0
    %v1847 = vpop.f32.mrb[0].mxu0
    %1848 = vdwg.mxu0
    %v1849 = vpack.c.bf16 %v1617, %v1617
    %1851 = vrot.lane.b32.xlu0 %v1849, 64
    %v1852 = vpop.permute.xlu0 %1851
    %v1854 = vsel %vm718, %v1852, 0
    %1856 = vmatprep.subr.bf16.mxu0 %v703
    %1857 = vmatpush1.bf16.msra.mxu0 %v702
    %1858 = vmatprep.subr.bf16.mxu0 %v705
    %1859 = vmatpush1.bf16.msra.mxu0 %v704
    %1860 = vmatprep.subr.bf16.mxu0 %v707
    %1861 = vmatpush1.bf16.msra.mxu0 %v706
    %1862 = vmatprep.subr.bf16.mxu0 %v709
    %1863 = vmatpush1.bf16.msra.mxu0 %v708
    %1864 = vmatprep.subr.bf16.mxu0 0
    %1865 = vmatpush1.bf16.msra.mxu0 0
    %1866 = vmatprep.subr.bf16.mxu0 0
    %1867 = vmatpush1.bf16.msra.mxu0 0
    %1868 = vmatprep.subr.bf16.mxu0 0
    %1869 = vmatpush1.bf16.msra.mxu0 0
    %1870 = vmatprep.subr.bf16.mxu0 0
    %1871 = vmatpush1.bf16.msra.mxu0 0
    %1872 = vmatprep.subr.bf16.mxu0 0
    %1873 = vmatpush1.bf16.msra.mxu0 0
    %1874 = vmatprep.subr.bf16.mxu0 0
    %1875 = vmatpush1.bf16.msra.mxu0 0
    %1876 = vmatprep.subr.bf16.mxu0 0
    %1877 = vmatpush1.bf16.msra.mxu0 0
    %1878 = vmatprep.subr.bf16.mxu0 0
    %1879 = vmatpush1.bf16.msra.mxu0 0
    %1880 = vmatprep.subr.bf16.mxu0 0
    %1881 = vmatpush1.bf16.msra.mxu0 0
    %1882 = vmatprep.subr.bf16.mxu0 0
    %1883 = vmatpush1.bf16.msra.mxu0 0
    %1884 = vmatprep.subr.bf16.mxu0 0
    %1885 = vmatpush1.bf16.msra.mxu0 0
    %1886 = vmatprep.subr.bf16.mxu0 0
    %1887 = vmatpush1.bf16.msra.mxu0 0
    %1888 = vmatprep.mubr.bf16.mxu0 0
    %1889 = vmatmul.mubr.bf16.gmra.mrb[0].mxu0 %v1854
    %v1890 = vpop.f32.mrb[0].mxu0
    %v1891 = vadd.f32 0.0, %v1890
    %v1892 = vpop.f32.mrb[0].mxu0
    %v1893 = vadd.f32 0.0, %v1892
    %v1894 = vpop.f32.mrb[0].mxu0
    %v1895 = vpop.f32.mrb[0].mxu0
    %1896 = vdwg.mxu0
    %v1897 = vadd.f32 %v1843, %v1891
    %v1898 = vadd.f32 %v1845, %v1893
    %v1899 = vxor.u32 %v1897, 2147483648
    %v1900 = vmul.f32 %v1899, 1.442695
    %v1901 = vpow.pop %v1900
    %v1902 = vadd.f32 %v1901, 1.0
    %v1903 = vrcp.pop %v1902
    %v1904 = vmul.f32 1.0, %v1903
    %v1905 = vtanh.pop %v1898
    %v1906 = vxor.u32 %v1898, 2147483648
    %v1907 = vmul.f32 %v1906, 1.442695
    %v1908 = vpow.pop %v1907
    %v1909 = vadd.f32 %v1908, 1.0
    %v1910 = vrcp.pop %v1909
    %v1911 = vmul.f32 1.0, %v1910
    %v1912 = vmul.f32 %v1904, %v1615
    %v1913 = vmul.f32 %v1904, %v1905
    %1915 = vrot.lane.b32.xlu0 %v1913, 64
    %v1916 = vpop.permute.xlu0 %1915
    %v1918 = vadd.f32 %v1912, %v1916
    %v1919 = vtanh.pop %v1918
    %v1920 = vmul.f32 %v1911, %v1919
    %1921 = vmatprep.subr.bf16.mxu0 0
    %1922 = vmatpush1.bf16.msra.mxu0 %v1000
    %1923 = vmatprep.subr.bf16.mxu0 0
    %1924 = vmatpush1.bf16.msra.mxu0 %v1001
    %1925 = vmatprep.subr.bf16.mxu0 0
    %1926 = vmatpush1.bf16.msra.mxu0 %v1002
    %1927 = vmatprep.subr.bf16.mxu0 0
    %1928 = vmatpush1.bf16.msra.mxu0 %v1003
    %1929 = vmatprep.subr.bf16.mxu0 0
    %1930 = vmatpush1.bf16.msra.mxu0 0
    %1931 = vmatprep.subr.bf16.mxu0 0
    %1932 = vmatpush1.bf16.msra.mxu0 0
    %1933 = vmatprep.subr.bf16.mxu0 0
    %1934 = vmatpush1.bf16.msra.mxu0 0
    %1935 = vmatprep.subr.bf16.mxu0 0
    %1936 = vmatpush1.bf16.msra.mxu0 0
    %1937 = vmatprep.subr.bf16.mxu0 0
    %1938 = vmatpush1.bf16.msra.mxu0 0
    %1939 = vmatprep.subr.bf16.mxu0 0
    %1940 = vmatpush1.bf16.msra.mxu0 0
    %1941 = vmatprep.subr.bf16.mxu0 0
    %1942 = vmatpush1.bf16.msra.mxu0 0
    %1943 = vmatprep.subr.bf16.mxu0 0
    %1944 = vmatpush1.bf16.msra.mxu0 0
    %1945 = vmatprep.subr.bf16.mxu0 0
    %1946 = vmatpush1.bf16.msra.mxu0 0
    %1947 = vmatprep.subr.bf16.mxu0 0
    %1948 = vmatpush1.bf16.msra.mxu0 0
    %1949 = vmatprep.subr.bf16.mxu0 0
    %1950 = vmatpush1.bf16.msra.mxu0 0
    %1951 = vmatprep.subr.bf16.mxu0 0
    %1952 = vmatpush1.bf16.msra.mxu0 0
    %1953 = vmatprep.mubr.bf16.mxu0 0
    %1954 = vmatmul.mubr.bf16.gmra.mrb[0].mxu0 %v1854
    %v1955 = vpop.f32.mrb[0].mxu0
    %v1956 = vadd.f32 %v982, %v1955
    %v1957 = vpop.f32.mrb[0].mxu0
    %v1958 = vpop.f32.mrb[0].mxu0
    %v1959 = vpop.f32.mrb[0].mxu0
    %1960 = vdwg.mxu0
    %v1961 = vpack.c.bf16 %v1729, %v1729
    %1963 = vrot.lane.b32.xlu0 %v1961, 32
    %v1964 = vpop.permute.xlu0 %1963
    %v1966 = vsel %vm459, %v1964, 0
    %1968 = vmatprep.subr.bf16.mxu0 0
    %1969 = vmatpush1.bf16.msra.mxu0 %v1056
    %1970 = vmatprep.subr.bf16.mxu0 0
    %1971 = vmatpush1.bf16.msra.mxu0 %v1057
    %1972 = vmatprep.subr.bf16.mxu0 0
    %1973 = vmatpush1.bf16.msra.mxu0 0
    %1974 = vmatprep.subr.bf16.mxu0 0
    %1975 = vmatpush1.bf16.msra.mxu0 0
    %1976 = vmatprep.subr.bf16.mxu0 0
    %1977 = vmatpush1.bf16.msra.mxu0 0
    %1978 = vmatprep.subr.bf16.mxu0 0
    %1979 = vmatpush1.bf16.msra.mxu0 0
    %1980 = vmatprep.subr.bf16.mxu0 0
    %1981 = vmatpush1.bf16.msra.mxu0 0
    %1982 = vmatprep.subr.bf16.mxu0 0
    %1983 = vmatpush1.bf16.msra.mxu0 0
    %1984 = vmatprep.subr.bf16.mxu0 0
    %1985 = vmatpush1.bf16.msra.mxu0 0
    %1986 = vmatprep.subr.bf16.mxu0 0
    %1987 = vmatpush1.bf16.msra.mxu0 0
    %1988 = vmatprep.subr.bf16.mxu0 0
    %1989 = vmatpush1.bf16.msra.mxu0 0
    %1990 = vmatprep.subr.bf16.mxu0 0
    %1991 = vmatpush1.bf16.msra.mxu0 0
    %1992 = vmatprep.subr.bf16.mxu0 0
    %1993 = vmatpush1.bf16.msra.mxu0 0
    %1994 = vmatprep.subr.bf16.mxu0 0
    %1995 = vmatpush1.bf16.msra.mxu0 0
    %1996 = vmatprep.subr.bf16.mxu0 0
    %1997 = vmatpush1.bf16.msra.mxu0 0
    %1998 = vmatprep.subr.bf16.mxu0 0
    %1999 = vmatpush1.bf16.msra.mxu0 0
    %2000 = vmatprep.mubr.bf16.mxu0 0
    %2001 = vmatmul.mubr.bf16.gmra.mrb[0].mxu0 %v1966
    %v2002 = vpop.f32.mrb[0].mxu0
    %v2003 = vadd.f32 0.0, %v2002
    %v2004 = vpop.f32.mrb[0].mxu0
    %v2005 = vpop.f32.mrb[0].mxu0
    %v2006 = vpop.f32.mrb[0].mxu0
    %2007 = vdwg.mxu0
    %v2008 = vadd.f32 %v1956, %v2003
    %v2009 = vxor.u32 %v2008, 2147483648
    %v2010 = vmul.f32 %v2009, 1.442695
    %v2011 = vpow.pop %v2010
    %v2012 = vadd.f32 %v2011, 1.0
    %v2013 = vrcp.pop %v2012
    %v2014 = vmul.f32 1.0, %v2013
    %v2015 = vtanh.pop %v2008
    %v2016 = vmul.f32 %v2014, %v1723
    %2018 = vrot.lane.b32.xlu0 %v2015, 64
    %v2019 = vpop.permute.xlu0 %2018
    %v2021 = vmul.f32 %v2014, %v2019
    %2023 = vrot.lane.b32.xlu0 %v2021, 32
    %v2024 = vpop.permute.xlu0 %2023
    %v2026 = vadd.f32 %v2016, %v2024
    %v2027 = vtanh.pop %v2026
    %2029 = vrot.lane.b32.xlu0 %v2027, 64
    %v2030 = vpop.permute.xlu0 %2029
    %v2032 = vmul.f32 %v2014, %v2030
    %v2033 = vpack.c.bf16 %v1807, %v1807
    %v2035 = vrot.slane %v2033, 1
    %2036 = vrot.lane.b32.xlu0 %v2035, 32
    %v2037 = vpop.permute.xlu0 %2036
    %v2039 = vsel %vm459, %v2037, 0
    %2041 = vmatprep.subr.bf16.mxu0 0
    %2042 = vmatpush1.bf16.msra.mxu0 %v455
    %2043 = vmatprep.subr.bf16.mxu0 0
    %2044 = vmatpush1.bf16.msra.mxu0 %v456
    %2045 = vmatprep.subr.bf16.mxu0 0
    %2046 = vmatpush1.bf16.msra.mxu0 0
    %2047 = vmatprep.subr.bf16.mxu0 0
    %2048 = vmatpush1.bf16.msra.mxu0 0
    %2049 = vmatprep.subr.bf16.mxu0 0
    %2050 = vmatpush1.bf16.msra.mxu0 0
    %2051 = vmatprep.subr.bf16.mxu0 0
    %2052 = vmatpush1.bf16.msra.mxu0 0
    %2053 = vmatprep.subr.bf16.mxu0 0
    %2054 = vmatpush1.bf16.msra.mxu0 0
    %2055 = vmatprep.subr.bf16.mxu0 0
    %2056 = vmatpush1.bf16.msra.mxu0 0
    %2057 = vmatprep.subr.bf16.mxu0 0
    %2058 = vmatpush1.bf16.msra.mxu0 0
    %2059 = vmatprep.subr.bf16.mxu0 0
    %2060 = vmatpush1.bf16.msra.mxu0 0
    %2061 = vmatprep.subr.bf16.mxu0 0
    %2062 = vmatpush1.bf16.msra.mxu0 0
    %2063 = vmatprep.subr.bf16.mxu0 0
    %2064 = vmatpush1.bf16.msra.mxu0 0
    %2065 = vmatprep.subr.bf16.mxu0 0
    %2066 = vmatpush1.bf16.msra.mxu0 0
    %2067 = vmatprep.subr.bf16.mxu0 0
    %2068 = vmatpush1.bf16.msra.mxu0 0
    %2069 = vmatprep.subr.bf16.mxu0 0
    %2070 = vmatpush1.bf16.msra.mxu0 0
    %2071 = vmatprep.subr.bf16.mxu0 0
    %2072 = vmatpush1.bf16.msra.mxu0 0
    %2073 = vmatprep.mubr.bf16.mxu0 0
    %2074 = vmatmul.mubr.bf16.gmra.mrb[0].mxu0 %v2039
    %v2075 = vpop.f32.mrb[0].mxu0
    %v2076 = vadd.f32 0.0, %v2075
    %v2077 = vpop.f32.mrb[0].mxu0
    %v2078 = vpop.f32.mrb[0].mxu0
    %v2079 = vpop.f32.mrb[0].mxu0
    %2080 = vdwg.mxu0
    %v2082 = vrot.slane %v2076, 4
    %v2084 = vadd.f32 %v414, %v2082
    %v2085 = vxor.u32 %v2084, 2147483648
    %v2086 = vmul.f32 %v2085, 1.442695
    %v2087 = vpow.pop %v2086
    %v2088 = vadd.f32 %v2087, 1.0
    %v2089 = vrcp.pop %v2088
    %v2090 = vmul.f32 1.0, %v2089
    %v2091 = vtanh.pop %v2084
    %v2093 = vrot.slane %v1801, 6
    %v2095 = vmul.f32 %v2090, %v2093
    %2097 = vrot.lane.b32.xlu0 %v2091, 64
    %v2098 = vpop.permute.xlu0 %2097
    %v2100 = vmul.f32 %v2090, %v2098
    %2102 = vrot.lane.b32.xlu0 %v2100, 32
    %v2103 = vpop.permute.xlu0 %2102
    %v2105 = vadd.f32 %v2095, %v2103
    %v2106 = vtanh.pop %v2105
    %2108 = vrot.lane.b32.xlu0 %v2106, 64
    %v2109 = vpop.permute.xlu0 %2108
    %v2111 = vmul.f32 %v2090, %v2109
    %2112 = vmatprep.subr.bf16.mxu0 %v630
    %2113 = vmatpush1.bf16.msra.mxu0 %v629
    %2114 = vmatprep.subr.bf16.mxu0 %v632
    %2115 = vmatpush1.bf16.msra.mxu0 %v631
    %2116 = vmatprep.subr.bf16.mxu0 0
    %2117 = vmatpush1.bf16.msra.mxu0 0
    %2118 = vmatprep.subr.bf16.mxu0 0
    %2119 = vmatpush1.bf16.msra.mxu0 0
    %2120 = vmatprep.subr.bf16.mxu0 0
    %2121 = vmatpush1.bf16.msra.mxu0 0
    %2122 = vmatprep.subr.bf16.mxu0 0
    %2123 = vmatpush1.bf16.msra.mxu0 0
    %2124 = vmatprep.subr.bf16.mxu0 0
    %2125 = vmatpush1.bf16.msra.mxu0 0
    %2126 = vmatprep.subr.bf16.mxu0 0
    %2127 = vmatpush1.bf16.msra.mxu0 0
    %2128 = vmatprep.subr.bf16.mxu0 0
    %2129 = vmatpush1.bf16.msra.mxu0 0
    %2130 = vmatprep.subr.bf16.mxu0 0
    %2131 = vmatpush1.bf16.msra.mxu0 0
    %2132 = vmatprep.subr.bf16.mxu0 0
    %2133 = vmatpush1.bf16.msra.mxu0 0
    %2134 = vmatprep.subr.bf16.mxu0 0
    %2135 = vmatpush1.bf16.msra.mxu0 0
    %2136 = vmatprep.subr.bf16.mxu0 0
    %2137 = vmatpush1.bf16.msra.mxu0 0
    %2138 = vmatprep.subr.bf16.mxu0 0
    %2139 = vmatpush1.bf16.msra.mxu0 0
    %2140 = vmatprep.subr.bf16.mxu0 0
    %2141 = vmatpush1.bf16.msra.mxu0 0
    %2142 = vmatprep.subr.bf16.mxu0 0
    %2143 = vmatpush1.bf16.msra.mxu0 0
    %2144 = vmatprep.mubr.bf16.mxu0 0
    %2145 = vmatmul.mubr.bf16.gmra.mrb[0].mxu0 %v2039
    %v2146 = vpop.f32.mrb[0].mxu0
    %v2147 = vadd.f32 %v610, %v2146
    %v2148 = vpop.f32.mrb[0].mxu0
    %v2149 = vadd.f32 %v614, %v2148
    %v2150 = vpop.f32.mrb[0].mxu0
    %v2151 = vpop.f32.mrb[0].mxu0
    %2152 = vdwg.mxu0
    %v2153 = vpack.c.bf16 %v1920, %v1920
    %2155 = vrot.lane.b32.xlu0 %v2153, 64
    %v2156 = vpop.permute.xlu0 %2155
    %v2158 = vsel %vm718, %v2156, 0
    %2160 = vmatprep.subr.bf16.mxu0 %v703
    %2161 = vmatpush1.bf16.msra.mxu0 %v702
    %2162 = vmatprep.subr.bf16.mxu0 %v705
    %2163 = vmatpush1.bf16.msra.mxu0 %v704
    %2164 = vmatprep.subr.bf16.mxu0 %v707
    %2165 = vmatpush1.bf16.msra.mxu0 %v706
    %2166 = vmatprep.subr.bf16.mxu0 %v709
    %2167 = vmatpush1.bf16.msra.mxu0 %v708
    %2168 = vmatprep.subr.bf16.mxu0 0
    %2169 = vmatpush1.bf16.msra.mxu0 0
    %2170 = vmatprep.subr.bf16.mxu0 0
    %2171 = vmatpush1.bf16.msra.mxu0 0
    %2172 = vmatprep.subr.bf16.mxu0 0
    %2173 = vmatpush1.bf16.msra.mxu0 0
    %2174 = vmatprep.subr.bf16.mxu0 0
    %2175 = vmatpush1.bf16.msra.mxu0 0
    %2176 = vmatprep.subr.bf16.mxu0 0
    %2177 = vmatpush1.bf16.msra.mxu0 0
    %2178 = vmatprep.subr.bf16.mxu0 0
    %2179 = vmatpush1.bf16.msra.mxu0 0
    %2180 = vmatprep.subr.bf16.mxu0 0
    %2181 = vmatpush1.bf16.msra.mxu0 0
    %2182 = vmatprep.subr.bf16.mxu0 0
    %2183 = vmatpush1.bf16.msra.mxu0 0
    %2184 = vmatprep.subr.bf16.mxu0 0
    %2185 = vmatpush1.bf16.msra.mxu0 0
    %2186 = vmatprep.subr.bf16.mxu0 0
    %2187 = vmatpush1.bf16.msra.mxu0 0
    %2188 = vmatprep.subr.bf16.mxu0 0
    %2189 = vmatpush1.bf16.msra.mxu0 0
    %2190 = vmatprep.subr.bf16.mxu0 0
    %2191 = vmatpush1.bf16.msra.mxu0 0
    %2192 = vmatprep.mubr.bf16.mxu0 0
    %2193 = vmatmul.mubr.bf16.gmra.mrb[0].mxu0 %v2158
    %v2194 = vpop.f32.mrb[0].mxu0
    %v2195 = vadd.f32 0.0, %v2194
    %v2196 = vpop.f32.mrb[0].mxu0
    %v2197 = vadd.f32 0.0, %v2196
    %v2198 = vpop.f32.mrb[0].mxu0
    %v2199 = vpop.f32.mrb[0].mxu0
    %2200 = vdwg.mxu0
    %v2201 = vadd.f32 %v2147, %v2195
    %v2202 = vadd.f32 %v2149, %v2197
    %v2203 = vxor.u32 %v2201, 2147483648
    %v2204 = vmul.f32 %v2203, 1.442695
    %v2205 = vpow.pop %v2204
    %v2206 = vadd.f32 %v2205, 1.0
    %v2207 = vrcp.pop %v2206
    %v2208 = vmul.f32 1.0, %v2207
    %v2209 = vtanh.pop %v2202
    %v2210 = vxor.u32 %v2202, 2147483648
    %v2211 = vmul.f32 %v2210, 1.442695
    %v2212 = vpow.pop %v2211
    %v2213 = vadd.f32 %v2212, 1.0
    %v2214 = vrcp.pop %v2213
    %v2215 = vmul.f32 1.0, %v2214
    %v2216 = vmul.f32 %v2208, %v1918
    %v2217 = vmul.f32 %v2208, %v2209
    %2219 = vrot.lane.b32.xlu0 %v2217, 64
    %v2220 = vpop.permute.xlu0 %2219
    %v2222 = vadd.f32 %v2216, %v2220
    %v2223 = vtanh.pop %v2222
    %v2224 = vmul.f32 %v2215, %v2223
    %2225 = vmatprep.subr.bf16.mxu0 0
    %2226 = vmatpush1.bf16.msra.mxu0 %v1000
    %2227 = vmatprep.subr.bf16.mxu0 0
    %2228 = vmatpush1.bf16.msra.mxu0 %v1001
    %2229 = vmatprep.subr.bf16.mxu0 0
    %2230 = vmatpush1.bf16.msra.mxu0 %v1002
    %2231 = vmatprep.subr.bf16.mxu0 0
    %2232 = vmatpush1.bf16.msra.mxu0 %v1003
    %2233 = vmatprep.subr.bf16.mxu0 0
    %2234 = vmatpush1.bf16.msra.mxu0 0
    %2235 = vmatprep.subr.bf16.mxu0 0
    %2236 = vmatpush1.bf16.msra.mxu0 0
    %2237 = vmatprep.subr.bf16.mxu0 0
    %2238 = vmatpush1.bf16.msra.mxu0 0
    %2239 = vmatprep.subr.bf16.mxu0 0
    %2240 = vmatpush1.bf16.msra.mxu0 0
    %2241 = vmatprep.subr.bf16.mxu0 0
    %2242 = vmatpush1.bf16.msra.mxu0 0
    %2243 = vmatprep.subr.bf16.mxu0 0
    %2244 = vmatpush1.bf16.msra.mxu0 0
    %2245 = vmatprep.subr.bf16.mxu0 0
    %2246 = vmatpush1.bf16.msra.mxu0 0
    %2247 = vmatprep.subr.bf16.mxu0 0
    %2248 = vmatpush1.bf16.msra.mxu0 0
    %2249 = vmatprep.subr.bf16.mxu0 0
    %2250 = vmatpush1.bf16.msra.mxu0 0
    %2251 = vmatprep.subr.bf16.mxu0 0
    %2252 = vmatpush1.bf16.msra.mxu0 0
    %2253 = vmatprep.subr.bf16.mxu0 0
    %2254 = vmatpush1.bf16.msra.mxu0 0
    %2255 = vmatprep.subr.bf16.mxu0 0
    %2256 = vmatpush1.bf16.msra.mxu0 0
    %2257 = vmatprep.mubr.bf16.mxu0 0
    %2258 = vmatmul.mubr.bf16.gmra.mrb[0].mxu0 %v2158
    %v2259 = vpop.f32.mrb[0].mxu0
    %v2260 = vadd.f32 %v982, %v2259
    %v2261 = vpop.f32.mrb[0].mxu0
    %v2262 = vpop.f32.mrb[0].mxu0
    %v2263 = vpop.f32.mrb[0].mxu0
    %2264 = vdwg.mxu0
    %v2265 = vpack.c.bf16 %v2032, %v2032
    %2267 = vrot.lane.b32.xlu0 %v2265, 32
    %v2268 = vpop.permute.xlu0 %2267
    %v2270 = vsel %vm459, %v2268, 0
    %2272 = vmatprep.subr.bf16.mxu0 0
    %2273 = vmatpush1.bf16.msra.mxu0 %v1056
    %2274 = vmatprep.subr.bf16.mxu0 0
    %2275 = vmatpush1.bf16.msra.mxu0 %v1057
    %2276 = vmatprep.subr.bf16.mxu0 0
    %2277 = vmatpush1.bf16.msra.mxu0 0
    %2278 = vmatprep.subr.bf16.mxu0 0
    %2279 = vmatpush1.bf16.msra.mxu0 0
    %2280 = vmatprep.subr.bf16.mxu0 0
    %2281 = vmatpush1.bf16.msra.mxu0 0
    %2282 = vmatprep.subr.bf16.mxu0 0
    %2283 = vmatpush1.bf16.msra.mxu0 0
    %2284 = vmatprep.subr.bf16.mxu0 0
    %2285 = vmatpush1.bf16.msra.mxu0 0
    %2286 = vmatprep.subr.bf16.mxu0 0
    %2287 = vmatpush1.bf16.msra.mxu0 0
    %2288 = vmatprep.subr.bf16.mxu0 0
    %2289 = vmatpush1.bf16.msra.mxu0 0
    %2290 = vmatprep.subr.bf16.mxu0 0
    %2291 = vmatpush1.bf16.msra.mxu0 0
    %2292 = vmatprep.subr.bf16.mxu0 0
    %2293 = vmatpush1.bf16.msra.mxu0 0
    %2294 = vmatprep.subr.bf16.mxu0 0
    %2295 = vmatpush1.bf16.msra.mxu0 0
    %2296 = vmatprep.subr.bf16.mxu0 0
    %2297 = vmatpush1.bf16.msra.mxu0 0
    %2298 = vmatprep.subr.bf16.mxu0 0
    %2299 = vmatpush1.bf16.msra.mxu0 0
    %2300 = vmatprep.subr.bf16.mxu0 0
    %2301 = vmatpush1.bf16.msra.mxu0 0
    %2302 = vmatprep.subr.bf16.mxu0 0
    %2303 = vmatpush1.bf16.msra.mxu0 0
    %2304 = vmatprep.mubr.bf16.mxu0 0
    %2305 = vmatmul.mubr.bf16.gmra.mrb[0].mxu0 %v2270
    %v2306 = vpop.f32.mrb[0].mxu0
    %v2307 = vadd.f32 0.0, %v2306
    %v2308 = vpop.f32.mrb[0].mxu0
    %v2309 = vpop.f32.mrb[0].mxu0
    %v2310 = vpop.f32.mrb[0].mxu0
    %2311 = vdwg.mxu0
    %v2312 = vadd.f32 %v2260, %v2307
    %v2313 = vxor.u32 %v2312, 2147483648
    %v2314 = vmul.f32 %v2313, 1.442695
    %v2315 = vpow.pop %v2314
    %v2316 = vadd.f32 %v2315, 1.0
    %v2317 = vrcp.pop %v2316
    %v2318 = vmul.f32 1.0, %v2317
    %v2319 = vtanh.pop %v2312
    %v2320 = vmul.f32 %v2318, %v2026
    %2322 = vrot.lane.b32.xlu0 %v2319, 64
    %v2323 = vpop.permute.xlu0 %2322
    %v2325 = vmul.f32 %v2318, %v2323
    %2327 = vrot.lane.b32.xlu0 %v2325, 32
    %v2328 = vpop.permute.xlu0 %2327
    %v2330 = vadd.f32 %v2320, %v2328
    %v2331 = vtanh.pop %v2330
    %2333 = vrot.lane.b32.xlu0 %v2331, 64
    %v2334 = vpop.permute.xlu0 %2333
    %v2336 = vmul.f32 %v2318, %v2334
    %v2337 = vpack.c.bf16 %v2111, %v2111
    %v2339 = vrot.slane %v2337, 2
    %2340 = vrot.lane.b32.xlu0 %v2339, 32
    %v2341 = vpop.permute.xlu0 %2340
    %v2343 = vsel %vm459, %v2341, 0
    %2345 = vmatprep.subr.bf16.mxu0 0
    %2346 = vmatpush1.bf16.msra.mxu0 %v455
    %2347 = vmatprep.subr.bf16.mxu0 0
    %2348 = vmatpush1.bf16.msra.mxu0 %v456
    %2349 = vmatprep.subr.bf16.mxu0 0
    %2350 = vmatpush1.bf16.msra.mxu0 0
    %2351 = vmatprep.subr.bf16.mxu0 0
    %2352 = vmatpush1.bf16.msra.mxu0 0
    %2353 = vmatprep.subr.bf16.mxu0 0
    %2354 = vmatpush1.bf16.msra.mxu0 0
    %2355 = vmatprep.subr.bf16.mxu0 0
    %2356 = vmatpush1.bf16.msra.mxu0 0
    %2357 = vmatprep.subr.bf16.mxu0 0
    %2358 = vmatpush1.bf16.msra.mxu0 0
    %2359 = vmatprep.subr.bf16.mxu0 0
    %2360 = vmatpush1.bf16.msra.mxu0 0
    %2361 = vmatprep.subr.bf16.mxu0 0
    %2362 = vmatpush1.bf16.msra.mxu0 0
    %2363 = vmatprep.subr.bf16.mxu0 0
    %2364 = vmatpush1.bf16.msra.mxu0 0
    %2365 = vmatprep.subr.bf16.mxu0 0
    %2366 = vmatpush1.bf16.msra.mxu0 0
    %2367 = vmatprep.subr.bf16.mxu0 0
    %2368 = vmatpush1.bf16.msra.mxu0 0
    %2369 = vmatprep.subr.bf16.mxu0 0
    %2370 = vmatpush1.bf16.msra.mxu0 0
    %2371 = vmatprep.subr.bf16.mxu0 0
    %2372 = vmatpush1.bf16.msra.mxu0 0
    %2373 = vmatprep.subr.bf16.mxu0 0
    %2374 = vmatpush1.bf16.msra.mxu0 0
    %2375 = vmatprep.subr.bf16.mxu0 0
    %2376 = vmatpush1.bf16.msra.mxu0 0
    %2377 = vmatprep.mubr.bf16.mxu0 0
    %2378 = vmatmul.mubr.bf16.gmra.mrb[0].mxu0 %v2343
    %v2379 = vpop.f32.mrb[0].mxu0
    %v2380 = vadd.f32 0.0, %v2379
    %v2381 = vpop.f32.mrb[0].mxu0
    %v2382 = vpop.f32.mrb[0].mxu0
    %v2383 = vpop.f32.mrb[0].mxu0
    %2384 = vdwg.mxu0
    %v2386 = vrot.slane %v2380, 2
    %v2388 = vadd.f32 %v414, %v2386
    %v2389 = vxor.u32 %v2388, 2147483648
    %v2390 = vmul.f32 %v2389, 1.442695
    %v2391 = vpow.pop %v2390
    %v2392 = vadd.f32 %v2391, 1.0
    %v2393 = vrcp.pop %v2392
    %v2394 = vmul.f32 1.0, %v2393
    %v2395 = vtanh.pop %v2388
    %v2397 = vrot.slane %v2105, 6
    %v2399 = vmul.f32 %v2394, %v2397
    %2401 = vrot.lane.b32.xlu0 %v2395, 64
    %v2402 = vpop.permute.xlu0 %2401
    %v2404 = vmul.f32 %v2394, %v2402
    %2406 = vrot.lane.b32.xlu0 %v2404, 32
    %v2407 = vpop.permute.xlu0 %2406
    %v2409 = vadd.f32 %v2399, %v2407
    %v2410 = vtanh.pop %v2409
    %2412 = vrot.lane.b32.xlu0 %v2410, 64
    %v2413 = vpop.permute.xlu0 %2412
    %v2415 = vmul.f32 %v2394, %v2413
    %2416 = vmatprep.subr.bf16.mxu0 %v630
    %2417 = vmatpush1.bf16.msra.mxu0 %v629
    %2418 = vmatprep.subr.bf16.mxu0 %v632
    %2419 = vmatpush1.bf16.msra.mxu0 %v631
    %2420 = vmatprep.subr.bf16.mxu0 0
    %2421 = vmatpush1.bf16.msra.mxu0 0
    %2422 = vmatprep.subr.bf16.mxu0 0
    %2423 = vmatpush1.bf16.msra.mxu0 0
    %2424 = vmatprep.subr.bf16.mxu0 0
    %2425 = vmatpush1.bf16.msra.mxu0 0
    %2426 = vmatprep.subr.bf16.mxu0 0
    %2427 = vmatpush1.bf16.msra.mxu0 0
    %2428 = vmatprep.subr.bf16.mxu0 0
    %2429 = vmatpush1.bf16.msra.mxu0 0
    %2430 = vmatprep.subr.bf16.mxu0 0
    %2431 = vmatpush1.bf16.msra.mxu0 0
    %2432 = vmatprep.subr.bf16.mxu0 0
    %2433 = vmatpush1.bf16.msra.mxu0 0
    %2434 = vmatprep.subr.bf16.mxu0 0
    %2435 = vmatpush1.bf16.msra.mxu0 0
    %2436 = vmatprep.subr.bf16.mxu0 0
    %2437 = vmatpush1.bf16.msra.mxu0 0
    %2438 = vmatprep.subr.bf16.mxu0 0
    %2439 = vmatpush1.bf16.msra.mxu0 0
    %2440 = vmatprep.subr.bf16.mxu0 0
    %2441 = vmatpush1.bf16.msra.mxu0 0
    %2442 = vmatprep.subr.bf16.mxu0 0
    %2443 = vmatpush1.bf16.msra.mxu0 0
    %2444 = vmatprep.subr.bf16.mxu0 0
    %2445 = vmatpush1.bf16.msra.mxu0 0
    %2446 = vmatprep.subr.bf16.mxu0 0
    %2447 = vmatpush1.bf16.msra.mxu0 0
    %2448 = vmatprep.mubr.bf16.mxu0 0
    %2449 = vmatmul.mubr.bf16.gmra.mrb[0].mxu0 %v2343
    %v2450 = vpop.f32.mrb[0].mxu0
    %v2451 = vadd.f32 %v610, %v2450
    %v2452 = vpop.f32.mrb[0].mxu0
    %v2453 = vadd.f32 %v614, %v2452
    %v2454 = vpop.f32.mrb[0].mxu0
    %v2455 = vpop.f32.mrb[0].mxu0
    %2456 = vdwg.mxu0
    %v2457 = vpack.c.bf16 %v2224, %v2224
    %2459 = vrot.lane.b32.xlu0 %v2457, 64
    %v2460 = vpop.permute.xlu0 %2459
    %v2462 = vsel %vm718, %v2460, 0
    %2464 = vmatprep.subr.bf16.mxu0 %v703
    %2465 = vmatpush1.bf16.msra.mxu0 %v702
    %2466 = vmatprep.subr.bf16.mxu0 %v705
    %2467 = vmatpush1.bf16.msra.mxu0 %v704
    %2468 = vmatprep.subr.bf16.mxu0 %v707
    %2469 = vmatpush1.bf16.msra.mxu0 %v706
    %2470 = vmatprep.subr.bf16.mxu0 %v709
    %2471 = vmatpush1.bf16.msra.mxu0 %v708
    %2472 = vmatprep.subr.bf16.mxu0 0
    %2473 = vmatpush1.bf16.msra.mxu0 0
    %2474 = vmatprep.subr.bf16.mxu0 0
    %2475 = vmatpush1.bf16.msra.mxu0 0
    %2476 = vmatprep.subr.bf16.mxu0 0
    %2477 = vmatpush1.bf16.msra.mxu0 0
    %2478 = vmatprep.subr.bf16.mxu0 0
    %2479 = vmatpush1.bf16.msra.mxu0 0
    %2480 = vmatprep.subr.bf16.mxu0 0
    %2481 = vmatpush1.bf16.msra.mxu0 0
    %2482 = vmatprep.subr.bf16.mxu0 0
    %2483 = vmatpush1.bf16.msra.mxu0 0
    %2484 = vmatprep.subr.bf16.mxu0 0
    %2485 = vmatpush1.bf16.msra.mxu0 0
    %2486 = vmatprep.subr.bf16.mxu0 0
    %2487 = vmatpush1.bf16.msra.mxu0 0
    %2488 = vmatprep.subr.bf16.mxu0 0
    %2489 = vmatpush1.bf16.msra.mxu0 0
    %2490 = vmatprep.subr.bf16.mxu0 0
    %2491 = vmatpush1.bf16.msra.mxu0 0
    %2492 = vmatprep.subr.bf16.mxu0 0
    %2493 = vmatpush1.bf16.msra.mxu0 0
    %2494 = vmatprep.subr.bf16.mxu0 0
    %2495 = vmatpush1.bf16.msra.mxu0 0
    %2496 = vmatprep.mubr.bf16.mxu0 0
    %2497 = vmatmul.mubr.bf16.gmra.mrb[0].mxu0 %v2462
    %v2498 = vpop.f32.mrb[0].mxu0
    %v2499 = vadd.f32 0.0, %v2498
    %v2500 = vpop.f32.mrb[0].mxu0
    %v2501 = vadd.f32 0.0, %v2500
    %v2502 = vpop.f32.mrb[0].mxu0
    %v2503 = vpop.f32.mrb[0].mxu0
    %2504 = vdwg.mxu0
    %v2505 = vadd.f32 %v2451, %v2499
    %v2506 = vadd.f32 %v2453, %v2501
    %v2507 = vxor.u32 %v2505, 2147483648
    %v2508 = vmul.f32 %v2507, 1.442695
    %v2509 = vpow.pop %v2508
    %v2510 = vadd.f32 %v2509, 1.0
    %v2511 = vrcp.pop %v2510
    %v2512 = vmul.f32 1.0, %v2511
    %v2513 = vtanh.pop %v2506
    %v2514 = vxor.u32 %v2506, 2147483648
    %v2515 = vmul.f32 %v2514, 1.442695
    %v2516 = vpow.pop %v2515
    %v2517 = vadd.f32 %v2516, 1.0
    %v2518 = vrcp.pop %v2517
    %v2519 = vmul.f32 1.0, %v2518
    %v2520 = vmul.f32 %v2512, %v2222
    %v2521 = vmul.f32 %v2512, %v2513
    %2523 = vrot.lane.b32.xlu0 %v2521, 64
    %v2524 = vpop.permute.xlu0 %2523
    %v2526 = vadd.f32 %v2520, %v2524
    %v2527 = vtanh.pop %v2526
    %v2528 = vmul.f32 %v2519, %v2527
    %2529 = vmatprep.subr.bf16.mxu0 0
    %2530 = vmatpush1.bf16.msra.mxu0 %v1000
    %2531 = vmatprep.subr.bf16.mxu0 0
    %2532 = vmatpush1.bf16.msra.mxu0 %v1001
    %2533 = vmatprep.subr.bf16.mxu0 0
    %2534 = vmatpush1.bf16.msra.mxu0 %v1002
    %2535 = vmatprep.subr.bf16.mxu0 0
    %2536 = vmatpush1.bf16.msra.mxu0 %v1003
    %2537 = vmatprep.subr.bf16.mxu0 0
    %2538 = vmatpush1.bf16.msra.mxu0 0
    %2539 = vmatprep.subr.bf16.mxu0 0
    %2540 = vmatpush1.bf16.msra.mxu0 0
    %2541 = vmatprep.subr.bf16.mxu0 0
    %2542 = vmatpush1.bf16.msra.mxu0 0
    %2543 = vmatprep.subr.bf16.mxu0 0
    %2544 = vmatpush1.bf16.msra.mxu0 0
    %2545 = vmatprep.subr.bf16.mxu0 0
    %2546 = vmatpush1.bf16.msra.mxu0 0
    %2547 = vmatprep.subr.bf16.mxu0 0
    %2548 = vmatpush1.bf16.msra.mxu0 0
    %2549 = vmatprep.subr.bf16.mxu0 0
    %2550 = vmatpush1.bf16.msra.mxu0 0
    %2551 = vmatprep.subr.bf16.mxu0 0
    %2552 = vmatpush1.bf16.msra.mxu0 0
    %2553 = vmatprep.subr.bf16.mxu0 0
    %2554 = vmatpush1.bf16.msra.mxu0 0
    %2555 = vmatprep.subr.bf16.mxu0 0
    %2556 = vmatpush1.bf16.msra.mxu0 0
    %2557 = vmatprep.subr.bf16.mxu0 0
    %2558 = vmatpush1.bf16.msra.mxu0 0
    %2559 = vmatprep.subr.bf16.mxu0 0
    %2560 = vmatpush1.bf16.msra.mxu0 0
    %2561 = vmatprep.mubr.bf16.mxu0 0
    %2562 = vmatmul.mubr.bf16.gmra.mrb[0].mxu0 %v2462
    %v2563 = vpop.f32.mrb[0].mxu0
    %v2564 = vadd.f32 %v982, %v2563
    %v2565 = vpop.f32.mrb[0].mxu0
    %v2566 = vpop.f32.mrb[0].mxu0
    %v2567 = vpop.f32.mrb[0].mxu0
    %2568 = vdwg.mxu0
    %v2569 = vpack.c.bf16 %v2336, %v2336
    %2571 = vrot.lane.b32.xlu0 %v2569, 32
    %v2572 = vpop.permute.xlu0 %2571
    %v2574 = vsel %vm459, %v2572, 0
    %2576 = vmatprep.subr.bf16.mxu0 0
    %2577 = vmatpush1.bf16.msra.mxu0 %v1056
    %2578 = vmatprep.subr.bf16.mxu0 0
    %2579 = vmatpush1.bf16.msra.mxu0 %v1057
    %2580 = vmatprep.subr.bf16.mxu0 0
    %2581 = vmatpush1.bf16.msra.mxu0 0
    %2582 = vmatprep.subr.bf16.mxu0 0
    %2583 = vmatpush1.bf16.msra.mxu0 0
    %2584 = vmatprep.subr.bf16.mxu0 0
    %2585 = vmatpush1.bf16.msra.mxu0 0
    %2586 = vmatprep.subr.bf16.mxu0 0
    %2587 = vmatpush1.bf16.msra.mxu0 0
    %2588 = vmatprep.subr.bf16.mxu0 0
    %2589 = vmatpush1.bf16.msra.mxu0 0
    %2590 = vmatprep.subr.bf16.mxu0 0
    %2591 = vmatpush1.bf16.msra.mxu0 0
    %2592 = vmatprep.subr.bf16.mxu0 0
    %2593 = vmatpush1.bf16.msra.mxu0 0
    %2594 = vmatprep.subr.bf16.mxu0 0
    %2595 = vmatpush1.bf16.msra.mxu0 0
    %2596 = vmatprep.subr.bf16.mxu0 0
    %2597 = vmatpush1.bf16.msra.mxu0 0
    %2598 = vmatprep.subr.bf16.mxu0 0
    %2599 = vmatpush1.bf16.msra.mxu0 0
    %2600 = vmatprep.subr.bf16.mxu0 0
    %2601 = vmatpush1.bf16.msra.mxu0 0
    %2602 = vmatprep.subr.bf16.mxu0 0
    %2603 = vmatpush1.bf16.msra.mxu0 0
    %2604 = vmatprep.subr.bf16.mxu0 0
    %2605 = vmatpush1.bf16.msra.mxu0 0
    %2606 = vmatprep.subr.bf16.mxu0 0
    %2607 = vmatpush1.bf16.msra.mxu0 0
    %2608 = vmatprep.mubr.bf16.mxu0 0
    %2609 = vmatmul.mubr.bf16.gmra.mrb[0].mxu0 %v2574
    %v2610 = vpop.f32.mrb[0].mxu0
    %v2611 = vadd.f32 0.0, %v2610
    %v2612 = vpop.f32.mrb[0].mxu0
    %v2613 = vpop.f32.mrb[0].mxu0
    %v2614 = vpop.f32.mrb[0].mxu0
    %2615 = vdwg.mxu0
    %v2616 = vadd.f32 %v2564, %v2611
    %v2617 = vxor.u32 %v2616, 2147483648
    %v2618 = vmul.f32 %v2617, 1.442695
    %v2619 = vpow.pop %v2618
    %v2620 = vadd.f32 %v2619, 1.0
    %v2621 = vrcp.pop %v2620
    %v2622 = vmul.f32 1.0, %v2621
    %v2623 = vtanh.pop %v2616
    %v2624 = vmul.f32 %v2622, %v2330
    %2626 = vrot.lane.b32.xlu0 %v2623, 64
    %v2627 = vpop.permute.xlu0 %2626
    %v2629 = vmul.f32 %v2622, %v2627
    %2631 = vrot.lane.b32.xlu0 %v2629, 32
    %v2632 = vpop.permute.xlu0 %2631
    %v2634 = vadd.f32 %v2624, %v2632
    %v2635 = vtanh.pop %v2634
    %2637 = vrot.lane.b32.xlu0 %v2635, 64
    %v2638 = vpop.permute.xlu0 %2637
    %v2640 = vmul.f32 %v2622, %v2638
    %v2641 = vpack.c.bf16 %v2415, %v2415
    %v2643 = vrot.slane %v2641, 3
    %2644 = vrot.lane.b32.xlu0 %v2643, 32
    %v2645 = vpop.permute.xlu0 %2644
    %v2647 = vsel %vm459, %v2645, 0
    %2649 = vmatprep.subr.bf16.mxu0 %v630
    %2650 = vmatpush1.bf16.msra.mxu0 %v629
    %2651 = vmatprep.subr.bf16.mxu0 %v632
    %2652 = vmatpush1.bf16.msra.mxu0 %v631
    %2653 = vmatprep.subr.bf16.mxu0 0
    %2654 = vmatpush1.bf16.msra.mxu0 0
    %2655 = vmatprep.subr.bf16.mxu0 0
    %2656 = vmatpush1.bf16.msra.mxu0 0
    %2657 = vmatprep.subr.bf16.mxu0 0
    %2658 = vmatpush1.bf16.msra.mxu0 0
    %2659 = vmatprep.subr.bf16.mxu0 0
    %2660 = vmatpush1.bf16.msra.mxu0 0
    %2661 = vmatprep.subr.bf16.mxu0 0
    %2662 = vmatpush1.bf16.msra.mxu0 0
    %2663 = vmatprep.subr.bf16.mxu0 0
    %2664 = vmatpush1.bf16.msra.mxu0 0
    %2665 = vmatprep.subr.bf16.mxu0 0
    %2666 = vmatpush1.bf16.msra.mxu0 0
    %2667 = vmatprep.subr.bf16.mxu0 0
    %2668 = vmatpush1.bf16.msra.mxu0 0
    %2669 = vmatprep.subr.bf16.mxu0 0
    %2670 = vmatpush1.bf16.msra.mxu0 0
    %2671 = vmatprep.subr.bf16.mxu0 0
    %2672 = vmatpush1.bf16.msra.mxu0 0
    %2673 = vmatprep.subr.bf16.mxu0 0
    %2674 = vmatpush1.bf16.msra.mxu0 0
    %2675 = vmatprep.subr.bf16.mxu0 0
    %2676 = vmatpush1.bf16.msra.mxu0 0
    %2677 = vmatprep.subr.bf16.mxu0 0
    %2678 = vmatpush1.bf16.msra.mxu0 0
    %2679 = vmatprep.subr.bf16.mxu0 0
    %2680 = vmatpush1.bf16.msra.mxu0 0
    %2681 = vmatprep.mubr.bf16.mxu0 0
    %2682 = vmatmul.mubr.bf16.gmra.mrb[0].mxu0 %v2647
    %v2683 = vpop.f32.mrb[0].mxu0
    %v2684 = vadd.f32 %v610, %v2683
    %v2685 = vpop.f32.mrb[0].mxu0
    %v2686 = vadd.f32 %v614, %v2685
    %v2687 = vpop.f32.mrb[0].mxu0
    %v2688 = vpop.f32.mrb[0].mxu0
    %2689 = vdwg.mxu0
    %v2690 = vpack.c.bf16 %v2528, %v2528
    %2692 = vrot.lane.b32.xlu0 %v2690, 64
    %v2693 = vpop.permute.xlu0 %2692
    %v2695 = vsel %vm718, %v2693, 0
    %2697 = vmatprep.subr.bf16.mxu0 %v703
    %2698 = vmatpush1.bf16.msra.mxu0 %v702
    %2699 = vmatprep.subr.bf16.mxu0 %v705
    %2700 = vmatpush1.bf16.msra.mxu0 %v704
    %2701 = vmatprep.subr.bf16.mxu0 %v707
    %2702 = vmatpush1.bf16.msra.mxu0 %v706
    %2703 = vmatprep.subr.bf16.mxu0 %v709
    %2704 = vmatpush1.bf16.msra.mxu0 %v708
    %2705 = vmatprep.subr.bf16.mxu0 0
    %2706 = vmatpush1.bf16.msra.mxu0 0
    %2707 = vmatprep.subr.bf16.mxu0 0
    %2708 = vmatpush1.bf16.msra.mxu0 0
    %2709 = vmatprep.subr.bf16.mxu0 0
    %2710 = vmatpush1.bf16.msra.mxu0 0
    %2711 = vmatprep.subr.bf16.mxu0 0
    %2712 = vmatpush1.bf16.msra.mxu0 0
    %2713 = vmatprep.subr.bf16.mxu0 0
    %2714 = vmatpush1.bf16.msra.mxu0 0
    %2715 = vmatprep.subr.bf16.mxu0 0
    %2716 = vmatpush1.bf16.msra.mxu0 0
    %2717 = vmatprep.subr.bf16.mxu0 0
    %2718 = vmatpush1.bf16.msra.mxu0 0
    %2719 = vmatprep.subr.bf16.mxu0 0
    %2720 = vmatpush1.bf16.msra.mxu0 0
    %2721 = vmatprep.subr.bf16.mxu0 0
    %2722 = vmatpush1.bf16.msra.mxu0 0
    %2723 = vmatprep.subr.bf16.mxu0 0
    %2724 = vmatpush1.bf16.msra.mxu0 0
    %2725 = vmatprep.subr.bf16.mxu0 0
    %2726 = vmatpush1.bf16.msra.mxu0 0
    %2727 = vmatprep.subr.bf16.mxu0 0
    %2728 = vmatpush1.bf16.msra.mxu0 0
    %2729 = vmatprep.mubr.bf16.mxu0 0
    %2730 = vmatmul.mubr.bf16.gmra.mrb[0].mxu0 %v2695
    %v2731 = vpop.f32.mrb[0].mxu0
    %v2732 = vadd.f32 0.0, %v2731
    %v2733 = vpop.f32.mrb[0].mxu0
    %v2734 = vadd.f32 0.0, %v2733
    %v2735 = vpop.f32.mrb[0].mxu0
    %v2736 = vpop.f32.mrb[0].mxu0
    %2737 = vdwg.mxu0
    %v2738 = vadd.f32 %v2684, %v2732
    %v2739 = vadd.f32 %v2686, %v2734
    %v2740 = vxor.u32 %v2738, 2147483648
    %v2741 = vmul.f32 %v2740, 1.442695
    %v2742 = vpow.pop %v2741
    %v2743 = vadd.f32 %v2742, 1.0
    %v2744 = vrcp.pop %v2743
    %v2745 = vmul.f32 1.0, %v2744
    %v2746 = vtanh.pop %v2739
    %v2747 = vxor.u32 %v2739, 2147483648
    %v2748 = vmul.f32 %v2747, 1.442695
    %v2749 = vpow.pop %v2748
    %v2750 = vadd.f32 %v2749, 1.0
    %v2751 = vrcp.pop %v2750
    %v2752 = vmul.f32 1.0, %v2751
    %v2753 = vmul.f32 %v2745, %v2526
    %v2754 = vmul.f32 %v2745, %v2746
    %2756 = vrot.lane.b32.xlu0 %v2754, 64
    %v2757 = vpop.permute.xlu0 %2756
    %v2759 = vadd.f32 %v2753, %v2757
    %v2760 = vtanh.pop %v2759
    %v2761 = vmul.f32 %v2752, %v2760
    %2762 = vmatprep.subr.bf16.mxu0 0
    %2763 = vmatpush1.bf16.msra.mxu0 %v1000
    %2764 = vmatprep.subr.bf16.mxu0 0
    %2765 = vmatpush1.bf16.msra.mxu0 %v1001
    %2766 = vmatprep.subr.bf16.mxu0 0
    %2767 = vmatpush1.bf16.msra.mxu0 %v1002
    %2768 = vmatprep.subr.bf16.mxu0 0
    %2769 = vmatpush1.bf16.msra.mxu0 %v1003
    %2770 = vmatprep.subr.bf16.mxu0 0
    %2771 = vmatpush1.bf16.msra.mxu0 0
    %2772 = vmatprep.subr.bf16.mxu0 0
    %2773 = vmatpush1.bf16.msra.mxu0 0
    %2774 = vmatprep.subr.bf16.mxu0 0
    %2775 = vmatpush1.bf16.msra.mxu0 0
    %2776 = vmatprep.subr.bf16.mxu0 0
    %2777 = vmatpush1.bf16.msra.mxu0 0
    %2778 = vmatprep.subr.bf16.mxu0 0
    %2779 = vmatpush1.bf16.msra.mxu0 0
    %2780 = vmatprep.subr.bf16.mxu0 0
    %2781 = vmatpush1.bf16.msra.mxu0 0
    %2782 = vmatprep.subr.bf16.mxu0 0
    %2783 = vmatpush1.bf16.msra.mxu0 0
    %2784 = vmatprep.subr.bf16.mxu0 0
    %2785 = vmatpush1.bf16.msra.mxu0 0
    %2786 = vmatprep.subr.bf16.mxu0 0
    %2787 = vmatpush1.bf16.msra.mxu0 0
    %2788 = vmatprep.subr.bf16.mxu0 0
    %2789 = vmatpush1.bf16.msra.mxu0 0
    %2790 = vmatprep.subr.bf16.mxu0 0
    %2791 = vmatpush1.bf16.msra.mxu0 0
    %2792 = vmatprep.subr.bf16.mxu0 0
    %2793 = vmatpush1.bf16.msra.mxu0 0
    %2794 = vmatprep.mubr.bf16.mxu0 0
    %2795 = vmatmul.mubr.bf16.gmra.mrb[0].mxu0 %v2695
    %v2796 = vpop.f32.mrb[0].mxu0
    %v2797 = vadd.f32 %v982, %v2796
    %v2798 = vpop.f32.mrb[0].mxu0
    %v2799 = vpop.f32.mrb[0].mxu0
    %v2800 = vpop.f32.mrb[0].mxu0
    %2801 = vdwg.mxu0
    %v2802 = vpack.c.bf16 %v2640, %v2640
    %2804 = vrot.lane.b32.xlu0 %v2802, 32
    %v2805 = vpop.permute.xlu0 %2804
    %v2807 = vsel %vm459, %v2805, 0
    %2809 = vmatprep.subr.bf16.mxu0 0
    %2810 = vmatpush1.bf16.msra.mxu0 %v1056
    %2811 = vmatprep.subr.bf16.mxu0 0
    %2812 = vmatpush1.bf16.msra.mxu0 %v1057
    %2813 = vmatprep.subr.bf16.mxu0 0
    %2814 = vmatpush1.bf16.msra.mxu0 0
    %2815 = vmatprep.subr.bf16.mxu0 0
    %2816 = vmatpush1.bf16.msra.mxu0 0
    %2817 = vmatprep.subr.bf16.mxu0 0
    %2818 = vmatpush1.bf16.msra.mxu0 0
    %2819 = vmatprep.subr.bf16.mxu0 0
    %2820 = vmatpush1.bf16.msra.mxu0 0
    %2821 = vmatprep.subr.bf16.mxu0 0
    %2822 = vmatpush1.bf16.msra.mxu0 0
    %2823 = vmatprep.subr.bf16.mxu0 0
    %2824 = vmatpush1.bf16.msra.mxu0 0
    %2825 = vmatprep.subr.bf16.mxu0 0
    %2826 = vmatpush1.bf16.msra.mxu0 0
    %2827 = vmatprep.subr.bf16.mxu0 0
    %2828 = vmatpush1.bf16.msra.mxu0 0
    %2829 = vmatprep.subr.bf16.mxu0 0
    %2830 = vmatpush1.bf16.msra.mxu0 0
    %2831 = vmatprep.subr.bf16.mxu0 0
    %2832 = vmatpush1.bf16.msra.mxu0 0
    %2833 = vmatprep.subr.bf16.mxu0 0
    %2834 = vmatpush1.bf16.msra.mxu0 0
    %2835 = vmatprep.subr.bf16.mxu0 0
    %2836 = vmatpush1.bf16.msra.mxu0 0
    %2837 = vmatprep.subr.bf16.mxu0 0
    %2838 = vmatpush1.bf16.msra.mxu0 0
    %2839 = vmatprep.subr.bf16.mxu0 0
    %2840 = vmatpush1.bf16.msra.mxu0 0
    %2841 = vmatprep.mubr.bf16.mxu0 0
    %2842 = vmatmul.mubr.bf16.gmra.mrb[0].mxu0 %v2807
    %v2843 = vpop.f32.mrb[0].mxu0
    %v2844 = vadd.f32 0.0, %v2843
    %v2845 = vpop.f32.mrb[0].mxu0
    %v2846 = vpop.f32.mrb[0].mxu0
    %v2847 = vpop.f32.mrb[0].mxu0
    %2848 = vdwg.mxu0
    %v2849 = vadd.f32 %v2797, %v2844
    %v2850 = vxor.u32 %v2849, 2147483648
    %v2851 = vmul.f32 %v2850, 1.442695
    %v2852 = vpow.pop %v2851
    %v2853 = vadd.f32 %v2852, 1.0
    %v2854 = vrcp.pop %v2853
    %v2855 = vmul.f32 1.0, %v2854
    %v2856 = vtanh.pop %v2849
    %v2857 = vmul.f32 %v2855, %v2634
    %2859 = vrot.lane.b32.xlu0 %v2856, 64
    %v2860 = vpop.permute.xlu0 %2859
    %v2862 = vmul.f32 %v2855, %v2860
    %2864 = vrot.lane.b32.xlu0 %v2862, 32
    %v2865 = vpop.permute.xlu0 %2864
    %v2867 = vadd.f32 %v2857, %v2865
    %v2868 = vtanh.pop %v2867
    %2870 = vrot.lane.b32.xlu0 %v2868, 64
    %v2871 = vpop.permute.xlu0 %2870
    %v2873 = vmul.f32 %v2855, %v2871
    %v2874 = vpack.c.bf16 %v2761, %v2761
    %2876 = vrot.lane.b32.xlu0 %v2874, 64
    %v2877 = vpop.permute.xlu0 %2876
    %v2879 = vsel %vm718, %v2877, 0
    %2881 = vmatprep.subr.bf16.mxu0 0
    %2882 = vmatpush1.bf16.msra.mxu0 %v1000
    %2883 = vmatprep.subr.bf16.mxu0 0
    %2884 = vmatpush1.bf16.msra.mxu0 %v1001
    %2885 = vmatprep.subr.bf16.mxu0 0
    %2886 = vmatpush1.bf16.msra.mxu0 %v1002
    %2887 = vmatprep.subr.bf16.mxu0 0
    %2888 = vmatpush1.bf16.msra.mxu0 %v1003
    %2889 = vmatprep.subr.bf16.mxu0 0
    %2890 = vmatpush1.bf16.msra.mxu0 0
    %2891 = vmatprep.subr.bf16.mxu0 0
    %2892 = vmatpush1.bf16.msra.mxu0 0
    %2893 = vmatprep.subr.bf16.mxu0 0
    %2894 = vmatpush1.bf16.msra.mxu0 0
    %2895 = vmatprep.subr.bf16.mxu0 0
    %2896 = vmatpush1.bf16.msra.mxu0 0
    %2897 = vmatprep.subr.bf16.mxu0 0
    %2898 = vmatpush1.bf16.msra.mxu0 0
    %2899 = vmatprep.subr.bf16.mxu0 0
    %2900 = vmatpush1.bf16.msra.mxu0 0
    %2901 = vmatprep.subr.bf16.mxu0 0
    %2902 = vmatpush1.bf16.msra.mxu0 0
    %2903 = vmatprep.subr.bf16.mxu0 0
    %2904 = vmatpush1.bf16.msra.mxu0 0
    %2905 = vmatprep.subr.bf16.mxu0 0
    %2906 = vmatpush1.bf16.msra.mxu0 0
    %2907 = vmatprep.subr.bf16.mxu0 0
    %2908 = vmatpush1.bf16.msra.mxu0 0
    %2909 = vmatprep.subr.bf16.mxu0 0
    %2910 = vmatpush1.bf16.msra.mxu0 0
    %2911 = vmatprep.subr.bf16.mxu0 0
    %2912 = vmatpush1.bf16.msra.mxu0 0
    %2913 = vmatprep.mubr.bf16.mxu0 0
    %2914 = vmatmul.mubr.bf16.gmra.mrb[0].mxu0 %v2879
    %v2915 = vpop.f32.mrb[0].mxu0
    %v2916 = vadd.f32 %v982, %v2915
    %v2917 = vpop.f32.mrb[0].mxu0
    %v2918 = vpop.f32.mrb[0].mxu0
    %v2919 = vpop.f32.mrb[0].mxu0
    %2920 = vdwg.mxu0
    %v2921 = vpack.c.bf16 %v2873, %v2873
    %2923 = vrot.lane.b32.xlu0 %v2921, 32
    %v2924 = vpop.permute.xlu0 %2923
    %v2926 = vsel %vm459, %v2924, 0
    %2928 = vmatprep.subr.bf16.mxu0 0
    %2929 = vmatpush1.bf16.msra.mxu0 %v1056
    %2930 = vmatprep.subr.bf16.mxu0 0
    %2931 = vmatpush1.bf16.msra.mxu0 %v1057
    %2932 = vmatprep.subr.bf16.mxu0 0
    %2933 = vmatpush1.bf16.msra.mxu0 0
    %2934 = vmatprep.subr.bf16.mxu0 0
    %2935 = vmatpush1.bf16.msra.mxu0 0
    %2936 = vmatprep.subr.bf16.mxu0 0
    %2937 = vmatpush1.bf16.msra.mxu0 0
    %2938 = vmatprep.subr.bf16.mxu0 0
    %2939 = vmatpush1.bf16.msra.mxu0 0
    %2940 = vmatprep.subr.bf16.mxu0 0
    %2941 = vmatpush1.bf16.msra.mxu0 0
    %2942 = vmatprep.subr.bf16.mxu0 0
    %2943 = vmatpush1.bf16.msra.mxu0 0
    %2944 = vmatprep.subr.bf16.mxu0 0
    %2945 = vmatpush1.bf16.msra.mxu0 0
    %2946 = vmatprep.subr.bf16.mxu0 0
    %2947 = vmatpush1.bf16.msra.mxu0 0
    %2948 = vmatprep.subr.bf16.mxu0 0
    %2949 = vmatpush1.bf16.msra.mxu0 0
    %2950 = vmatprep.subr.bf16.mxu0 0
    %2951 = vmatpush1.bf16.msra.mxu0 0
    %2952 = vmatprep.subr.bf16.mxu0 0
    %2953 = vmatpush1.bf16.msra.mxu0 0
    %2954 = vmatprep.subr.bf16.mxu0 0
    %2955 = vmatpush1.bf16.msra.mxu0 0
    %2956 = vmatprep.subr.bf16.mxu0 0
    %2957 = vmatpush1.bf16.msra.mxu0 0
    %2958 = vmatprep.subr.bf16.mxu0 0
    %2959 = vmatpush1.bf16.msra.mxu0 0
    %2960 = vmatprep.mubr.bf16.mxu0 0
    %2961 = vmatmul.mubr.bf16.gmra.mrb[0].mxu0 %v2926
    %v2962 = vpop.f32.mrb[0].mxu0
    %v2963 = vadd.f32 0.0, %v2962
    %v2964 = vpop.f32.mrb[0].mxu0
    %v2965 = vpop.f32.mrb[0].mxu0
    %v2966 = vpop.f32.mrb[0].mxu0
    %2967 = vdwg.mxu0
    %v2968 = vadd.f32 %v2916, %v2963
    %v2969 = vxor.u32 %v2968, 2147483648
    %v2970 = vmul.f32 %v2969, 1.442695
    %v2971 = vpow.pop %v2970
    %v2972 = vadd.f32 %v2971, 1.0
    %v2973 = vrcp.pop %v2972
    %v2974 = vmul.f32 1.0, %v2973
    %v2975 = vtanh.pop %v2968
    %v2976 = vmul.f32 %v2974, %v2867
    %2978 = vrot.lane.b32.xlu0 %v2975, 64
    %v2979 = vpop.permute.xlu0 %2978
    %v2981 = vmul.f32 %v2974, %v2979
    %2983 = vrot.lane.b32.xlu0 %v2981, 32
    %v2984 = vpop.permute.xlu0 %2983
    %v2986 = vadd.f32 %v2976, %v2984
    %v2987 = vtanh.pop %v2986
    %2989 = vrot.lane.b32.xlu0 %v2987, 64
    %v2990 = vpop.permute.xlu0 %2989
    %v2992 = vmul.f32 %v2974, %v2990
    %v2993 = vpack.c.bf16 %v2992, %v2992
    %v2994 = vld [vmem:[%s12] sm:$0xf]
    %v2995 = vld [vmem:[%s12 + $0x4] sm:$0xf]
    %v2996 = vld [vmem:[%s12 + $0x8] sm:$0xf]
    %v2997 = vld [vmem:[%s12 + $0xc] sm:$0xf]
    %v2998 = vld [vmem:[%s13] sm:$0x1]
    %v3000 = vlaneseq
    %v3001 = vshrl.u32 %v3000, 7
    %v3002 = vsub.s32 0, %v3001
    %v3003 = vrot.slane %v2998, %v3002
    %3006 = vrot.lane.b32.xlu0 %v2993, 32
    %v3007 = vpop.permute.xlu0 %3006
    %v3012 = vunpack.c.l.b16 %v2994
    %v3013 = vunpack.c.l.b16 %v2995
    %v3014 = vunpack.c.l.b16 %v2996
    %v3015 = vunpack.c.l.b16 %v2997
    %v3016 = vpack.c.b16 %v3013, %v3012
    %v3017 = vpack.c.b16 %v3015, %v3014
    %v3021 = vsel %vm459, %v3007, 0
    %3023 = vmatprep.subr.bf16.mxu0 0
    %3024 = vmatpush1.bf16.msra.mxu0 %v3016
    %3025 = vmatprep.subr.bf16.mxu0 0
    %3026 = vmatpush1.bf16.msra.mxu0 %v3017
    %3027 = vmatprep.subr.bf16.mxu0 0
    %3028 = vmatpush1.bf16.msra.mxu0 0
    %3029 = vmatprep.subr.bf16.mxu0 0
    %3030 = vmatpush1.bf16.msra.mxu0 0
    %3031 = vmatprep.subr.bf16.mxu0 0
    %3032 = vmatpush1.bf16.msra.mxu0 0
    %3033 = vmatprep.subr.bf16.mxu0 0
    %3034 = vmatpush1.bf16.msra.mxu0 0
    %3035 = vmatprep.subr.bf16.mxu0 0
    %3036 = vmatpush1.bf16.msra.mxu0 0
    %3037 = vmatprep.subr.bf16.mxu0 0
    %3038 = vmatpush1.bf16.msra.mxu0 0
    %3039 = vmatprep.subr.bf16.mxu0 0
    %3040 = vmatpush1.bf16.msra.mxu0 0
    %3041 = vmatprep.subr.bf16.mxu0 0
    %3042 = vmatpush1.bf16.msra.mxu0 0
    %3043 = vmatprep.subr.bf16.mxu0 0
    %3044 = vmatpush1.bf16.msra.mxu0 0
    %3045 = vmatprep.subr.bf16.mxu0 0
    %3046 = vmatpush1.bf16.msra.mxu0 0
    %3047 = vmatprep.subr.bf16.mxu0 0
    %3048 = vmatpush1.bf16.msra.mxu0 0
    %3049 = vmatprep.subr.bf16.mxu0 0
    %3050 = vmatpush1.bf16.msra.mxu0 0
    %3051 = vmatprep.subr.bf16.mxu0 0
    %3052 = vmatpush1.bf16.msra.mxu0 0
    %3053 = vmatprep.subr.bf16.mxu0 0
    %3054 = vmatpush1.bf16.msra.mxu0 0
    %3055 = vmatprep.mubr.bf16.mxu0 0
    %3056 = vmatmul.mubr.bf16.gmra.mrb[0].mxu0 %v3021
    %v3057 = vpop.f32.mrb[0].mxu0
    %v3058 = vadd.f32 %v3003, %v3057
    %v3059 = vpop.f32.mrb[0].mxu0
    %v3060 = vpop.f32.mrb[0].mxu0
    %v3061 = vpop.f32.mrb[0].mxu0
    %3062 = vdwg.mxu0
    %v3063 = vmax.f32 %v3058, 0.0
    %v3064 = vld [vmem:[%s14] sm:$0x1]
    %v3066 = vlaneseq
    %v3067 = vshrl.u32 %v3066, 7
    %v3068 = vsub.s32 0, %v3067
    %v3069 = vrot.slane %v3064, %v3068
    %v3071 = vmul.f32 %v3063, %v3069
    %vm3072 = vcmask 123904
    %v3073 = vsel %vm3072, %v3071, 0.0
    %3074 = vadd.xlane.f32.xlu0 %v3073
    %v3075 = vpop.xlane.xlu0 %3074
    %v3076 = vld [vmem:[#allocation3] sm:$0x1]
    %v3078 = vlaneseq
    %v3079 = vshrl.u32 %v3078, 7
    %v3080 = vsub.s32 0, %v3079
    %v3081 = vrot.slane %v3076, %v3080
    %v3083 = vadd.f32 %v3075, %v3081
    %vm3084 = vcmask 1024
    %3085 = vst.msk [vmem:[%s16] sm:$0x3] %vm3084, %v3083
    // Predicated region
    $region90: #{tpu_custom_call.1} parent=1 // pred_check
      _
    $region91: #{tpu_custom_call.1} parent=1 // pred_check_branch
      %3087 = sbr.rel (0) target = $region93
    $region92: #{tpu_custom_call.1} parent=1 // pred_region
      _
    $region93: #{tpu_custom_call.1} parent=1 // pred_fallthru
      _
    // Predicated region
    $region94: #{tpu_custom_call.1} parent=1 // pred_check
      _
    $region95: #{tpu_custom_call.1} parent=1 // pred_check_branch
      %3089 = sbr.rel (0) target = $region97
    $region96: #{tpu_custom_call.1} parent=1 // pred_region
      _
    $region97: #{tpu_custom_call.1} parent=1 // pred_fallthru
      _
    %3090 = vsyncpa [#allocation5], 1
    %3091 = vsyncpa [#allocation9], 1
    %3092 = vsyncpa [#allocation12], 1
    %3093 = vsyncpa [#allocation6], 1

</llo_original>
